<compile_context>
chip_gen: v6e
topology: v6e:2x2x1
jax: 0.10.0
libtpu: 0.0.40
codegen_flags: <defaults>
</compile_context>

<pallas_src>
import jax
import jax.numpy as jnp
from jax.experimental import pallas as pl
from jax.experimental.pallas import tpu as pltpu


def _elu_plus_one(x):
    # F.elu(x, alpha=1) + 1  ==  x + 1 if x > 0 else exp(x).
    # The exp of the (discarded) positive branch may overflow to +inf, but the
    # select never produces a NaN, so no clamp is needed.
    return jnp.where(x > 0, x + 1.0, jnp.exp(x))


def _spectral_attention_kernel(x_ref, wqkv_ref, bqkv_ref, wo_ref, bo_ref,
                               tril_ref, o_ref, carry_ref):
    """One grid step = one (batch b, sequence-chunk l) tile."""
    l = pl.program_id(1)

    # Reset the cross-chunk running sum of phi(k)*v at the start of each batch
    # row.  Correct only because the scan axis (l) is the LAST, sequentially
    # executed ("arbitrary") grid axis; the megacore split happens on b only.
    @pl.when(l == 0)
    def _():
        carry_ref[...] = jnp.zeros_like(carry_ref)

    d_model = wo_ref.shape[0]
    tl = x_ref.shape[0]

    # Fused Q|K|V projection: one (TL, D) @ (D, 3D) MXU pass, f32 accumulation.
    # MXU operand dtype follows the weight dtype (bf16 weights -> bf16 rate).
    x_mxu = x_ref[...].astype(wqkv_ref.dtype)
    qkv = jnp.dot(x_mxu, wqkv_ref[...], preferred_element_type=jnp.float32)
    qkv = qkv + bqkv_ref[...]                                 # (TL, 3D), f32

    # phi = ELU + 1 on the q|k halves in one (TL, 2D) pass; v comes straight
    # from the fused slab (fewer materialized (TL, D) intermediates).
    phi_qk = _elu_plus_one(qkv[:, :2 * d_model])              # (TL, 2D), f32
    phi_q = phi_qk[:, :d_model]                               # (TL, D)
    kv = phi_qk[:, d_model:] * qkv[:, 2 * d_model:]           # phi(k) * v, f32

    # Chunked causal prefix sum: in-chunk scan via a (TL, TL) tril-ones matmul
    # (operands at tril's dtype, f32 accumulate) plus the carried sum over all
    # previous chunks.
    prev = carry_ref[...]                                     # (1, D), f32
    cum = jnp.dot(tril_ref[...], kv.astype(tril_ref.dtype),
                  preferred_element_type=jnp.float32) + prev
    carry_ref[...] = cum[tl - 1:tl, :]                        # == prev + sum(kv)

    # 1/sqrt(head_dim) is folded into wo, so no explicit scale multiply here.
    ctx = (phi_q * cum).astype(wo_ref.dtype)                  # (TL, D)
    out = jnp.dot(ctx, wo_ref[...], preferred_element_type=jnp.float32)
    o_ref[...] = (out + bo_ref[...]).astype(o_ref.dtype)


def prepare_spectral_attention_params(params, n_heads, mxu_dtype=None):
    """One-time parameter packing (call at setup time, not per forward).

    params = (wq, bq, wk, bk, wv, bv, wo, bo) with weights stored input-major
    (D_in, D_out) so that y = x @ W + b (i.e. W = W_pytorch.T).
    """
    wq, bq, wk, bk, wv, bv, wo, bo = params
    d_model = wq.shape[0]
    assert d_model % n_heads == 0, "d_model must be divisible by n_heads"
    scale = (d_model // n_heads) ** -0.5

    wqkv = jnp.concatenate([wq, wk, wv], axis=1)              # (D, 3D)
    bqkv = jnp.concatenate([bq, bk, bv]).reshape(1, 3 * d_model).astype(jnp.float32)
    wo_scaled = wo * jnp.float32(scale)                       # fold per-head scale
    bo2 = bo.reshape(1, d_model).astype(jnp.float32)

    if mxu_dtype is not None:
        # TODO(synk): fp8 weights (v7x only, with folded scales) would halve
        # weight VMEM again; bf16 is the portable choice for v5e/v6e.
        wqkv = wqkv.astype(mxu_dtype)
        wo_scaled = wo_scaled.astype(mxu_dtype)
    return wqkv, bqkv, wo_scaled, bo2


def spectral_attention(x, prepared_params, *, seq_block=512, weight_buffers=1):
    """x: (B, L, D); prepared_params from prepare_spectral_attention_params.

    seq_block: sequence tile TL (sweep 256-512 per D).
    weight_buffers: pipeline depth for the grid-invariant operands (weights,
      biases, tril). 1 = single-buffered (halves resident weight VMEM);
      None = Pallas default double-buffering.
    """
    wqkv, bqkv, wo, bo = prepared_params
    B, L, D = x.shape
    assert wqkv.shape == (D, 3 * D) and wo.shape == (D, D)

    tl = min(seq_block, L)
    # TODO(synk): ragged L (L % tl != 0) would need a masked tail chunk.
    assert L % tl == 0, "sequence length must be divisible by the sequence tile"
    nl = L // tl

    # Scan matmul dtype follows the weight dtype on the bf16 path.
    scan_dtype = (jnp.bfloat16 if wqkv.dtype == jnp.dtype(jnp.bfloat16)
                  else jnp.float32)
    tril = jnp.tril(jnp.ones((tl, tl), scan_dtype))           # (TL, TL), not (L, L)

    x_item = jnp.dtype(x.dtype).itemsize
    w_item = jnp.dtype(wqkv.dtype).itemsize
    s_item = jnp.dtype(scan_dtype).itemsize
    wbuf = 1 if weight_buffers == 1 else 2
    est = (2 * 2 * tl * D * x_item                 # x + out tiles, double-buffered
           + wbuf * (3 * D * D + D * D) * w_item   # resident weights
           + wbuf * tl * tl * s_item               # tril
           + 10 * tl * D * 4)                      # f32 temporaries headroom
    # Per-generation VMEM ask (~75% of physical: ~96 MiB v5e/v6e, ~48 MiB v7x).
    try:
        vmem_cap = pltpu.get_tpu_info().vmem_capacity_bytes
    except Exception:
        vmem_cap = 128 * 1024 * 1024
    vmem_limit = int(min(max(2 * est, 32 * 1024 * 1024), (3 * vmem_cap) // 4))

    cost = pl.CostEstimate(
        flops=2 * B * L * D * (4 * D + tl),        # QKV + out-proj + chunked scan
        transcendentals=2 * B * L * D,             # exp in the two ELUs
        bytes_accessed=(2 * B * L * D * x_item     # x in + out
                        + 4 * D * D * w_item + 4 * D * 4 + tl * tl * s_item),
    )

    out_shape = jax.ShapeDtypeStruct((B, L, D), x.dtype)

    def build_and_run(wb):
        const_kw = {} if wb is None else dict(pipeline_mode=pl.Buffered(wb))
        grid_spec = pltpu.PrefetchScalarGridSpec(
            num_scalar_prefetch=0,
            grid=(B, nl),                                              # scan axis last
            in_specs=[
                pl.BlockSpec((None, tl, D), lambda b, l: (b, l, 0)),        # x tile
                pl.BlockSpec((D, 3 * D), lambda b, l: (0, 0), **const_kw),  # fused QKV W
                pl.BlockSpec((1, 3 * D), lambda b, l: (0, 0), **const_kw),  # fused QKV b
                pl.BlockSpec((D, D), lambda b, l: (0, 0), **const_kw),      # out-proj W
                pl.BlockSpec((1, D), lambda b, l: (0, 0), **const_kw),      # out-proj b
                pl.BlockSpec((tl, tl), lambda b, l: (0, 0), **const_kw),    # in-chunk tril
            ],
            out_specs=pl.BlockSpec((None, tl, D), lambda b, l: (b, l, 0)),
            scratch_shapes=[pltpu.VMEM((1, D), jnp.float32)],          # running kv-sum carry
        )
        return pl.pallas_call(
            _spectral_attention_kernel,
            out_shape=out_shape,
            grid_spec=grid_spec,
            compiler_params=pltpu.CompilerParams(
                dimension_semantics=("parallel", "arbitrary"),
                vmem_limit_bytes=vmem_limit),
            cost_estimate=cost,
        )(x, wqkv, bqkv, wo, bo, tril)

    if weight_buffers is None:
        return build_and_run(None)
    try:
        return build_and_run(weight_buffers)
    except Exception:
        # Fallback for JAX versions that reject pipeline_mode / Buffered(1) on a
        # top-level BlockSpec: keep default double-buffering (correctness first).
        return build_and_run(None)


def spectral_attention_ref(x, params, n_heads):
    """Plain-JAX mirror of the PyTorch forward (including per-head reshapes)."""
    B, L, D = x.shape
    head_dim = D // n_heads
    scale = head_dim ** -0.5
    wq, bq, wk, bk, wv, bv, wo, bo = params

    def elu(z):
        return jnp.where(z > 0, z, jnp.exp(jnp.minimum(z, 0.0)) - 1.0)

    q = x @ wq + bq
    k = x @ wk + bk
    v = x @ wv + bv
    phi_q = elu(q) + 1.0
    phi_k = elu(k) + 1.0
    phi_q = phi_q.reshape(B, L, n_heads, head_dim).transpose(0, 2, 1, 3)
    phi_k = phi_k.reshape(B, L, n_heads, head_dim).transpose(0, 2, 1, 3)
    v = v.reshape(B, L, n_heads, head_dim).transpose(0, 2, 1, 3)
    kv_sum = jnp.cumsum(phi_k * v, axis=2)
    context = phi_q * kv_sum
    context = context.transpose(0, 2, 1, 3).reshape(B, L, D)
    context = context * scale
    return context @ wo + bo


if __name__ == "__main__":
    # Lane-dense shapes: D a multiple of 128; B >= 2 keeps both v7x TCs busy.
    B, L, D, n_heads = 2, 256, 128, 4

    key = jax.random.PRNGKey(0)
    kx, kq, kk, kv, ko, kbq, kbk, kbv, kbo = jax.random.split(key, 9)

    x = jax.random.normal(kx, (B, L, D), jnp.float32)

    init = 1.0 / float(D) ** 0.5
    wq = jax.random.uniform(kq, (D, D), jnp.float32, -init, init)
    wk = jax.random.uniform(kk, (D, D), jnp.float32, -init, init)
    wv = jax.random.uniform(kv, (D, D), jnp.float32, -init, init)
    wo = jax.random.uniform(ko, (D, D), jnp.float32, -init, init)
    bq = jax.random.uniform(kbq, (D,), jnp.float32, -init, init)
    bk = jax.random.uniform(kbk, (D,), jnp.float32, -init, init)
    bv = jax.random.uniform(kbv, (D,), jnp.float32, -init, init)
    bo = jax.random.uniform(kbo, (D,), jnp.float32, -init, init)
    params = (wq, bq, wk, bk, wv, bv, wo, bo)

    ref = spectral_attention_ref(x, params, n_heads)

    # fp32 path, single full-sequence chunk (TL = min(512, L) = 256).
    prepared = prepare_spectral_attention_params(params, n_heads)
    out = spectral_attention(x, prepared)
    out = jax.block_until_ready(out)
    assert out.shape == (B, L, D)
    assert jnp.allclose(out, ref, atol=2e-3, rtol=2e-3), "fp32 mismatch vs reference"

    # Multi-chunk path (exercises the cross-chunk carry in VMEM scratch).
    out_chunked = spectral_attention(x, prepared, seq_block=128)
    out_chunked = jax.block_until_ready(out_chunked)
    assert jnp.allclose(out_chunked, ref, atol=2e-3, rtol=2e-3), "chunked-scan mismatch"

    # bf16 weights + bf16 HBM activations (f32 accumulation & elementwise math):
    # recovers bf16 MXU rate and halves activation + weight HBM traffic.
    prepared_bf16 = prepare_spectral_attention_params(params, n_heads,
                                                      mxu_dtype=jnp.bfloat16)
    out_bf16 = spectral_attention(x.astype(jnp.bfloat16), prepared_bf16)
    out_bf16 = jax.block_until_ready(out_bf16)
    assert out_bf16.dtype == jnp.bfloat16
    out_bf16_f32 = out_bf16.astype(jnp.float32)
    assert bool(jnp.all(jnp.isfinite(out_bf16_f32)))
    assert jnp.allclose(out_bf16_f32, ref, atol=0.2, rtol=0.05), "bf16 path diverged"

    print("KERNEL_OK")
</pallas_src>

<mosaic_0001>
module attributes {stable_mosaic.version = 11 : i64} {
  func.func @_spectral_attention_kernel(%arg0: i32, %arg1: i32, %arg2: memref<1x256x128xf32, #tpu.memory_space<vmem>>, %arg3: memref<128x384xf32, #tpu.memory_space<vmem>>, %arg4: memref<1x384xf32, #tpu.memory_space<vmem>>, %arg5: memref<128x128xf32, #tpu.memory_space<vmem>>, %arg6: memref<1x128xf32, #tpu.memory_space<vmem>>, %arg7: memref<256x256xf32, #tpu.memory_space<vmem>>, %arg8: memref<1x256x128xf32, #tpu.memory_space<vmem>>, %arg9: memref<1x128xf32, #tpu.memory_space<vmem>>) attributes {dimension_semantics = [#tpu.dimension_semantics<parallel>, #tpu.dimension_semantics<arbitrary>], iteration_bounds = array<i64: 2, 1>, scalar_prefetch = 0 : i64, scratch_operands = 1 : i64, tpu.core_type = #tpu.core_type<tc>, window_params = [{transform_indices = @transform_0, window_bounds = array<i64: 1, 256, 128>}, {pipeline_mode = #tpu.pipeline_mode<synchronous>, transform_indices = @transform_1, window_bounds = array<i64: 128, 384>}, {pipeline_mode = #tpu.pipeline_mode<synchronous>, transform_indices = @transform_2, window_bounds = array<i64: 1, 384>}, {pipeline_mode = #tpu.pipeline_mode<synchronous>, transform_indices = @transform_3, window_bounds = array<i64: 128, 128>}, {pipeline_mode = #tpu.pipeline_mode<synchronous>, transform_indices = @transform_4, window_bounds = array<i64: 1, 128>}, {pipeline_mode = #tpu.pipeline_mode<synchronous>, transform_indices = @transform_5, window_bounds = array<i64: 256, 256>}, {transform_indices = @transform_6, window_bounds = array<i64: 1, 256, 128>}]} {
    %c0_i32 = arith.constant 0 : i32
    %0 = arith.cmpi eq, %arg1, %c0_i32 : i32
    %1 = arith.extui %0 : i1 to i32
    %c0_i32_0 = arith.constant 0 : i32
    %2 = arith.cmpi ne, %1, %c0_i32_0 : i32
    scf.if %2 {
      %cst_24 = arith.constant 0.000000e+00 : f32
      %37 = vector.broadcast %cst_24 : f32 to vector<1x128xf32>
      %c0_25 = arith.constant 0 : index
      %c0_26 = arith.constant 0 : index
      %38 = vector.load %arg9[%c0_25, %c0_26] : memref<1x128xf32, #tpu.memory_space<vmem>>, vector<1x128xf32>
      tpu.vector_store %arg9[%c0_25, %c0_26], %37 {strides = array<i32>} : memref<1x128xf32, #tpu.memory_space<vmem>>, vector<1x128xf32>,
    } else {
    }
    %c0 = arith.constant 0 : index
    %c0_1 = arith.constant 0 : index
    %c0_2 = arith.constant 0 : index
    %3 = vector.load %arg2[%c0, %c0_1, %c0_2] : memref<1x256x128xf32, #tpu.memory_space<vmem>>, vector<1x256x128xf32>
    %4 = vector.shape_cast %3 : vector<1x256x128xf32> to vector<256x128xf32>
    %c0_3 = arith.constant 0 : index
    %c0_4 = arith.constant 0 : index
    %5 = vector.load %arg3[%c0_3, %c0_4] : memref<128x384xf32, #tpu.memory_space<vmem>>, vector<128x384xf32>
    %cst = arith.constant dense<0.000000e+00> : vector<256x384xf32>
    %6 = tpu.matmul %4, %5, %cst {dimension_numbers = #tpu.dot_dimension_numbers<[1], [0], [0], [1], [0, 0, 1, 1], [], []>} : vector<256x128xf32>, vector<128x384xf32>, vector<256x384xf32> -> vector<256x384xf32>
    %c0_5 = arith.constant 0 : index
    %c0_6 = arith.constant 0 : index
    %7 = vector.load %arg4[%c0_5, %c0_6] : memref<1x384xf32, #tpu.memory_space<vmem>>, vector<1x384xf32>
    %8 = vector.broadcast %7 : vector<1x384xf32> to vector<256x384xf32>
    %9 = arith.addf %6, %8 : vector<256x384xf32>
    %10 = vector.extract_strided_slice %9 {offsets = [0, 0], sizes = [256, 256], strides = [1, 1]} : vector<256x384xf32> to vector<256x256xf32>
    %cst_7 = arith.constant 0.000000e+00 : f32
    %11 = vector.broadcast %cst_7 : f32 to vector<256x256xf32>
    %12 = arith.cmpf ogt, %10, %11 : vector<256x256xf32>
    %cst_8 = arith.constant 1.000000e+00 : f32
    %13 = vector.broadcast %cst_8 : f32 to vector<256x256xf32>
    %14 = arith.addf %10, %13 : vector<256x256xf32>
    %15 = math.exp %10 : vector<256x256xf32>
    %16 = arith.select %12, %14, %15 : vector<256x256xi1>, vector<256x256xf32>
    %17 = vector.extract_strided_slice %16 {offsets = [0, 0], sizes = [256, 128], strides = [1, 1]} : vector<256x256xf32> to vector<256x128xf32>
    %18 = vector.extract_strided_slice %16 {offsets = [0, 128], sizes = [256, 128], strides = [1, 1]} : vector<256x256xf32> to vector<256x128xf32>
    %19 = vector.extract_strided_slice %9 {offsets = [0, 256], sizes = [256, 128], strides = [1, 1]} : vector<256x384xf32> to vector<256x128xf32>
    %20 = arith.mulf %18, %19 : vector<256x128xf32>
    %c0_9 = arith.constant 0 : index
    %c0_10 = arith.constant 0 : index
    %21 = vector.load %arg9[%c0_9, %c0_10] : memref<1x128xf32, #tpu.memory_space<vmem>>, vector<1x128xf32>
    %c0_11 = arith.constant 0 : index
    %c0_12 = arith.constant 0 : index
    %22 = vector.load %arg7[%c0_11, %c0_12] : memref<256x256xf32, #tpu.memory_space<vmem>>, vector<256x256xf32>
    %cst_13 = arith.constant dense<0.000000e+00> : vector<256x128xf32>
    %23 = tpu.matmul %22, %20, %cst_13 {dimension_numbers = #tpu.dot_dimension_numbers<[1], [0], [0], [1], [0, 0, 1, 1], [], []>} : vector<256x256xf32>, vector<256x128xf32>, vector<256x128xf32> -> vector<256x128xf32>
    %24 = vector.broadcast %21 : vector<1x128xf32> to vector<256x128xf32>
    %25 = arith.addf %23, %24 : vector<256x128xf32>
    %26 = vector.extract_strided_slice %25 {offsets = [255, 0], sizes = [1, 128], strides = [1, 1]} : vector<256x128xf32> to vector<1x128xf32>
    %c0_14 = arith.constant 0 : index
    %c0_15 = arith.constant 0 : index
    %27 = vector.load %arg9[%c0_14, %c0_15] : memref<1x128xf32, #tpu.memory_space<vmem>>, vector<1x128xf32>
    tpu.vector_store %arg9[%c0_14, %c0_15], %26 {strides = array<i32>} : memref<1x128xf32, #tpu.memory_space<vmem>>, vector<1x128xf32>,
    %28 = arith.mulf %17, %25 : vector<256x128xf32>
    %c0_16 = arith.constant 0 : index
    %c0_17 = arith.constant 0 : index
    %29 = vector.load %arg5[%c0_16, %c0_17] : memref<128x128xf32, #tpu.memory_space<vmem>>, vector<128x128xf32>
    %cst_18 = arith.constant dense<0.000000e+00> : vector<256x128xf32>
    %30 = tpu.matmul %28, %29, %cst_18 {dimension_numbers = #tpu.dot_dimension_numbers<[1], [0], [0], [1], [0, 0, 1, 1], [], []>} : vector<256x128xf32>, vector<128x128xf32>, vector<256x128xf32> -> vector<256x128xf32>
    %c0_19 = arith.constant 0 : index
    %c0_20 = arith.constant 0 : index
    %31 = vector.load %arg6[%c0_19, %c0_20] : memref<1x128xf32, #tpu.memory_space<vmem>>, vector<1x128xf32>
    %32 = vector.broadcast %31 : vector<1x128xf32> to vector<256x128xf32>
    %33 = arith.addf %30, %32 : vector<256x128xf32>
    %c0_21 = arith.constant 0 : index
    %c0_22 = arith.constant 0 : index
    %c0_23 = arith.constant 0 : index
    %34 = vector.load %arg8[%c0_21, %c0_22, %c0_23] : memref<1x256x128xf32, #tpu.memory_space<vmem>>, vector<1x256x128xf32>
    %35 = vector.shape_cast %34 : vector<1x256x128xf32> to vector<256x128xf32>
    %36 = vector.shape_cast %33 : vector<256x128xf32> to vector<1x256x128xf32>
    tpu.vector_store %arg8[%c0_21, %c0_22, %c0_23], %36 {strides = array<i32>} : memref<1x256x128xf32, #tpu.memory_space<vmem>>, vector<1x256x128xf32>,
    return
  }
  func.func @transform_0(%arg0: i32, %arg1: i32) -> (i32, i32, i32) {
    %c0_i32 = arith.constant 0 : i32
    %c0_i32_0 = arith.constant 0 : i32
    return %arg0, %arg1, %c0_i32 : i32, i32, i32
  }
  func.func @transform_1(%arg0: i32, %arg1: i32) -> (i32, i32) {
    %c0_i32 = arith.constant 0 : i32
    %c0_i32_0 = arith.constant 0 : i32
    %c0_i32_1 = arith.constant 0 : i32
    return %c0_i32, %c0_i32_0 : i32, i32
  }
  func.func @transform_2(%arg0: i32, %arg1: i32) -> (i32, i32) {
    %c0_i32 = arith.constant 0 : i32
    %c0_i32_0 = arith.constant 0 : i32
    %c0_i32_1 = arith.constant 0 : i32
    return %c0_i32, %c0_i32_0 : i32, i32
  }
  func.func @transform_3(%arg0: i32, %arg1: i32) -> (i32, i32) {
    %c0_i32 = arith.constant 0 : i32
    %c0_i32_0 = arith.constant 0 : i32
    %c0_i32_1 = arith.constant 0 : i32
    return %c0_i32, %c0_i32_0 : i32, i32
  }
  func.func @transform_4(%arg0: i32, %arg1: i32) -> (i32, i32) {
    %c0_i32 = arith.constant 0 : i32
    %c0_i32_0 = arith.constant 0 : i32
    %c0_i32_1 = arith.constant 0 : i32
    return %c0_i32, %c0_i32_0 : i32, i32
  }
  func.func @transform_5(%arg0: i32, %arg1: i32) -> (i32, i32) {
    %c0_i32 = arith.constant 0 : i32
    %c0_i32_0 = arith.constant 0 : i32
    %c0_i32_1 = arith.constant 0 : i32
    return %c0_i32, %c0_i32_0 : i32, i32
  }
  func.func @transform_6(%arg0: i32, %arg1: i32) -> (i32, i32, i32) {
    %c0_i32 = arith.constant 0 : i32
    %c0_i32_0 = arith.constant 0 : i32
    return %arg0, %arg1, %c0_i32 : i32, i32, i32
  }
}

module attributes {stable_mosaic.version = 11 : i64} {
  func.func @_spectral_attention_kernel(%arg0: i32, %arg1: i32, %arg2: memref<1x256x128xf32, #tpu.memory_space<vmem>>, %arg3: memref<128x384xf32, #tpu.memory_space<vmem>>, %arg4: memref<1x384xf32, #tpu.memory_space<vmem>>, %arg5: memref<128x128xf32, #tpu.memory_space<vmem>>, %arg6: memref<1x128xf32, #tpu.memory_space<vmem>>, %arg7: memref<256x256xf32, #tpu.memory_space<vmem>>, %arg8: memref<1x256x128xf32, #tpu.memory_space<vmem>>, %arg9: memref<1x128xf32, #tpu.memory_space<vmem>>) attributes {dimension_semantics = [#tpu.dimension_semantics<parallel>, #tpu.dimension_semantics<arbitrary>], iteration_bounds = array<i64: 2, 1>, scalar_prefetch = 0 : i64, scratch_operands = 1 : i64, tpu.core_type = #tpu.core_type<tc>, window_params = [{transform_indices = @transform_0, window_bounds = array<i64: 1, 256, 128>}, {pipeline_mode = #tpu.pipeline_mode<synchronous>, transform_indices = @transform_1, window_bounds = array<i64: 128, 384>}, {pipeline_mode = #tpu.pipeline_mode<synchronous>, transform_indices = @transform_2, window_bounds = array<i64: 1, 384>}, {pipeline_mode = #tpu.pipeline_mode<synchronous>, transform_indices = @transform_3, window_bounds = array<i64: 128, 128>}, {pipeline_mode = #tpu.pipeline_mode<synchronous>, transform_indices = @transform_4, window_bounds = array<i64: 1, 128>}, {pipeline_mode = #tpu.pipeline_mode<synchronous>, transform_indices = @transform_5, window_bounds = array<i64: 256, 256>}, {transform_indices = @transform_6, window_bounds = array<i64: 1, 256, 128>}]} {
    %c0_i32 = arith.constant 0 : i32
    %0 = arith.cmpi eq, %arg1, %c0_i32 : i32
    %1 = arith.extui %0 : i1 to i32
    %c0_i32_0 = arith.constant 0 : i32
    %2 = arith.cmpi ne, %1, %c0_i32_0 : i32
    scf.if %2 {
      %cst_24 = arith.constant 0.000000e+00 : f32
      %37 = vector.broadcast %cst_24 : f32 to vector<1x128xf32>
      %c0_25 = arith.constant 0 : index
      %c0_26 = arith.constant 0 : index
      %38 = vector.load %arg9[%c0_25, %c0_26] : memref<1x128xf32, #tpu.memory_space<vmem>>, vector<1x128xf32>
      tpu.vector_store %arg9[%c0_25, %c0_26], %37 {strides = array<i32>} : memref<1x128xf32, #tpu.memory_space<vmem>>, vector<1x128xf32>,
    } else {
    }
    %c0 = arith.constant 0 : index
    %c0_1 = arith.constant 0 : index
    %c0_2 = arith.constant 0 : index
    %3 = vector.load %arg2[%c0, %c0_1, %c0_2] : memref<1x256x128xf32, #tpu.memory_space<vmem>>, vector<1x256x128xf32>
    %4 = vector.shape_cast %3 : vector<1x256x128xf32> to vector<256x128xf32>
    %c0_3 = arith.constant 0 : index
    %c0_4 = arith.constant 0 : index
    %5 = vector.load %arg3[%c0_3, %c0_4] : memref<128x384xf32, #tpu.memory_space<vmem>>, vector<128x384xf32>
    %cst = arith.constant dense<0.000000e+00> : vector<256x384xf32>
    %6 = tpu.matmul %4, %5, %cst {dimension_numbers = #tpu.dot_dimension_numbers<[1], [0], [0], [1], [0, 0, 1, 1], [], []>} : vector<256x128xf32>, vector<128x384xf32>, vector<256x384xf32> -> vector<256x384xf32>
    %c0_5 = arith.constant 0 : index
    %c0_6 = arith.constant 0 : index
    %7 = vector.load %arg4[%c0_5, %c0_6] : memref<1x384xf32, #tpu.memory_space<vmem>>, vector<1x384xf32>
    %8 = vector.broadcast %7 : vector<1x384xf32> to vector<256x384xf32>
    %9 = arith.addf %6, %8 : vector<256x384xf32>
    %10 = vector.extract_strided_slice %9 {offsets = [0, 0], sizes = [256, 256], strides = [1, 1]} : vector<256x384xf32> to vector<256x256xf32>
    %cst_7 = arith.constant 0.000000e+00 : f32
    %11 = vector.broadcast %cst_7 : f32 to vector<256x256xf32>
    %12 = arith.cmpf ogt, %10, %11 : vector<256x256xf32>
    %cst_8 = arith.constant 1.000000e+00 : f32
    %13 = vector.broadcast %cst_8 : f32 to vector<256x256xf32>
    %14 = arith.addf %10, %13 : vector<256x256xf32>
    %15 = math.exp %10 : vector<256x256xf32>
    %16 = arith.select %12, %14, %15 : vector<256x256xi1>, vector<256x256xf32>
    %17 = vector.extract_strided_slice %16 {offsets = [0, 0], sizes = [256, 128], strides = [1, 1]} : vector<256x256xf32> to vector<256x128xf32>
    %18 = vector.extract_strided_slice %16 {offsets = [0, 128], sizes = [256, 128], strides = [1, 1]} : vector<256x256xf32> to vector<256x128xf32>
    %19 = vector.extract_strided_slice %9 {offsets = [0, 256], sizes = [256, 128], strides = [1, 1]} : vector<256x384xf32> to vector<256x128xf32>
    %20 = arith.mulf %18, %19 : vector<256x128xf32>
    %c0_9 = arith.constant 0 : index
    %c0_10 = arith.constant 0 : index
    %21 = vector.load %arg9[%c0_9, %c0_10] : memref<1x128xf32, #tpu.memory_space<vmem>>, vector<1x128xf32>
    %c0_11 = arith.constant 0 : index
    %c0_12 = arith.constant 0 : index
    %22 = vector.load %arg7[%c0_11, %c0_12] : memref<256x256xf32, #tpu.memory_space<vmem>>, vector<256x256xf32>
    %cst_13 = arith.constant dense<0.000000e+00> : vector<256x128xf32>
    %23 = tpu.matmul %22, %20, %cst_13 {dimension_numbers = #tpu.dot_dimension_numbers<[1], [0], [0], [1], [0, 0, 1, 1], [], []>} : vector<256x256xf32>, vector<256x128xf32>, vector<256x128xf32> -> vector<256x128xf32>
    %24 = vector.broadcast %21 : vector<1x128xf32> to vector<256x128xf32>
    %25 = arith.addf %23, %24 : vector<256x128xf32>
    %26 = vector.extract_strided_slice %25 {offsets = [255, 0], sizes = [1, 128], strides = [1, 1]} : vector<256x128xf32> to vector<1x128xf32>
    %c0_14 = arith.constant 0 : index
    %c0_15 = arith.constant 0 : index
    %27 = vector.load %arg9[%c0_14, %c0_15] : memref<1x128xf32, #tpu.memory_space<vmem>>, vector<1x128xf32>
    tpu.vector_store %arg9[%c0_14, %c0_15], %26 {strides = array<i32>} : memref<1x128xf32, #tpu.memory_space<vmem>>, vector<1x128xf32>,
    %28 = arith.mulf %17, %25 : vector<256x128xf32>
    %c0_16 = arith.constant 0 : index
    %c0_17 = arith.constant 0 : index
    %29 = vector.load %arg5[%c0_16, %c0_17] : memref<128x128xf32, #tpu.memory_space<vmem>>, vector<128x128xf32>
    %cst_18 = arith.constant dense<0.000000e+00> : vector<256x128xf32>
    %30 = tpu.matmul %28, %29, %cst_18 {dimension_numbers = #tpu.dot_dimension_numbers<[1], [0], [0], [1], [0, 0, 1, 1], [], []>} : vector<256x128xf32>, vector<128x128xf32>, vector<256x128xf32> -> vector<256x128xf32>
    %c0_19 = arith.constant 0 : index
    %c0_20 = arith.constant 0 : index
    %31 = vector.load %arg6[%c0_19, %c0_20] : memref<1x128xf32, #tpu.memory_space<vmem>>, vector<1x128xf32>
    %32 = vector.broadcast %31 : vector<1x128xf32> to vector<256x128xf32>
    %33 = arith.addf %30, %32 : vector<256x128xf32>
    %c0_21 = arith.constant 0 : index
    %c0_22 = arith.constant 0 : index
    %c0_23 = arith.constant 0 : index
    %34 = vector.load %arg8[%c0_21, %c0_22, %c0_23] : memref<1x256x128xf32, #tpu.memory_space<vmem>>, vector<1x256x128xf32>
    %35 = vector.shape_cast %34 : vector<1x256x128xf32> to vector<256x128xf32>
    %36 = vector.shape_cast %33 : vector<256x128xf32> to vector<1x256x128xf32>
    tpu.vector_store %arg8[%c0_21, %c0_22, %c0_23], %36 {strides = array<i32>} : memref<1x256x128xf32, #tpu.memory_space<vmem>>, vector<1x256x128xf32>,
    return
  }
  func.func @transform_0(%arg0: i32, %arg1: i32) -> (i32, i32, i32) {
    %c0_i32 = arith.constant 0 : i32
    %c0_i32_0 = arith.constant 0 : i32
    return %arg0, %arg1, %c0_i32 : i32, i32, i32
  }
  func.func @transform_1(%arg0: i32, %arg1: i32) -> (i32, i32) {
    %c0_i32 = arith.constant 0 : i32
    %c0_i32_0 = arith.constant 0 : i32
    %c0_i32_1 = arith.constant 0 : i32
    return %c0_i32, %c0_i32_0 : i32, i32
  }
  func.func @transform_2(%arg0: i32, %arg1: i32) -> (i32, i32) {
    %c0_i32 = arith.constant 0 : i32
    %c0_i32_0 = arith.constant 0 : i32
    %c0_i32_1 = arith.constant 0 : i32
    return %c0_i32, %c0_i32_0 : i32, i32
  }
  func.func @transform_3(%arg0: i32, %arg1: i32) -> (i32, i32) {
    %c0_i32 = arith.constant 0 : i32
    %c0_i32_0 = arith.constant 0 : i32
    %c0_i32_1 = arith.constant 0 : i32
    return %c0_i32, %c0_i32_0 : i32, i32
  }
  func.func @transform_4(%arg0: i32, %arg1: i32) -> (i32, i32) {
    %c0_i32 = arith.constant 0 : i32
    %c0_i32_0 = arith.constant 0 : i32
    %c0_i32_1 = arith.constant 0 : i32
    return %c0_i32, %c0_i32_0 : i32, i32
  }
  func.func @transform_5(%arg0: i32, %arg1: i32) -> (i32, i32) {
    %c0_i32 = arith.constant 0 : i32
    %c0_i32_0 = arith.constant 0 : i32
    %c0_i32_1 = arith.constant 0 : i32
    return %c0_i32, %c0_i32_0 : i32, i32
  }
  func.func @transform_6(%arg0: i32, %arg1: i32) -> (i32, i32, i32) {
    %c0_i32 = arith.constant 0 : i32
    %c0_i32_0 = arith.constant 0 : i32
    return %arg0, %arg1, %c0_i32 : i32, i32, i32
  }
}

</mosaic_0001>

<llo_original>
// kernel: tpu_custom_call.1
$region0: #{tpu_custom_call.1}
  #allocation0 [shape = 'u32[]', space=smem, size = 0x4, offset = 0x4, fixed_abs, tag = 'smem constant byte address 0x4 - core index']
  #allocation1 [shape = 'u32[144,128]{1,0:T(1,128)}', space=vmem, size = 0x12000, scoped, tag = 'internal scratch']
  #allocation2 [shape = 'f32[1,128]{1,0:T(1,128)}', space=vmem, size = 0x200, scoped, tag = 'scratch operand']
  %s0 = inlined_call_operand.hbm [shape: f32[2,256,128], index: 0, kind: input, shape index: {}]
  %s1 = inlined_call_operand.hbm [shape: f32[128,384], index: 1, kind: input, shape index: {}]
  %s2 = inlined_call_operand.vmem [shape: f32[1,384], index: 2, kind: input, shape index: {}]
  %s3 = inlined_call_operand.hbm [shape: f32[128,128], index: 3, kind: input, shape index: {}]
  %s4 = inlined_call_operand.vmem [shape: f32[1,128], index: 4, kind: input, shape index: {}]
  %s5 = inlined_call_operand.hbm [shape: f32[256,256], index: 5, kind: input, shape index: {}]
  %s6 = inlined_call_operand.hbm [shape: f32[2,256,128], index: 6, kind: output, shape index: {}]
  %s7 = sld [smem:[#allocation0]]
  $region77: #{tpu_custom_call.1} parent=0
    _
  %s9 = ssub.s32 1, %s7
  %s10 = scalar_select 0, %s9, %s7
  $region1: #{tpu_custom_call.1} parent=0
    #allocation3 [shape = 'u8[262144]{0}', space=vmem, size = 0x40000, scoped, tag = 'input window, operand 0']
    #allocation4 [shape = 's32[2]{0}', space=sflag, size = 0x8, scoped, tag = 'scoped memory for tpu_custom_call.1']
    #allocation5 [shape = 's32[2]{0}', space=sflag, size = 0x8, scoped, tag = 'scoped memory for tpu_custom_call.1']
    #allocation6 [shape = 'u8[196608]{0}', space=vmem, size = 0x30000, scoped, tag = 'input window, operand 1, single buffered']
    #allocation7 [shape = 's32[1]{0}', space=sflag, size = 0x4, scoped, tag = 'scoped memory for tpu_custom_call.1']
    #allocation8 [shape = 'u8[65536]{0}', space=vmem, size = 0x10000, scoped, tag = 'input window, operand 3, single buffered']
    #allocation9 [shape = 'u8[262144]{0}', space=vmem, size = 0x40000, scoped, tag = 'input window, operand 5, single buffered']
    #allocation10 [shape = 's32[1]{0}', space=sflag, size = 0x4, scoped, tag = 'scoped memory for tpu_custom_call.1']
    #allocation11 [shape = 'u8[262144]{0}', space=vmem, size = 0x40000, scoped, tag = 'output window, operand 0']
    %11 = vsyncpa [#allocation4], 0
    %s12 = scalar_lea.sflag [#allocation4], 1
    %13 = vsyncpa %s12, 0
    %14 = vsyncpa [#allocation7], 0
    %15 = vsyncpa [#allocation10], 0
    %16 = vsyncpa [#allocation5], 0
    %s17 = scalar_lea.sflag [#allocation5], 1
    %18 = vsyncpa %s17, 0
    loop: start=0, step=1, limit=4
    $region2: #{tpu_custom_call.1} parent=1 // loop_pre_header
      _
    $region3: #{tpu_custom_call.1} parent=1 // loop_header
      %s20 = sphi 0, %s24
      %p21 = scmp.ge.s32.totalorder %s20, 4
      %s27 = sphi 0, %s39
      %s28 = sphi 0, %s35
      %s29 = sphi 0, %s27
      %s30 = sphi 0, %s28
      %s31 = sphi 0, %s29
      %s32 = sphi 0, %s30
      %s44 = sphi 0, %s46
      %s47 = sphi 0, %s44
      %s48 = sphi 0, %s47
      %s64 = sphi 0, %s48
      %s68 = sphi 0, %s68
      %s70 = sphi 0, %s68
      %s71 = sphi 0, %s70
      %s85 = sphi 0, %s71
      %s89 = sphi 0, %s89
      %s91 = sphi 0, %s89
      %s92 = sphi 0, %s91
      %s106 = sphi 0, %s92
      %s110 = sphi 0, %s110
      %s112 = sphi 0, %s110
      %s113 = sphi 0, %s112
      %s127 = sphi 0, %s113
      %s131 = sphi 0, %s131
      %s133 = sphi 0, %s131
      %s134 = sphi 0, %s133
      %s148 = sphi 0, %s134
      %s152 = sphi 0, %s152
      %s154 = sphi 0, %s152
      %s155 = sphi 0, %s154
      %s169 = sphi 0, %s155
      %s177 = sphi 0, %s179
      %s180 = sphi 0, %s177
      %s181 = sphi 0, %s180
      %s197 = sphi 0, %s181
    $region4: #{tpu_custom_call.1} parent=1 // loop_header_branch
      %23 = sbr.rel (%p21) target = $region8
    $region5: #{tpu_custom_call.1} parent=1 // loop_body
      %s25 = ssub.s32 %s20, 1
      %s26 = ssub.s32 %s20, 2
      %s33 = sadd.s32 1, %s28
      %p34 = scmp.ge.s32.totalorder %s33, 1
      %s35 = scalar_select %p34, 0, %s33
      %s36 = sadd.s32 1, %s27
      %s37 = scalar_select %p34, %s36, %s27
      %p38 = scmp.ge.s32.totalorder %s37, 2
      %s39 = scalar_select %p38, 0, %s37
      %s40 = ssub.s32 %s27, %s39
      %s41 = ssub.s32 %s28, %s35
      %s42 = sor.u32 %s40, %s41
      %p43 = scmp.eq.s32.totalorder %s42, 0
      %s45 = sadd.s32 %s44, 1
      %s46 = scalar_select %p43, %s44, %s45
      %p49 = pneg %p43
      %p50 = scmp.eq.s32.totalorder %s20, 1
      %p51 = por %p49, %p50
      %p52 = scmp.ne.s32.totalorder %s44, %s47
      %p53 = scmp.eq.s32.totalorder %s20, 0
      %p54 = por %p52, %p53
      %p55 = scmp.ne.s32.totalorder %s44, %s47
      %p56 = scmp.eq.s32.totalorder %s25, 1
      %p57 = por %p55, %p56
      %p58 = scmp.ne.s32.totalorder %s47, %s48
      %p59 = scmp.eq.s32.totalorder %s25, 0
      %p60 = por %p58, %p59
      %p61 = scmp.ne.s32.totalorder %s47, %s48
      %p62 = scmp.eq.s32.totalorder %s26, 1
      %p63 = por %p61, %p62
      %p65 = scmp.ne.s32.totalorder %s48, %s64
      %p66 = scmp.eq.s32.totalorder %s26, 0
      %p67 = por %p65, %p66
      %s69 = sadd.s32 %s68, 1
      %p72 = scmp.eq.s32.totalorder %s20, 1
      %p73 = scmp.ne.s32.totalorder %s68, %s70
      %p74 = scmp.eq.s32.totalorder %s20, 0
      %p75 = por %p73, %p74
      %p76 = scmp.ne.s32.totalorder %s68, %s70
      %p77 = scmp.eq.s32.totalorder %s25, 1
      %p78 = por %p76, %p77
      %p79 = scmp.ne.s32.totalorder %s70, %s71
      %p80 = scmp.eq.s32.totalorder %s25, 0
      %p81 = por %p79, %p80
      %p82 = scmp.ne.s32.totalorder %s70, %s71
      %p83 = scmp.eq.s32.totalorder %s26, 1
      %p84 = por %p82, %p83
      %p86 = scmp.ne.s32.totalorder %s71, %s85
      %p87 = scmp.eq.s32.totalorder %s26, 0
      %p88 = por %p86, %p87
      %s90 = sadd.s32 %s89, 1
      %p93 = scmp.eq.s32.totalorder %s20, 1
      %p94 = scmp.ne.s32.totalorder %s89, %s91
      %p95 = scmp.eq.s32.totalorder %s20, 0
      %p96 = por %p94, %p95
      %p97 = scmp.ne.s32.totalorder %s89, %s91
      %p98 = scmp.eq.s32.totalorder %s25, 1
      %p99 = por %p97, %p98
      %p100 = scmp.ne.s32.totalorder %s91, %s92
      %p101 = scmp.eq.s32.totalorder %s25, 0
      %p102 = por %p100, %p101
      %p103 = scmp.ne.s32.totalorder %s91, %s92
      %p104 = scmp.eq.s32.totalorder %s26, 1
      %p105 = por %p103, %p104
      %p107 = scmp.ne.s32.totalorder %s92, %s106
      %p108 = scmp.eq.s32.totalorder %s26, 0
      %p109 = por %p107, %p108
      %s111 = sadd.s32 %s110, 1
      %p114 = scmp.eq.s32.totalorder %s20, 1
      %p115 = scmp.ne.s32.totalorder %s110, %s112
      %p116 = scmp.eq.s32.totalorder %s20, 0
      %p117 = por %p115, %p116
      %p118 = scmp.ne.s32.totalorder %s110, %s112
      %p119 = scmp.eq.s32.totalorder %s25, 1
      %p120 = por %p118, %p119
      %p121 = scmp.ne.s32.totalorder %s112, %s113
      %p122 = scmp.eq.s32.totalorder %s25, 0
      %p123 = por %p121, %p122
      %p124 = scmp.ne.s32.totalorder %s112, %s113
      %p125 = scmp.eq.s32.totalorder %s26, 1
      %p126 = por %p124, %p125
      %p128 = scmp.ne.s32.totalorder %s113, %s127
      %p129 = scmp.eq.s32.totalorder %s26, 0
      %p130 = por %p128, %p129
      %s132 = sadd.s32 %s131, 1
      %p135 = scmp.eq.s32.totalorder %s20, 1
      %p136 = scmp.ne.s32.totalorder %s131, %s133
      %p137 = scmp.eq.s32.totalorder %s20, 0
      %p138 = por %p136, %p137
      %p139 = scmp.ne.s32.totalorder %s131, %s133
      %p140 = scmp.eq.s32.totalorder %s25, 1
      %p141 = por %p139, %p140
      %p142 = scmp.ne.s32.totalorder %s133, %s134
      %p143 = scmp.eq.s32.totalorder %s25, 0
      %p144 = por %p142, %p143
      %p145 = scmp.ne.s32.totalorder %s133, %s134
      %p146 = scmp.eq.s32.totalorder %s26, 1
      %p147 = por %p145, %p146
      %p149 = scmp.ne.s32.totalorder %s134, %s148
      %p150 = scmp.eq.s32.totalorder %s26, 0
      %p151 = por %p149, %p150
      %s153 = sadd.s32 %s152, 1
      %p156 = scmp.eq.s32.totalorder %s20, 1
      %p157 = scmp.ne.s32.totalorder %s152, %s154
      %p158 = scmp.eq.s32.totalorder %s20, 0
      %p159 = por %p157, %p158
      %p160 = scmp.ne.s32.totalorder %s152, %s154
      %p161 = scmp.eq.s32.totalorder %s25, 1
      %p162 = por %p160, %p161
      %p163 = scmp.ne.s32.totalorder %s154, %s155
      %p164 = scmp.eq.s32.totalorder %s25, 0
      %p165 = por %p163, %p164
      %p166 = scmp.ne.s32.totalorder %s154, %s155
      %p167 = scmp.eq.s32.totalorder %s26, 1
      %p168 = por %p166, %p167
      %p170 = scmp.ne.s32.totalorder %s155, %s169
      %p171 = scmp.eq.s32.totalorder %s26, 0
      %p172 = por %p170, %p171
      %s173 = ssub.s32 %s27, %s39
      %s174 = ssub.s32 %s28, %s35
      %s175 = sor.u32 %s173, %s174
      %p176 = scmp.eq.s32.totalorder %s175, 0
      %s178 = sadd.s32 %s177, 1
      %s179 = scalar_select %p176, %s177, %s178
      %p182 = pneg %p176
      %p183 = scmp.eq.s32.totalorder %s20, 1
      %p184 = por %p182, %p183
      %p185 = scmp.ne.s32.totalorder %s177, %s180
      %p186 = scmp.eq.s32.totalorder %s20, 0
      %p187 = por %p185, %p186
      %p188 = scmp.ne.s32.totalorder %s177, %s180
      %p189 = scmp.eq.s32.totalorder %s25, 1
      %p190 = por %p188, %p189
      %p191 = scmp.ne.s32.totalorder %s180, %s181
      %p192 = scmp.eq.s32.totalorder %s25, 0
      %p193 = por %p191, %p192
      %p194 = scmp.ne.s32.totalorder %s180, %s181
      %p195 = scmp.eq.s32.totalorder %s26, 1
      %p196 = por %p194, %p195
      %p198 = scmp.ne.s32.totalorder %s181, %s197
      %p199 = scmp.eq.s32.totalorder %s26, 0
      %p200 = por %p198, %p199
      %p201 = scmp.le.s32.totalorder 1, %s20
      %p202 = scmp.lt.s32.totalorder %s20, 3
      %p203 = pnand %p201, %p202
      %p204 = pneg %p203
      // Predicated region
      $region9: #{tpu_custom_call.1} parent=5 // pred_check
        _
      $region10: #{tpu_custom_call.1} parent=5 // pred_check_branch
        %206 = sbr.rel (%p203) target = $region12
      $region11: #{tpu_custom_call.1} parent=5 // pred_region
        %s207 = ssub.s32 %s20, 1
        // Predicated region
        $region13: #{tpu_custom_call.1} parent=11 // pred_check
          %p208 = pneg %p81
        $region14: #{tpu_custom_call.1} parent=11 // pred_check_branch
          %210 = sbr.rel (%p208) target = $region16
        $region15: #{tpu_custom_call.1} parent=11 // pred_region
          %s212 = ssub.s32 6144, 6144
          %213 = vsyncadd [#allocation7], %s212
          %s214 = sshll.u32 [#allocation6], 4
          %s215 = int_to_ptr.vmem [resolvable:$true] %s214
          %220 = dma.hbm_to_vmem [thread:$0]  %s1, 6144, %s215, [#allocation7], 384, 384, 24
        $region16: #{tpu_custom_call.1} parent=11 // pred_fallthru
          _
        // Predicated region
        $region17: #{tpu_custom_call.1} parent=11 // pred_check
          %p221 = pneg %p102
        $region18: #{tpu_custom_call.1} parent=11 // pred_check_branch
          %223 = sbr.rel (%p221) target = $region20
        $region19: #{tpu_custom_call.1} parent=11 // pred_region
          _
        $region20: #{tpu_custom_call.1} parent=11 // pred_fallthru
          _
        // Predicated region
        $region21: #{tpu_custom_call.1} parent=11 // pred_check
          %p224 = pneg %p123
        $region22: #{tpu_custom_call.1} parent=11 // pred_check_branch
          %226 = sbr.rel (%p224) target = $region24
        $region23: #{tpu_custom_call.1} parent=11 // pred_region
          %s228 = ssub.s32 2048, 2048
          %229 = vsyncadd [#allocation7], %s228
          %s230 = sshll.u32 [#allocation8], 4
          %s231 = int_to_ptr.vmem [resolvable:$true] %s230
          %236 = dma.hbm_to_vmem [thread:$0]  %s3, 2048, %s231, [#allocation7], 128, 128, 8
        $region24: #{tpu_custom_call.1} parent=11 // pred_fallthru
          _
        // Predicated region
        $region25: #{tpu_custom_call.1} parent=11 // pred_check
          %p237 = pneg %p144
        $region26: #{tpu_custom_call.1} parent=11 // pred_check_branch
          %239 = sbr.rel (%p237) target = $region28
        $region27: #{tpu_custom_call.1} parent=11 // pred_region
          _
        $region28: #{tpu_custom_call.1} parent=11 // pred_fallthru
          _
        // Predicated region
        $region29: #{tpu_custom_call.1} parent=11 // pred_check
          %p240 = pneg %p165
        $region30: #{tpu_custom_call.1} parent=11 // pred_check_branch
          %242 = sbr.rel (%p240) target = $region32
        $region31: #{tpu_custom_call.1} parent=11 // pred_region
          %s244 = ssub.s32 8192, 8192
          %245 = vsyncadd [#allocation10], %s244
          %s246 = sshll.u32 [#allocation9], 4
          %s247 = int_to_ptr.vmem [resolvable:$true] %s246
          %252 = dma.hbm_to_vmem [thread:$0]  %s5, 8192, %s247, [#allocation10], 256, 256, 16
        $region32: #{tpu_custom_call.1} parent=11 // pred_fallthru
          _
      $region12: #{tpu_custom_call.1} parent=5 // pred_fallthru
        _
      %p253 = scmp.lt.s32.totalorder %s20, 2
      // Predicated region
      $region33: #{tpu_custom_call.1} parent=5 // pred_check
        %p254 = pneg %p253
      $region34: #{tpu_custom_call.1} parent=5 // pred_check_branch
        %256 = sbr.rel (%p254) target = $region36
      $region35: #{tpu_custom_call.1} parent=5 // pred_region
        // Predicated region
        $region37: #{tpu_custom_call.1} parent=35 // pred_check
          %p257 = pneg %p54
        $region38: #{tpu_custom_call.1} parent=35 // pred_check_branch
          %259 = sbr.rel (%p257) target = $region40
        $region39: #{tpu_custom_call.1} parent=35 // pred_region
          %s260 = sand.u32 %s44, 1
          %s261 = scalar_lea.sflag [#allocation4], %s260
          %s262 = sand.u32 %s44, 1
          %s263 = smul.addr %s262, 256
          %s264 = scalar_lea.vmem [#allocation3], %s263
          %s265 = smul.u32 32, %s28
          %s267 = ssub.s32 4096, 4096
          %268 = vsyncadd %s261, %s267
          %s269 = smul.addr %s27, 32
          %s270 = sadd.s32 %s265, %s269
          %s271 = smul.addr %s270, 128
          %s272 = scalar_lea.hbm %s0, %s271
          %s273 = sshll.u32 %s264, 4
          %s274 = int_to_ptr.vmem [resolvable:$true] %s273
          %279 = dma.hbm_to_vmem [thread:$0]  %s272, 4096, %s274, %s261, 128, 128, 8
        $region40: #{tpu_custom_call.1} parent=35 // pred_fallthru
          _
      $region36: #{tpu_custom_call.1} parent=5 // pred_fallthru
        _
      %p280 = scmp.le.s32.totalorder 1, %s20
      %p281 = scmp.lt.s32.totalorder %s20, 3
      %p282 = pnand %p280, %p281
      %p283 = pneg %p282
      // Predicated region
      $region41: #{tpu_custom_call.1} parent=5 // pred_check
        _
      $region42: #{tpu_custom_call.1} parent=5 // pred_check_branch
        %285 = sbr.rel (%p282) target = $region44
      $region43: #{tpu_custom_call.1} parent=5 // pred_region
        %s286 = ssub.s32 %s20, 1
        %s287 = sand.u32 %s47, 1
        %s288 = scalar_lea.sflag [#allocation4], %s287
        %s289 = sand.u32 %s47, 1
        %s290 = smul.addr %s289, 256
        %s291 = scalar_lea.vmem [#allocation3], %s290
        // Predicated region
        $region45: #{tpu_custom_call.1} parent=43 // pred_check
          %p292 = pneg %p60
        $region46: #{tpu_custom_call.1} parent=43 // pred_check_branch
          %294 = sbr.rel (%p292) target = $region48
        $region47: #{tpu_custom_call.1} parent=43 // pred_region
          %295 = dma.done %s288, 4096
        $region48: #{tpu_custom_call.1} parent=43 // pred_fallthru
          _
        // Predicated region
        $region49: #{tpu_custom_call.1} parent=43 // pred_check
          %p296 = pneg %p81
        $region50: #{tpu_custom_call.1} parent=43 // pred_check_branch
          %298 = sbr.rel (%p296) target = $region52
        $region51: #{tpu_custom_call.1} parent=43 // pred_region
          %299 = dma.done [#allocation7], 6144
        $region52: #{tpu_custom_call.1} parent=43 // pred_fallthru
          _
        // Predicated region
        $region53: #{tpu_custom_call.1} parent=43 // pred_check
          %p300 = pneg %p123
        $region54: #{tpu_custom_call.1} parent=43 // pred_check_branch
          %302 = sbr.rel (%p300) target = $region56
        $region55: #{tpu_custom_call.1} parent=43 // pred_region
          %303 = dma.done [#allocation7], 2048
        $region56: #{tpu_custom_call.1} parent=43 // pred_fallthru
          _
        // Predicated region
        $region57: #{tpu_custom_call.1} parent=43 // pred_check
          %p304 = pneg %p165
        $region58: #{tpu_custom_call.1} parent=43 // pred_check_branch
          %306 = sbr.rel (%p304) target = $region60
        $region59: #{tpu_custom_call.1} parent=43 // pred_region
          %307 = dma.done [#allocation10], 8192
        $region60: #{tpu_custom_call.1} parent=43 // pred_fallthru
          _
        %s308 = sand.u32 %s47, 1
        %s309 = scalar_lea.sflag [#allocation4], %s308
        %s310 = sand.u32 %s47, 1
        %s311 = smul.addr %s310, 256
        %s312 = scalar_lea.vmem [#allocation3], %s311
        %p313 = pneg %p60
        %p314 = pneg %p57
        %p315 = pneg %p81
        %p316 = pneg %p78
        %p317 = pneg %p102
        %p318 = pneg %p99
        %p319 = pneg %p123
        %p320 = pneg %p120
        %p321 = pneg %p144
        %p322 = pneg %p141
        %p323 = pneg %p165
        %p324 = pneg %p162
        %p325 = pneg %p193
        %p326 = pneg %p190
        %s327 = sand.u32 %s180, 1
        %s328 = scalar_lea.sflag [#allocation5], %s327
        %s329 = sand.u32 %s180, 1
        %s330 = smul.addr %s329, 256
        %s331 = scalar_lea.vmem [#allocation11], %s330
        %s332 = smul.u32 32, %s30
        %s333 = smul.u32 32, %s30
        %p334 = scmp.eq.s32.totalorder %s30, 0
        // Predicated region
        $region61: #{tpu_custom_call.1} parent=43 // pred_check
          %p335 = pneg %p334
        $region62: #{tpu_custom_call.1} parent=43 // pred_check_branch
          %337 = sbr.rel (%p335) target = $region64
        $region63: #{tpu_custom_call.1} parent=43 // pred_region
          %338 = vst [vmem:[#allocation2] sm:$0x1] 0.0
        $region64: #{tpu_custom_call.1} parent=43 // pred_fallthru
          _
        %v339 = vld [vmem:[%s291] sm:$0xff]
        %v340 = vld [vmem:[%s291 + $0x8] sm:$0xff]
        %v341 = vld [vmem:[%s291 + $0x10] sm:$0xff]
        %v342 = vld [vmem:[%s291 + $0x18] sm:$0xff]
        %v343 = vld [vmem:[%s291 + $0x20] sm:$0xff]
        %v344 = vld [vmem:[%s291 + $0x28] sm:$0xff]
        %v345 = vld [vmem:[%s291 + $0x30] sm:$0xff]
        %v346 = vld [vmem:[%s291 + $0x38] sm:$0xff]
        %v347 = vld [vmem:[%s291 + $0x40] sm:$0xff]
        %v348 = vld [vmem:[%s291 + $0x48] sm:$0xff]
        %v349 = vld [vmem:[%s291 + $0x50] sm:$0xff]
        %v350 = vld [vmem:[%s291 + $0x58] sm:$0xff]
        %v351 = vld [vmem:[%s291 + $0x60] sm:$0xff]
        %v352 = vld [vmem:[%s291 + $0x68] sm:$0xff]
        %v353 = vld [vmem:[%s291 + $0x70] sm:$0xff]
        %v354 = vld [vmem:[%s291 + $0x78] sm:$0xff]
        %v355 = vld [vmem:[%s291 + $0x80] sm:$0xff]
        %v356 = vld [vmem:[%s291 + $0x88] sm:$0xff]
        %v357 = vld [vmem:[%s291 + $0x90] sm:$0xff]
        %v358 = vld [vmem:[%s291 + $0x98] sm:$0xff]
        %v359 = vld [vmem:[%s291 + $0xa0] sm:$0xff]
        %v360 = vld [vmem:[%s291 + $0xa8] sm:$0xff]
        %v361 = vld [vmem:[%s291 + $0xb0] sm:$0xff]
        %v362 = vld [vmem:[%s291 + $0xb8] sm:$0xff]
        %v363 = vld [vmem:[%s291 + $0xc0] sm:$0xff]
        %v364 = vld [vmem:[%s291 + $0xc8] sm:$0xff]
        %v365 = vld [vmem:[%s291 + $0xd0] sm:$0xff]
        %v366 = vld [vmem:[%s291 + $0xd8] sm:$0xff]
        %v367 = vld [vmem:[%s291 + $0xe0] sm:$0xff]
        %v368 = vld [vmem:[%s291 + $0xe8] sm:$0xff]
        %v369 = vld [vmem:[%s291 + $0xf0] sm:$0xff]
        %v370 = vld [vmem:[%s291 + $0xf8] sm:$0xff]
        %v371 = vld [vmem:[#allocation6] sm:$0xff]
        %v372 = vld [vmem:[#allocation6 + $0x8] sm:$0xff]
        %v373 = vld [vmem:[#allocation6 + $0x10] sm:$0xff]
        %v374 = vld [vmem:[#allocation6 + $0x18] sm:$0xff]
        %v375 = vld [vmem:[#allocation6 + $0x20] sm:$0xff]
        %v376 = vld [vmem:[#allocation6 + $0x28] sm:$0xff]
        %v377 = vld [vmem:[#allocation6 + $0x30] sm:$0xff]
        %v378 = vld [vmem:[#allocation6 + $0x38] sm:$0xff]
        %v379 = vld [vmem:[#allocation6 + $0x40] sm:$0xff]
        %v380 = vld [vmem:[#allocation6 + $0x48] sm:$0xff]
        %v381 = vld [vmem:[#allocation6 + $0x50] sm:$0xff]
        %v382 = vld [vmem:[#allocation6 + $0x58] sm:$0xff]
        %v383 = vld [vmem:[#allocation6 + $0x60] sm:$0xff]
        %v384 = vld [vmem:[#allocation6 + $0x68] sm:$0xff]
        %v385 = vld [vmem:[#allocation6 + $0x70] sm:$0xff]
        %v386 = vld [vmem:[#allocation6 + $0x78] sm:$0xff]
        %v387 = vld [vmem:[#allocation6 + $0x80] sm:$0xff]
        %v388 = vld [vmem:[#allocation6 + $0x88] sm:$0xff]
        %v389 = vld [vmem:[#allocation6 + $0x90] sm:$0xff]
        %v390 = vld [vmem:[#allocation6 + $0x98] sm:$0xff]
        %v391 = vld [vmem:[#allocation6 + $0xa0] sm:$0xff]
        %v392 = vld [vmem:[#allocation6 + $0xa8] sm:$0xff]
        %v393 = vld [vmem:[#allocation6 + $0xb0] sm:$0xff]
        %v394 = vld [vmem:[#allocation6 + $0xb8] sm:$0xff]
        %v395 = vld [vmem:[#allocation6 + $0xc0] sm:$0xff]
        %v396 = vld [vmem:[#allocation6 + $0xc8] sm:$0xff]
        %v397 = vld [vmem:[#allocation6 + $0xd0] sm:$0xff]
        %v398 = vld [vmem:[#allocation6 + $0xd8] sm:$0xff]
        %v399 = vld [vmem:[#allocation6 + $0xe0] sm:$0xff]
        %v400 = vld [vmem:[#allocation6 + $0xe8] sm:$0xff]
        %v401 = vld [vmem:[#allocation6 + $0xf0] sm:$0xff]
        %v402 = vld [vmem:[#allocation6 + $0xf8] sm:$0xff]
        %v403 = vld [vmem:[#allocation6 + $0x100] sm:$0xff]
        %v404 = vld [vmem:[#allocation6 + $0x108] sm:$0xff]
        %v405 = vld [vmem:[#allocation6 + $0x110] sm:$0xff]
        %v406 = vld [vmem:[#allocation6 + $0x118] sm:$0xff]
        %v407 = vld [vmem:[#allocation6 + $0x120] sm:$0xff]
        %v408 = vld [vmem:[#allocation6 + $0x128] sm:$0xff]
        %v409 = vld [vmem:[#allocation6 + $0x130] sm:$0xff]
        %v410 = vld [vmem:[#allocation6 + $0x138] sm:$0xff]
        %v411 = vld [vmem:[#allocation6 + $0x140] sm:$0xff]
        %v412 = vld [vmem:[#allocation6 + $0x148] sm:$0xff]
        %v413 = vld [vmem:[#allocation6 + $0x150] sm:$0xff]
        %v414 = vld [vmem:[#allocation6 + $0x158] sm:$0xff]
        %v415 = vld [vmem:[#allocation6 + $0x160] sm:$0xff]
        %v416 = vld [vmem:[#allocation6 + $0x168] sm:$0xff]
        %v417 = vld [vmem:[#allocation6 + $0x170] sm:$0xff]
        %v418 = vld [vmem:[#allocation6 + $0x178] sm:$0xff]
        %v419 = vld [vmem:[%s2] sm:$0x7]
        %v421 = vlaneseq
        %v422 = vshrl.u32 %v421, 7
        %v423 = vsub.s32 0, %v422
        %v424 = vrot.slane %v419, %v423
        %v425 = vlaneseq
        %v426 = vshrl.u32 %v425, 7
        %v427 = vsub.s32 1, %v426
        %v428 = vrot.slane %v419, %v427
        %v429 = vlaneseq
        %v430 = vshrl.u32 %v429, 7
        %v431 = vsub.s32 2, %v430
        %v432 = vrot.slane %v419, %v431
        %436 = vmatprep.subr.mxu0 %v417
        %437 = vmatpush1.msra.mxu0 %v416
        %438 = vmatprep.subr.mxu0 %v414
        %439 = vmatpush1.msra.mxu0 %v413
        %440 = vmatprep.subr.mxu0 %v411
        %441 = vmatpush1.msra.mxu0 %v410
        %442 = vmatprep.subr.mxu0 %v408
        %443 = vmatpush1.msra.mxu0 %v407
        %444 = vmatprep.subr.mxu0 %v405
        %445 = vmatpush1.msra.mxu0 %v404
        %446 = vmatprep.subr.mxu0 %v402
        %447 = vmatpush1.msra.mxu0 %v401
        %448 = vmatprep.subr.mxu0 %v399
        %449 = vmatpush1.msra.mxu0 %v398
        %450 = vmatprep.subr.mxu0 %v396
        %451 = vmatpush1.msra.mxu0 %v395
        %452 = vmatprep.subr.mxu0 %v393
        %453 = vmatpush1.msra.mxu0 %v392
        %454 = vmatprep.subr.mxu0 %v390
        %455 = vmatpush1.msra.mxu0 %v389
        %456 = vmatprep.subr.mxu0 %v387
        %457 = vmatpush1.msra.mxu0 %v386
        %458 = vmatprep.subr.mxu0 %v384
        %459 = vmatpush1.msra.mxu0 %v383
        %460 = vmatprep.subr.mxu0 %v381
        %461 = vmatpush1.msra.mxu0 %v380
        %462 = vmatprep.subr.mxu0 %v378
        %463 = vmatpush1.msra.mxu0 %v377
        %464 = vmatprep.subr.mxu0 %v375
        %465 = vmatpush1.msra.mxu0 %v374
        %466 = vmatprep.subr.mxu0 %v372
        %467 = vmatpush1.msra.mxu0 %v371
        %468 = vmatprep.subr.mxu0 0.0
        %469 = vmatpush2.msra.mxu0 0.0
        %470 = vmatprep.subr.mxu0 0.0
        %471 = vmatpush2.msra.mxu0 0.0
        %472 = vmatprep.subr.mxu0 0.0
        %473 = vmatpush2.msra.mxu0 0.0
        %474 = vmatprep.subr.mxu0 0.0
        %475 = vmatpush2.msra.mxu0 0.0
        %476 = vmatprep.subr.mxu0 0.0
        %477 = vmatpush2.msra.mxu0 0.0
        %478 = vmatprep.subr.mxu0 0.0
        %479 = vmatpush2.msra.mxu0 0.0
        %480 = vmatprep.subr.mxu0 0.0
        %481 = vmatpush2.msra.mxu0 0.0
        %482 = vmatprep.subr.mxu0 0.0
        %483 = vmatpush2.msra.mxu0 0.0
        %484 = vmatprep.subr.mxu0 0.0
        %485 = vmatpush2.msra.mxu0 0.0
        %486 = vmatprep.subr.mxu0 0.0
        %487 = vmatpush2.msra.mxu0 0.0
        %488 = vmatprep.subr.mxu0 0.0
        %489 = vmatpush2.msra.mxu0 0.0
        %490 = vmatprep.subr.mxu0 0.0
        %491 = vmatpush2.msra.mxu0 0.0
        %492 = vmatprep.subr.mxu0 0.0
        %493 = vmatpush2.msra.mxu0 0.0
        %494 = vmatprep.subr.mxu0 0.0
        %495 = vmatpush2.msra.mxu0 0.0
        %496 = vmatprep.subr.mxu0 0.0
        %497 = vmatpush2.msra.mxu0 0.0
        %498 = vmatprep.subr.mxu0 0.0
        %499 = vmatpush2.msra.mxu0 0.0
        %500 = vmatprep.mubr.f32.mxu0 0.0
        %501 = vmatmul.mubr.f32.gmra.mxu0 %v339
        %v502 = vpop.f32.mrf.mxu0
        %v503 = vadd.f32 %v424, %v502
        %v504 = vpop.f32.mrf.mxu0
        %v505 = vadd.f32 %v428, %v504
        %506 = vmatprep.mubr.f32.mxu0 0.0
        %507 = vmatmul.mubr.f32.gmra.mxu0 %v340
        %v508 = vpop.f32.mrf.mxu0
        %v509 = vadd.f32 %v424, %v508
        %v510 = vpop.f32.mrf.mxu0
        %v511 = vadd.f32 %v428, %v510
        %512 = vmatprep.mubr.f32.mxu0 0.0
        %513 = vmatmul.mubr.f32.gmra.mxu0 %v341
        %v514 = vpop.f32.mrf.mxu0
        %v515 = vadd.f32 %v424, %v514
        %v516 = vpop.f32.mrf.mxu0
        %v517 = vadd.f32 %v428, %v516
        %518 = vmatprep.mubr.f32.mxu0 0.0
        %519 = vmatmul.mubr.f32.gmra.mxu0 %v342
        %v520 = vpop.f32.mrf.mxu0
        %v521 = vadd.f32 %v424, %v520
        %v522 = vpop.f32.mrf.mxu0
        %v523 = vadd.f32 %v428, %v522
        %524 = vmatprep.mubr.f32.mxu0 0.0
        %525 = vmatmul.mubr.f32.gmra.mxu0 %v343
        %v526 = vpop.f32.mrf.mxu0
        %v527 = vadd.f32 %v424, %v526
        %v528 = vpop.f32.mrf.mxu0
        %v529 = vadd.f32 %v428, %v528
        %530 = vmatprep.mubr.f32.mxu0 0.0
        %531 = vmatmul.mubr.f32.gmra.mxu0 %v344
        %v532 = vpop.f32.mrf.mxu0
        %v533 = vadd.f32 %v424, %v532
        %v534 = vpop.f32.mrf.mxu0
        %v535 = vadd.f32 %v428, %v534
        %536 = vmatprep.mubr.f32.mxu0 0.0
        %537 = vmatmul.mubr.f32.gmra.mxu0 %v345
        %v538 = vpop.f32.mrf.mxu0
        %v539 = vadd.f32 %v424, %v538
        %v540 = vpop.f32.mrf.mxu0
        %v541 = vadd.f32 %v428, %v540
        %542 = vmatprep.mubr.f32.mxu0 0.0
        %543 = vmatmul.mubr.f32.gmra.mxu0 %v346
        %v544 = vpop.f32.mrf.mxu0
        %v545 = vadd.f32 %v424, %v544
        %v546 = vpop.f32.mrf.mxu0
        %v547 = vadd.f32 %v428, %v546
        %548 = vmatprep.mubr.f32.mxu0 0.0
        %549 = vmatmul.mubr.f32.gmra.mxu0 %v347
        %v550 = vpop.f32.mrf.mxu0
        %v551 = vadd.f32 %v424, %v550
        %v552 = vpop.f32.mrf.mxu0
        %v553 = vadd.f32 %v428, %v552
        %554 = vmatprep.mubr.f32.mxu0 0.0
        %555 = vmatmul.mubr.f32.gmra.mxu0 %v348
        %v556 = vpop.f32.mrf.mxu0
        %v557 = vadd.f32 %v424, %v556
        %v558 = vpop.f32.mrf.mxu0
        %v559 = vadd.f32 %v428, %v558
        %560 = vmatprep.mubr.f32.mxu0 0.0
        %561 = vmatmul.mubr.f32.gmra.mxu0 %v349
        %v562 = vpop.f32.mrf.mxu0
        %v563 = vadd.f32 %v424, %v562
        %v564 = vpop.f32.mrf.mxu0
        %v565 = vadd.f32 %v428, %v564
        %566 = vmatprep.mubr.f32.mxu0 0.0
        %567 = vmatmul.mubr.f32.gmra.mxu0 %v350
        %v568 = vpop.f32.mrf.mxu0
        %v569 = vadd.f32 %v424, %v568
        %v570 = vpop.f32.mrf.mxu0
        %v571 = vadd.f32 %v428, %v570
        %572 = vmatprep.mubr.f32.mxu0 0.0
        %573 = vmatmul.mubr.f32.gmra.mxu0 %v351
        %v574 = vpop.f32.mrf.mxu0
        %v575 = vadd.f32 %v424, %v574
        %v576 = vpop.f32.mrf.mxu0
        %v577 = vadd.f32 %v428, %v576
        %578 = vmatprep.mubr.f32.mxu0 0.0
        %579 = vmatmul.mubr.f32.gmra.mxu0 %v352
        %v580 = vpop.f32.mrf.mxu0
        %v581 = vadd.f32 %v424, %v580
        %v582 = vpop.f32.mrf.mxu0
        %v583 = vadd.f32 %v428, %v582
        %584 = vmatprep.mubr.f32.mxu0 0.0
        %585 = vmatmul.mubr.f32.gmra.mxu0 %v353
        %v586 = vpop.f32.mrf.mxu0
        %v587 = vadd.f32 %v424, %v586
        %v588 = vpop.f32.mrf.mxu0
        %v589 = vadd.f32 %v428, %v588
        %590 = vmatprep.mubr.f32.mxu0 0.0
        %591 = vmatmul.mubr.f32.gmra.mxu0 %v354
        %v592 = vpop.f32.mrf.mxu0
        %v593 = vadd.f32 %v424, %v592
        %v594 = vpop.f32.mrf.mxu0
        %v595 = vadd.f32 %v428, %v594
        %596 = vmatprep.mubr.f32.mxu0 0.0
        %597 = vmatmul.mubr.f32.gmra.mxu0 %v355
        %v598 = vpop.f32.mrf.mxu0
        %v599 = vadd.f32 %v424, %v598
        %v600 = vpop.f32.mrf.mxu0
        %v601 = vadd.f32 %v428, %v600
        %602 = vmatprep.mubr.f32.mxu0 0.0
        %603 = vmatmul.mubr.f32.gmra.mxu0 %v356
        %v604 = vpop.f32.mrf.mxu0
        %v605 = vadd.f32 %v424, %v604
        %v606 = vpop.f32.mrf.mxu0
        %v607 = vadd.f32 %v428, %v606
        %608 = vmatprep.mubr.f32.mxu0 0.0
        %609 = vmatmul.mubr.f32.gmra.mxu0 %v357
        %v610 = vpop.f32.mrf.mxu0
        %v611 = vadd.f32 %v424, %v610
        %v612 = vpop.f32.mrf.mxu0
        %v613 = vadd.f32 %v428, %v612
        %614 = vmatprep.mubr.f32.mxu0 0.0
        %615 = vmatmul.mubr.f32.gmra.mxu0 %v358
        %v616 = vpop.f32.mrf.mxu0
        %v617 = vadd.f32 %v424, %v616
        %v618 = vpop.f32.mrf.mxu0
        %v619 = vadd.f32 %v428, %v618
        %620 = vmatprep.mubr.f32.mxu0 0.0
        %621 = vmatmul.mubr.f32.gmra.mxu0 %v359
        %v622 = vpop.f32.mrf.mxu0
        %v623 = vadd.f32 %v424, %v622
        %v624 = vpop.f32.mrf.mxu0
        %v625 = vadd.f32 %v428, %v624
        %626 = vmatprep.mubr.f32.mxu0 0.0
        %627 = vmatmul.mubr.f32.gmra.mxu0 %v360
        %v628 = vpop.f32.mrf.mxu0
        %v629 = vadd.f32 %v424, %v628
        %v630 = vpop.f32.mrf.mxu0
        %v631 = vadd.f32 %v428, %v630
        %632 = vmatprep.mubr.f32.mxu0 0.0
        %633 = vmatmul.mubr.f32.gmra.mxu0 %v361
        %v634 = vpop.f32.mrf.mxu0
        %v635 = vadd.f32 %v424, %v634
        %v636 = vpop.f32.mrf.mxu0
        %v637 = vadd.f32 %v428, %v636
        %638 = vmatprep.mubr.f32.mxu0 0.0
        %639 = vmatmul.mubr.f32.gmra.mxu0 %v362
        %v640 = vpop.f32.mrf.mxu0
        %v641 = vadd.f32 %v424, %v640
        %v642 = vpop.f32.mrf.mxu0
        %v643 = vadd.f32 %v428, %v642
        %644 = vmatprep.mubr.f32.mxu0 0.0
        %645 = vmatmul.mubr.f32.gmra.mxu0 %v363
        %v646 = vpop.f32.mrf.mxu0
        %v647 = vadd.f32 %v424, %v646
        %v648 = vpop.f32.mrf.mxu0
        %v649 = vadd.f32 %v428, %v648
        %650 = vmatprep.mubr.f32.mxu0 0.0
        %651 = vmatmul.mubr.f32.gmra.mxu0 %v364
        %v652 = vpop.f32.mrf.mxu0
        %v653 = vadd.f32 %v424, %v652
        %v654 = vpop.f32.mrf.mxu0
        %v655 = vadd.f32 %v428, %v654
        %656 = vmatprep.mubr.f32.mxu0 0.0
        %657 = vmatmul.mubr.f32.gmra.mxu0 %v365
        %v658 = vpop.f32.mrf.mxu0
        %v659 = vadd.f32 %v424, %v658
        %v660 = vpop.f32.mrf.mxu0
        %v661 = vadd.f32 %v428, %v660
        %662 = vmatprep.mubr.f32.mxu0 0.0
        %663 = vmatmul.mubr.f32.gmra.mxu0 %v366
        %v664 = vpop.f32.mrf.mxu0
        %v665 = vadd.f32 %v424, %v664
        %v666 = vpop.f32.mrf.mxu0
        %v667 = vadd.f32 %v428, %v666
        %668 = vmatprep.mubr.f32.mxu0 0.0
        %669 = vmatmul.mubr.f32.gmra.mxu0 %v367
        %v670 = vpop.f32.mrf.mxu0
        %v671 = vadd.f32 %v424, %v670
        %v672 = vpop.f32.mrf.mxu0
        %v673 = vadd.f32 %v428, %v672
        %674 = vmatprep.mubr.f32.mxu0 0.0
        %675 = vmatmul.mubr.f32.gmra.mxu0 %v368
        %v676 = vpop.f32.mrf.mxu0
        %v677 = vadd.f32 %v424, %v676
        %v678 = vpop.f32.mrf.mxu0
        %v679 = vadd.f32 %v428, %v678
        %680 = vmatprep.mubr.f32.mxu0 0.0
        %681 = vmatmul.mubr.f32.gmra.mxu0 %v369
        %v682 = vpop.f32.mrf.mxu0
        %v683 = vadd.f32 %v424, %v682
        %v684 = vpop.f32.mrf.mxu0
        %v685 = vadd.f32 %v428, %v684
        %686 = vmatprep.mubr.f32.mxu0 0.0
        %687 = vmatmul.mubr.f32.gmra.mxu0 %v370
        %v688 = vpop.f32.mrf.mxu0
        %v689 = vadd.f32 %v424, %v688
        %v690 = vpop.f32.mrf.mxu0
        %v691 = vadd.f32 %v428, %v690
        %692 = vdwg.mxu0
        %693 = vmatprep.subr.mxu0 0.0
        %694 = vmatpush1.msra.mxu0 %v418
        %695 = vmatprep.subr.mxu0 0.0
        %696 = vmatpush1.msra.mxu0 %v415
        %697 = vmatprep.subr.mxu0 0.0
        %698 = vmatpush1.msra.mxu0 %v412
        %699 = vmatprep.subr.mxu0 0.0
        %700 = vmatpush1.msra.mxu0 %v409
        %701 = vmatprep.subr.mxu0 0.0
        %702 = vmatpush1.msra.mxu0 %v406
        %703 = vmatprep.subr.mxu0 0.0
        %704 = vmatpush1.msra.mxu0 %v403
        %705 = vmatprep.subr.mxu0 0.0
        %706 = vmatpush1.msra.mxu0 %v400
        %707 = vmatprep.subr.mxu0 0.0
        %708 = vmatpush1.msra.mxu0 %v397
        %709 = vmatprep.subr.mxu0 0.0
        %710 = vmatpush1.msra.mxu0 %v394
        %711 = vmatprep.subr.mxu0 0.0
        %712 = vmatpush1.msra.mxu0 %v391
        %713 = vmatprep.subr.mxu0 0.0
        %714 = vmatpush1.msra.mxu0 %v388
        %715 = vmatprep.subr.mxu0 0.0
        %716 = vmatpush1.msra.mxu0 %v385
        %717 = vmatprep.subr.mxu0 0.0
        %718 = vmatpush1.msra.mxu0 %v382
        %719 = vmatprep.subr.mxu0 0.0
        %720 = vmatpush1.msra.mxu0 %v379
        %721 = vmatprep.subr.mxu0 0.0
        %722 = vmatpush1.msra.mxu0 %v376
        %723 = vmatprep.subr.mxu0 0.0
        %724 = vmatpush1.msra.mxu0 %v373
        %725 = vmatprep.subr.mxu0 0.0
        %726 = vmatpush2.msra.mxu0 0.0
        %727 = vmatprep.subr.mxu0 0.0
        %728 = vmatpush2.msra.mxu0 0.0
        %729 = vmatprep.subr.mxu0 0.0
        %730 = vmatpush2.msra.mxu0 0.0
        %731 = vmatprep.subr.mxu0 0.0
        %732 = vmatpush2.msra.mxu0 0.0
        %733 = vmatprep.subr.mxu0 0.0
        %734 = vmatpush2.msra.mxu0 0.0
        %735 = vmatprep.subr.mxu0 0.0
        %736 = vmatpush2.msra.mxu0 0.0
        %737 = vmatprep.subr.mxu0 0.0
        %738 = vmatpush2.msra.mxu0 0.0
        %739 = vmatprep.subr.mxu0 0.0
        %740 = vmatpush2.msra.mxu0 0.0
        %741 = vmatprep.subr.mxu0 0.0
        %742 = vmatpush2.msra.mxu0 0.0
        %743 = vmatprep.subr.mxu0 0.0
        %744 = vmatpush2.msra.mxu0 0.0
        %745 = vmatprep.subr.mxu0 0.0
        %746 = vmatpush2.msra.mxu0 0.0
        %747 = vmatprep.subr.mxu0 0.0
        %748 = vmatpush2.msra.mxu0 0.0
        %749 = vmatprep.subr.mxu0 0.0
        %750 = vmatpush2.msra.mxu0 0.0
        %751 = vmatprep.subr.mxu0 0.0
        %752 = vmatpush2.msra.mxu0 0.0
        %753 = vmatprep.subr.mxu0 0.0
        %754 = vmatpush2.msra.mxu0 0.0
        %755 = vmatprep.subr.mxu0 0.0
        %756 = vmatpush2.msra.mxu0 0.0
        %757 = vmatprep.mubr.f32.mxu0 0.0
        %758 = vmatmul.mubr.f32.gmra.mxu0 %v339
        %v759 = vpop.f32.mrf.mxu0
        %v760 = vadd.f32 %v432, %v759
        %v761 = vpop.f32.mrf.mxu0
        %762 = vmatprep.mubr.f32.mxu0 0.0
        %763 = vmatmul.mubr.f32.gmra.mxu0 %v340
        %v764 = vpop.f32.mrf.mxu0
        %v765 = vadd.f32 %v432, %v764
        %v766 = vpop.f32.mrf.mxu0
        %767 = vmatprep.mubr.f32.mxu0 0.0
        %768 = vmatmul.mubr.f32.gmra.mxu0 %v341
        %v769 = vpop.f32.mrf.mxu0
        %v770 = vadd.f32 %v432, %v769
        %v771 = vpop.f32.mrf.mxu0
        %772 = vmatprep.mubr.f32.mxu0 0.0
        %773 = vmatmul.mubr.f32.gmra.mxu0 %v342
        %v774 = vpop.f32.mrf.mxu0
        %v775 = vadd.f32 %v432, %v774
        %v776 = vpop.f32.mrf.mxu0
        %777 = vmatprep.mubr.f32.mxu0 0.0
        %778 = vmatmul.mubr.f32.gmra.mxu0 %v343
        %v779 = vpop.f32.mrf.mxu0
        %v780 = vadd.f32 %v432, %v779
        %v781 = vpop.f32.mrf.mxu0
        %782 = vmatprep.mubr.f32.mxu0 0.0
        %783 = vmatmul.mubr.f32.gmra.mxu0 %v344
        %v784 = vpop.f32.mrf.mxu0
        %v785 = vadd.f32 %v432, %v784
        %v786 = vpop.f32.mrf.mxu0
        %787 = vmatprep.mubr.f32.mxu0 0.0
        %788 = vmatmul.mubr.f32.gmra.mxu0 %v345
        %v789 = vpop.f32.mrf.mxu0
        %v790 = vadd.f32 %v432, %v789
        %v791 = vpop.f32.mrf.mxu0
        %792 = vmatprep.mubr.f32.mxu0 0.0
        %793 = vmatmul.mubr.f32.gmra.mxu0 %v346
        %v794 = vpop.f32.mrf.mxu0
        %v795 = vadd.f32 %v432, %v794
        %v796 = vpop.f32.mrf.mxu0
        %797 = vmatprep.mubr.f32.mxu0 0.0
        %798 = vmatmul.mubr.f32.gmra.mxu0 %v347
        %v799 = vpop.f32.mrf.mxu0
        %v800 = vadd.f32 %v432, %v799
        %v801 = vpop.f32.mrf.mxu0
        %802 = vmatprep.mubr.f32.mxu0 0.0
        %803 = vmatmul.mubr.f32.gmra.mxu0 %v348
        %v804 = vpop.f32.mrf.mxu0
        %v805 = vadd.f32 %v432, %v804
        %v806 = vpop.f32.mrf.mxu0
        %807 = vmatprep.mubr.f32.mxu0 0.0
        %808 = vmatmul.mubr.f32.gmra.mxu0 %v349
        %v809 = vpop.f32.mrf.mxu0
        %v810 = vadd.f32 %v432, %v809
        %v811 = vpop.f32.mrf.mxu0
        %812 = vmatprep.mubr.f32.mxu0 0.0
        %813 = vmatmul.mubr.f32.gmra.mxu0 %v350
        %v814 = vpop.f32.mrf.mxu0
        %v815 = vadd.f32 %v432, %v814
        %v816 = vpop.f32.mrf.mxu0
        %817 = vmatprep.mubr.f32.mxu0 0.0
        %818 = vmatmul.mubr.f32.gmra.mxu0 %v351
        %v819 = vpop.f32.mrf.mxu0
        %v820 = vadd.f32 %v432, %v819
        %v821 = vpop.f32.mrf.mxu0
        %822 = vmatprep.mubr.f32.mxu0 0.0
        %823 = vmatmul.mubr.f32.gmra.mxu0 %v352
        %v824 = vpop.f32.mrf.mxu0
        %v825 = vadd.f32 %v432, %v824
        %v826 = vpop.f32.mrf.mxu0
        %827 = vmatprep.mubr.f32.mxu0 0.0
        %828 = vmatmul.mubr.f32.gmra.mxu0 %v353
        %v829 = vpop.f32.mrf.mxu0
        %v830 = vadd.f32 %v432, %v829
        %v831 = vpop.f32.mrf.mxu0
        %832 = vmatprep.mubr.f32.mxu0 0.0
        %833 = vmatmul.mubr.f32.gmra.mxu0 %v354
        %v834 = vpop.f32.mrf.mxu0
        %v835 = vadd.f32 %v432, %v834
        %v836 = vpop.f32.mrf.mxu0
        %837 = vmatprep.mubr.f32.mxu0 0.0
        %838 = vmatmul.mubr.f32.gmra.mxu0 %v355
        %v839 = vpop.f32.mrf.mxu0
        %v840 = vadd.f32 %v432, %v839
        %v841 = vpop.f32.mrf.mxu0
        %842 = vmatprep.mubr.f32.mxu0 0.0
        %843 = vmatmul.mubr.f32.gmra.mxu0 %v356
        %v844 = vpop.f32.mrf.mxu0
        %v845 = vadd.f32 %v432, %v844
        %v846 = vpop.f32.mrf.mxu0
        %847 = vmatprep.mubr.f32.mxu0 0.0
        %848 = vmatmul.mubr.f32.gmra.mxu0 %v357
        %v849 = vpop.f32.mrf.mxu0
        %v850 = vadd.f32 %v432, %v849
        %v851 = vpop.f32.mrf.mxu0
        %852 = vmatprep.mubr.f32.mxu0 0.0
        %853 = vmatmul.mubr.f32.gmra.mxu0 %v358
        %v854 = vpop.f32.mrf.mxu0
        %v855 = vadd.f32 %v432, %v854
        %v856 = vpop.f32.mrf.mxu0
        %857 = vmatprep.mubr.f32.mxu0 0.0
        %858 = vmatmul.mubr.f32.gmra.mxu0 %v359
        %v859 = vpop.f32.mrf.mxu0
        %v860 = vadd.f32 %v432, %v859
        %v861 = vpop.f32.mrf.mxu0
        %862 = vmatprep.mubr.f32.mxu0 0.0
        %863 = vmatmul.mubr.f32.gmra.mxu0 %v360
        %v864 = vpop.f32.mrf.mxu0
        %v865 = vadd.f32 %v432, %v864
        %v866 = vpop.f32.mrf.mxu0
        %867 = vmatprep.mubr.f32.mxu0 0.0
        %868 = vmatmul.mubr.f32.gmra.mxu0 %v361
        %v869 = vpop.f32.mrf.mxu0
        %v870 = vadd.f32 %v432, %v869
        %v871 = vpop.f32.mrf.mxu0
        %872 = vmatprep.mubr.f32.mxu0 0.0
        %873 = vmatmul.mubr.f32.gmra.mxu0 %v362
        %v874 = vpop.f32.mrf.mxu0
        %v875 = vadd.f32 %v432, %v874
        %v876 = vpop.f32.mrf.mxu0
        %877 = vmatprep.mubr.f32.mxu0 0.0
        %878 = vmatmul.mubr.f32.gmra.mxu0 %v363
        %v879 = vpop.f32.mrf.mxu0
        %v880 = vadd.f32 %v432, %v879
        %v881 = vpop.f32.mrf.mxu0
        %882 = vmatprep.mubr.f32.mxu0 0.0
        %883 = vmatmul.mubr.f32.gmra.mxu0 %v364
        %v884 = vpop.f32.mrf.mxu0
        %v885 = vadd.f32 %v432, %v884
        %v886 = vpop.f32.mrf.mxu0
        %887 = vmatprep.mubr.f32.mxu0 0.0
        %888 = vmatmul.mubr.f32.gmra.mxu0 %v365
        %v889 = vpop.f32.mrf.mxu0
        %v890 = vadd.f32 %v432, %v889
        %v891 = vpop.f32.mrf.mxu0
        %892 = vmatprep.mubr.f32.mxu0 0.0
        %893 = vmatmul.mubr.f32.gmra.mxu0 %v366
        %v894 = vpop.f32.mrf.mxu0
        %v895 = vadd.f32 %v432, %v894
        %v896 = vpop.f32.mrf.mxu0
        %897 = vmatprep.mubr.f32.mxu0 0.0
        %898 = vmatmul.mubr.f32.gmra.mxu0 %v367
        %v899 = vpop.f32.mrf.mxu0
        %v900 = vadd.f32 %v432, %v899
        %v901 = vpop.f32.mrf.mxu0
        %902 = vmatprep.mubr.f32.mxu0 0.0
        %903 = vmatmul.mubr.f32.gmra.mxu0 %v368
        %v904 = vpop.f32.mrf.mxu0
        %v905 = vadd.f32 %v432, %v904
        %v906 = vpop.f32.mrf.mxu0
        %907 = vmatprep.mubr.f32.mxu0 0.0
        %908 = vmatmul.mubr.f32.gmra.mxu0 %v369
        %v909 = vpop.f32.mrf.mxu0
        %v910 = vadd.f32 %v432, %v909
        %v911 = vpop.f32.mrf.mxu0
        %912 = vmatprep.mubr.f32.mxu0 0.0
        %913 = vmatmul.mubr.f32.gmra.mxu0 %v370
        %v914 = vpop.f32.mrf.mxu0
        %v915 = vadd.f32 %v432, %v914
        %v916 = vpop.f32.mrf.mxu0
        %917 = vdwg.mxu0
        %vm918 = vcmp.gt.f32.partialorder %v503, 0.0
        %vm919 = vcmp.gt.f32.partialorder %v505, 0.0
        %vm920 = vcmp.gt.f32.partialorder %v509, 0.0
        %vm921 = vcmp.gt.f32.partialorder %v511, 0.0
        %vm922 = vcmp.gt.f32.partialorder %v515, 0.0
        %vm923 = vcmp.gt.f32.partialorder %v517, 0.0
        %vm924 = vcmp.gt.f32.partialorder %v521, 0.0
        %vm925 = vcmp.gt.f32.partialorder %v523, 0.0
        %vm926 = vcmp.gt.f32.partialorder %v527, 0.0
        %vm927 = vcmp.gt.f32.partialorder %v529, 0.0
        %vm928 = vcmp.gt.f32.partialorder %v533, 0.0
        %vm929 = vcmp.gt.f32.partialorder %v535, 0.0
        %vm930 = vcmp.gt.f32.partialorder %v539, 0.0
        %vm931 = vcmp.gt.f32.partialorder %v541, 0.0
        %vm932 = vcmp.gt.f32.partialorder %v545, 0.0
        %vm933 = vcmp.gt.f32.partialorder %v547, 0.0
        %vm934 = vcmp.gt.f32.partialorder %v551, 0.0
        %vm935 = vcmp.gt.f32.partialorder %v553, 0.0
        %vm936 = vcmp.gt.f32.partialorder %v557, 0.0
        %vm937 = vcmp.gt.f32.partialorder %v559, 0.0
        %vm938 = vcmp.gt.f32.partialorder %v563, 0.0
        %vm939 = vcmp.gt.f32.partialorder %v565, 0.0
        %vm940 = vcmp.gt.f32.partialorder %v569, 0.0
        %vm941 = vcmp.gt.f32.partialorder %v571, 0.0
        %vm942 = vcmp.gt.f32.partialorder %v575, 0.0
        %vm943 = vcmp.gt.f32.partialorder %v577, 0.0
        %vm944 = vcmp.gt.f32.partialorder %v581, 0.0
        %vm945 = vcmp.gt.f32.partialorder %v583, 0.0
        %vm946 = vcmp.gt.f32.partialorder %v587, 0.0
        %vm947 = vcmp.gt.f32.partialorder %v589, 0.0
        %vm948 = vcmp.gt.f32.partialorder %v593, 0.0
        %vm949 = vcmp.gt.f32.partialorder %v595, 0.0
        %vm950 = vcmp.gt.f32.partialorder %v599, 0.0
        %vm951 = vcmp.gt.f32.partialorder %v601, 0.0
        %vm952 = vcmp.gt.f32.partialorder %v605, 0.0
        %vm953 = vcmp.gt.f32.partialorder %v607, 0.0
        %vm954 = vcmp.gt.f32.partialorder %v611, 0.0
        %vm955 = vcmp.gt.f32.partialorder %v613, 0.0
        %vm956 = vcmp.gt.f32.partialorder %v617, 0.0
        %vm957 = vcmp.gt.f32.partialorder %v619, 0.0
        %vm958 = vcmp.gt.f32.partialorder %v623, 0.0
        %vm959 = vcmp.gt.f32.partialorder %v625, 0.0
        %vm960 = vcmp.gt.f32.partialorder %v629, 0.0
        %vm961 = vcmp.gt.f32.partialorder %v631, 0.0
        %vm962 = vcmp.gt.f32.partialorder %v635, 0.0
        %vm963 = vcmp.gt.f32.partialorder %v637, 0.0
        %vm964 = vcmp.gt.f32.partialorder %v641, 0.0
        %vm965 = vcmp.gt.f32.partialorder %v643, 0.0
        %vm966 = vcmp.gt.f32.partialorder %v647, 0.0
        %vm967 = vcmp.gt.f32.partialorder %v649, 0.0
        %vm968 = vcmp.gt.f32.partialorder %v653, 0.0
        %vm969 = vcmp.gt.f32.partialorder %v655, 0.0
        %vm970 = vcmp.gt.f32.partialorder %v659, 0.0
        %vm971 = vcmp.gt.f32.partialorder %v661, 0.0
        %vm972 = vcmp.gt.f32.partialorder %v665, 0.0
        %vm973 = vcmp.gt.f32.partialorder %v667, 0.0
        %vm974 = vcmp.gt.f32.partialorder %v671, 0.0
        %vm975 = vcmp.gt.f32.partialorder %v673, 0.0
        %vm976 = vcmp.gt.f32.partialorder %v677, 0.0
        %vm977 = vcmp.gt.f32.partialorder %v679, 0.0
        %vm978 = vcmp.gt.f32.partialorder %v683, 0.0
        %vm979 = vcmp.gt.f32.partialorder %v685, 0.0
        %vm980 = vcmp.gt.f32.partialorder %v689, 0.0
        %vm981 = vcmp.gt.f32.partialorder %v691, 0.0
        %v982 = vadd.f32 %v503, 1.0
        %v983 = vadd.f32 %v505, 1.0
        %v984 = vadd.f32 %v509, 1.0
        %v985 = vadd.f32 %v511, 1.0
        %v986 = vadd.f32 %v515, 1.0
        %v987 = vadd.f32 %v517, 1.0
        %v988 = vadd.f32 %v521, 1.0
        %v989 = vadd.f32 %v523, 1.0
        %v990 = vadd.f32 %v527, 1.0
        %v991 = vadd.f32 %v529, 1.0
        %v992 = vadd.f32 %v533, 1.0
        %v993 = vadd.f32 %v535, 1.0
        %v994 = vadd.f32 %v539, 1.0
        %v995 = vadd.f32 %v541, 1.0
        %v996 = vadd.f32 %v545, 1.0
        %v997 = vadd.f32 %v547, 1.0
        %v998 = vadd.f32 %v551, 1.0
        %v999 = vadd.f32 %v553, 1.0
        %v1000 = vadd.f32 %v557, 1.0
        %v1001 = vadd.f32 %v559, 1.0
        %v1002 = vadd.f32 %v563, 1.0
        %v1003 = vadd.f32 %v565, 1.0
        %v1004 = vadd.f32 %v569, 1.0
        %v1005 = vadd.f32 %v571, 1.0
        %v1006 = vadd.f32 %v575, 1.0
        %v1007 = vadd.f32 %v577, 1.0
        %v1008 = vadd.f32 %v581, 1.0
        %v1009 = vadd.f32 %v583, 1.0
        %v1010 = vadd.f32 %v587, 1.0
        %v1011 = vadd.f32 %v589, 1.0
        %v1012 = vadd.f32 %v593, 1.0
        %v1013 = vadd.f32 %v595, 1.0
        %v1014 = vadd.f32 %v599, 1.0
        %v1015 = vadd.f32 %v601, 1.0
        %v1016 = vadd.f32 %v605, 1.0
        %v1017 = vadd.f32 %v607, 1.0
        %v1018 = vadd.f32 %v611, 1.0
        %v1019 = vadd.f32 %v613, 1.0
        %v1020 = vadd.f32 %v617, 1.0
        %v1021 = vadd.f32 %v619, 1.0
        %v1022 = vadd.f32 %v623, 1.0
        %v1023 = vadd.f32 %v625, 1.0
        %v1024 = vadd.f32 %v629, 1.0
        %v1025 = vadd.f32 %v631, 1.0
        %v1026 = vadd.f32 %v635, 1.0
        %v1027 = vadd.f32 %v637, 1.0
        %v1028 = vadd.f32 %v641, 1.0
        %v1029 = vadd.f32 %v643, 1.0
        %v1030 = vadd.f32 %v647, 1.0
        %v1031 = vadd.f32 %v649, 1.0
        %v1032 = vadd.f32 %v653, 1.0
        %v1033 = vadd.f32 %v655, 1.0
        %v1034 = vadd.f32 %v659, 1.0
        %v1035 = vadd.f32 %v661, 1.0
        %v1036 = vadd.f32 %v665, 1.0
        %v1037 = vadd.f32 %v667, 1.0
        %v1038 = vadd.f32 %v671, 1.0
        %v1039 = vadd.f32 %v673, 1.0
        %v1040 = vadd.f32 %v677, 1.0
        %v1041 = vadd.f32 %v679, 1.0
        %v1042 = vadd.f32 %v683, 1.0
        %v1043 = vadd.f32 %v685, 1.0
        %v1044 = vadd.f32 %v689, 1.0
        %v1045 = vadd.f32 %v691, 1.0
        %v1046 = vmul.f32 %v503, 1.442695
        %v1047 = vpow.pop %v1046
        %v1048 = vmul.f32 %v505, 1.442695
        %v1049 = vpow.pop %v1048
        %v1050 = vmul.f32 %v509, 1.442695
        %v1051 = vpow.pop %v1050
        %v1052 = vmul.f32 %v511, 1.442695
        %v1053 = vpow.pop %v1052
        %v1054 = vmul.f32 %v515, 1.442695
        %v1055 = vpow.pop %v1054
        %v1056 = vmul.f32 %v517, 1.442695
        %v1057 = vpow.pop %v1056
        %v1058 = vmul.f32 %v521, 1.442695
        %v1059 = vpow.pop %v1058
        %v1060 = vmul.f32 %v523, 1.442695
        %v1061 = vpow.pop %v1060
        %v1062 = vmul.f32 %v527, 1.442695
        %v1063 = vpow.pop %v1062
        %v1064 = vmul.f32 %v529, 1.442695
        %v1065 = vpow.pop %v1064
        %v1066 = vmul.f32 %v533, 1.442695
        %v1067 = vpow.pop %v1066
        %v1068 = vmul.f32 %v535, 1.442695
        %v1069 = vpow.pop %v1068
        %v1070 = vmul.f32 %v539, 1.442695
        %v1071 = vpow.pop %v1070
        %v1072 = vmul.f32 %v541, 1.442695
        %v1073 = vpow.pop %v1072
        %v1074 = vmul.f32 %v545, 1.442695
        %v1075 = vpow.pop %v1074
        %v1076 = vmul.f32 %v547, 1.442695
        %v1077 = vpow.pop %v1076
        %v1078 = vmul.f32 %v551, 1.442695
        %v1079 = vpow.pop %v1078
        %v1080 = vmul.f32 %v553, 1.442695
        %v1081 = vpow.pop %v1080
        %v1082 = vmul.f32 %v557, 1.442695
        %v1083 = vpow.pop %v1082
        %v1084 = vmul.f32 %v559, 1.442695
        %v1085 = vpow.pop %v1084
        %v1086 = vmul.f32 %v563, 1.442695
        %v1087 = vpow.pop %v1086
        %v1088 = vmul.f32 %v565, 1.442695
        %v1089 = vpow.pop %v1088
        %v1090 = vmul.f32 %v569, 1.442695
        %v1091 = vpow.pop %v1090
        %v1092 = vmul.f32 %v571, 1.442695
        %v1093 = vpow.pop %v1092
        %v1094 = vmul.f32 %v575, 1.442695
        %v1095 = vpow.pop %v1094
        %v1096 = vmul.f32 %v577, 1.442695
        %v1097 = vpow.pop %v1096
        %v1098 = vmul.f32 %v581, 1.442695
        %v1099 = vpow.pop %v1098
        %v1100 = vmul.f32 %v583, 1.442695
        %v1101 = vpow.pop %v1100
        %v1102 = vmul.f32 %v587, 1.442695
        %v1103 = vpow.pop %v1102
        %v1104 = vmul.f32 %v589, 1.442695
        %v1105 = vpow.pop %v1104
        %v1106 = vmul.f32 %v593, 1.442695
        %v1107 = vpow.pop %v1106
        %v1108 = vmul.f32 %v595, 1.442695
        %v1109 = vpow.pop %v1108
        %v1110 = vmul.f32 %v599, 1.442695
        %v1111 = vpow.pop %v1110
        %v1112 = vmul.f32 %v601, 1.442695
        %v1113 = vpow.pop %v1112
        %v1114 = vmul.f32 %v605, 1.442695
        %v1115 = vpow.pop %v1114
        %v1116 = vmul.f32 %v607, 1.442695
        %v1117 = vpow.pop %v1116
        %v1118 = vmul.f32 %v611, 1.442695
        %v1119 = vpow.pop %v1118
        %v1120 = vmul.f32 %v613, 1.442695
        %v1121 = vpow.pop %v1120
        %v1122 = vmul.f32 %v617, 1.442695
        %v1123 = vpow.pop %v1122
        %v1124 = vmul.f32 %v619, 1.442695
        %v1125 = vpow.pop %v1124
        %v1126 = vmul.f32 %v623, 1.442695
        %v1127 = vpow.pop %v1126
        %v1128 = vmul.f32 %v625, 1.442695
        %v1129 = vpow.pop %v1128
        %v1130 = vmul.f32 %v629, 1.442695
        %v1131 = vpow.pop %v1130
        %v1132 = vmul.f32 %v631, 1.442695
        %v1133 = vpow.pop %v1132
        %v1134 = vmul.f32 %v635, 1.442695
        %v1135 = vpow.pop %v1134
        %v1136 = vmul.f32 %v637, 1.442695
        %v1137 = vpow.pop %v1136
        %v1138 = vmul.f32 %v641, 1.442695
        %v1139 = vpow.pop %v1138
        %v1140 = vmul.f32 %v643, 1.442695
        %v1141 = vpow.pop %v1140
        %v1142 = vmul.f32 %v647, 1.442695
        %v1143 = vpow.pop %v1142
        %v1144 = vmul.f32 %v649, 1.442695
        %v1145 = vpow.pop %v1144
        %v1146 = vmul.f32 %v653, 1.442695
        %v1147 = vpow.pop %v1146
        %v1148 = vmul.f32 %v655, 1.442695
        %v1149 = vpow.pop %v1148
        %v1150 = vmul.f32 %v659, 1.442695
        %v1151 = vpow.pop %v1150
        %v1152 = vmul.f32 %v661, 1.442695
        %v1153 = vpow.pop %v1152
        %v1154 = vmul.f32 %v665, 1.442695
        %v1155 = vpow.pop %v1154
        %v1156 = vmul.f32 %v667, 1.442695
        %v1157 = vpow.pop %v1156
        %v1158 = vmul.f32 %v671, 1.442695
        %v1159 = vpow.pop %v1158
        %v1160 = vmul.f32 %v673, 1.442695
        %v1161 = vpow.pop %v1160
        %v1162 = vmul.f32 %v677, 1.442695
        %v1163 = vpow.pop %v1162
        %v1164 = vmul.f32 %v679, 1.442695
        %v1165 = vpow.pop %v1164
        %v1166 = vmul.f32 %v683, 1.442695
        %v1167 = vpow.pop %v1166
        %v1168 = vmul.f32 %v685, 1.442695
        %v1169 = vpow.pop %v1168
        %v1170 = vmul.f32 %v689, 1.442695
        %v1171 = vpow.pop %v1170
        %v1172 = vmul.f32 %v691, 1.442695
        %v1173 = vpow.pop %v1172
        %v1174 = vsel %vm918, %v982, %v1047
        %v1175 = vsel %vm919, %v983, %v1049
        %v1176 = vsel %vm920, %v984, %v1051
        %v1177 = vsel %vm921, %v985, %v1053
        %v1178 = vsel %vm922, %v986, %v1055
        %v1179 = vsel %vm923, %v987, %v1057
        %v1180 = vsel %vm924, %v988, %v1059
        %v1181 = vsel %vm925, %v989, %v1061
        %v1182 = vsel %vm926, %v990, %v1063
        %v1183 = vsel %vm927, %v991, %v1065
        %v1184 = vsel %vm928, %v992, %v1067
        %v1185 = vsel %vm929, %v993, %v1069
        %v1186 = vsel %vm930, %v994, %v1071
        %v1187 = vsel %vm931, %v995, %v1073
        %v1188 = vsel %vm932, %v996, %v1075
        %v1189 = vsel %vm933, %v997, %v1077
        %v1190 = vsel %vm934, %v998, %v1079
        %v1191 = vsel %vm935, %v999, %v1081
        %v1192 = vsel %vm936, %v1000, %v1083
        %v1193 = vsel %vm937, %v1001, %v1085
        %v1194 = vsel %vm938, %v1002, %v1087
        %v1195 = vsel %vm939, %v1003, %v1089
        %v1196 = vsel %vm940, %v1004, %v1091
        %v1197 = vsel %vm941, %v1005, %v1093
        %v1198 = vsel %vm942, %v1006, %v1095
        %v1199 = vsel %vm943, %v1007, %v1097
        %v1200 = vsel %vm944, %v1008, %v1099
        %v1201 = vsel %vm945, %v1009, %v1101
        %v1202 = vsel %vm946, %v1010, %v1103
        %v1203 = vsel %vm947, %v1011, %v1105
        %v1204 = vsel %vm948, %v1012, %v1107
        %v1205 = vsel %vm949, %v1013, %v1109
        %v1206 = vsel %vm950, %v1014, %v1111
        %v1207 = vsel %vm951, %v1015, %v1113
        %v1208 = vsel %vm952, %v1016, %v1115
        %v1209 = vsel %vm953, %v1017, %v1117
        %v1210 = vsel %vm954, %v1018, %v1119
        %v1211 = vsel %vm955, %v1019, %v1121
        %v1212 = vsel %vm956, %v1020, %v1123
        %v1213 = vsel %vm957, %v1021, %v1125
        %v1214 = vsel %vm958, %v1022, %v1127
        %v1215 = vsel %vm959, %v1023, %v1129
        %v1216 = vsel %vm960, %v1024, %v1131
        %v1217 = vsel %vm961, %v1025, %v1133
        %v1218 = vsel %vm962, %v1026, %v1135
        %v1219 = vsel %vm963, %v1027, %v1137
        %v1220 = vsel %vm964, %v1028, %v1139
        %v1221 = vsel %vm965, %v1029, %v1141
        %v1222 = vsel %vm966, %v1030, %v1143
        %v1223 = vsel %vm967, %v1031, %v1145
        %v1224 = vsel %vm968, %v1032, %v1147
        %v1225 = vsel %vm969, %v1033, %v1149
        %v1226 = vsel %vm970, %v1034, %v1151
        %v1227 = vsel %vm971, %v1035, %v1153
        %v1228 = vsel %vm972, %v1036, %v1155
        %v1229 = vsel %vm973, %v1037, %v1157
        %v1230 = vsel %vm974, %v1038, %v1159
        %v1231 = vsel %vm975, %v1039, %v1161
        %v1232 = vsel %vm976, %v1040, %v1163
        %v1233 = vsel %vm977, %v1041, %v1165
        %v1234 = vsel %vm978, %v1042, %v1167
        %v1235 = vsel %vm979, %v1043, %v1169
        %v1236 = vsel %vm980, %v1044, %v1171
        %v1237 = vsel %vm981, %v1045, %v1173
        %v1238 = vmul.f32 %v1175, %v760
        %v1239 = vmul.f32 %v1177, %v765
        %v1240 = vmul.f32 %v1179, %v770
        %v1241 = vmul.f32 %v1181, %v775
        %v1242 = vmul.f32 %v1183, %v780
        %v1243 = vmul.f32 %v1185, %v785
        %v1244 = vmul.f32 %v1187, %v790
        %v1245 = vmul.f32 %v1189, %v795
        %v1246 = vmul.f32 %v1191, %v800
        %v1247 = vmul.f32 %v1193, %v805
        %v1248 = vmul.f32 %v1195, %v810
        %v1249 = vmul.f32 %v1197, %v815
        %v1250 = vmul.f32 %v1199, %v820
        %v1251 = vmul.f32 %v1201, %v825
        %v1252 = vmul.f32 %v1203, %v830
        %v1253 = vmul.f32 %v1205, %v835
        %v1254 = vmul.f32 %v1207, %v840
        %v1255 = vmul.f32 %v1209, %v845
        %v1256 = vmul.f32 %v1211, %v850
        %v1257 = vmul.f32 %v1213, %v855
        %v1258 = vmul.f32 %v1215, %v860
        %v1259 = vmul.f32 %v1217, %v865
        %v1260 = vmul.f32 %v1219, %v870
        %v1261 = vmul.f32 %v1221, %v875
        %v1262 = vmul.f32 %v1223, %v880
        %v1263 = vmul.f32 %v1225, %v885
        %v1264 = vmul.f32 %v1227, %v890
        %v1265 = vmul.f32 %v1229, %v895
        %v1266 = vmul.f32 %v1231, %v900
        %v1267 = vmul.f32 %v1233, %v905
        %v1268 = vmul.f32 %v1235, %v910
        %v1269 = vmul.f32 %v1237, %v915
        %v1270 = vld [vmem:[#allocation2] sm:$0x1]
        %v1271 = vld [vmem:[#allocation9] sm:$0xff]
        %v1272 = vld [vmem:[#allocation9 + $0x8] sm:$0xff]
        %v1273 = vld [vmem:[#allocation9 + $0x10] sm:$0xff]
        %v1274 = vld [vmem:[#allocation9 + $0x18] sm:$0xff]
        %v1275 = vld [vmem:[#allocation9 + $0x20] sm:$0xff]
        %v1276 = vld [vmem:[#allocation9 + $0x28] sm:$0xff]
        %v1277 = vld [vmem:[#allocation9 + $0x30] sm:$0xff]
        %v1278 = vld [vmem:[#allocation9 + $0x38] sm:$0xff]
        %v1279 = vld [vmem:[#allocation9 + $0x40] sm:$0xff]
        %v1280 = vld [vmem:[#allocation9 + $0x48] sm:$0xff]
        %v1281 = vld [vmem:[#allocation9 + $0x50] sm:$0xff]
        %v1282 = vld [vmem:[#allocation9 + $0x58] sm:$0xff]
        %v1283 = vld [vmem:[#allocation9 + $0x60] sm:$0xff]
        %v1284 = vld [vmem:[#allocation9 + $0x68] sm:$0xff]
        %v1285 = vld [vmem:[#allocation9 + $0x70] sm:$0xff]
        %v1286 = vld [vmem:[#allocation9 + $0x78] sm:$0xff]
        %v1287 = vld [vmem:[#allocation9 + $0x80] sm:$0xff]
        %v1288 = vld [vmem:[#allocation9 + $0x88] sm:$0xff]
        %v1289 = vld [vmem:[#allocation9 + $0x90] sm:$0xff]
        %v1290 = vld [vmem:[#allocation9 + $0x98] sm:$0xff]
        %v1291 = vld [vmem:[#allocation9 + $0xa0] sm:$0xff]
        %v1292 = vld [vmem:[#allocation9 + $0xa8] sm:$0xff]
        %v1293 = vld [vmem:[#allocation9 + $0xb0] sm:$0xff]
        %v1294 = vld [vmem:[#allocation9 + $0xb8] sm:$0xff]
        %v1295 = vld [vmem:[#allocation9 + $0xc0] sm:$0xff]
        %v1296 = vld [vmem:[#allocation9 + $0xc8] sm:$0xff]
        %v1297 = vld [vmem:[#allocation9 + $0xd0] sm:$0xff]
        %v1298 = vld [vmem:[#allocation9 + $0xd8] sm:$0xff]
        %v1299 = vld [vmem:[#allocation9 + $0xe0] sm:$0xff]
        %v1300 = vld [vmem:[#allocation9 + $0xe8] sm:$0xff]
        %v1301 = vld [vmem:[#allocation9 + $0xf0] sm:$0xff]
        %v1302 = vld [vmem:[#allocation9 + $0xf8] sm:$0xff]
        %v1303 = vld [vmem:[#allocation9 + $0x100] sm:$0xff]
        %v1304 = vld [vmem:[#allocation9 + $0x108] sm:$0xff]
        %v1305 = vld [vmem:[#allocation9 + $0x110] sm:$0xff]
        %v1306 = vld [vmem:[#allocation9 + $0x118] sm:$0xff]
        %v1307 = vld [vmem:[#allocation9 + $0x120] sm:$0xff]
        %v1308 = vld [vmem:[#allocation9 + $0x128] sm:$0xff]
        %v1309 = vld [vmem:[#allocation9 + $0x130] sm:$0xff]
        %v1310 = vld [vmem:[#allocation9 + $0x138] sm:$0xff]
        %v1311 = vld [vmem:[#allocation9 + $0x140] sm:$0xff]
        %v1312 = vld [vmem:[#allocation9 + $0x148] sm:$0xff]
        %v1313 = vld [vmem:[#allocation9 + $0x150] sm:$0xff]
        %v1314 = vld [vmem:[#allocation9 + $0x158] sm:$0xff]
        %v1315 = vld [vmem:[#allocation9 + $0x160] sm:$0xff]
        %v1316 = vld [vmem:[#allocation9 + $0x168] sm:$0xff]
        %v1317 = vld [vmem:[#allocation9 + $0x170] sm:$0xff]
        %v1318 = vld [vmem:[#allocation9 + $0x178] sm:$0xff]
        %v1319 = vld [vmem:[#allocation9 + $0x180] sm:$0xff]
        %v1320 = vld [vmem:[#allocation9 + $0x188] sm:$0xff]
        %v1321 = vld [vmem:[#allocation9 + $0x190] sm:$0xff]
        %v1322 = vld [vmem:[#allocation9 + $0x198] sm:$0xff]
        %v1323 = vld [vmem:[#allocation9 + $0x1a0] sm:$0xff]
        %v1324 = vld [vmem:[#allocation9 + $0x1a8] sm:$0xff]
        %v1325 = vld [vmem:[#allocation9 + $0x1b0] sm:$0xff]
        %v1326 = vld [vmem:[#allocation9 + $0x1b8] sm:$0xff]
        %v1327 = vld [vmem:[#allocation9 + $0x1c0] sm:$0xff]
        %v1328 = vld [vmem:[#allocation9 + $0x1c8] sm:$0xff]
        %v1329 = vld [vmem:[#allocation9 + $0x1d0] sm:$0xff]
        %v1330 = vld [vmem:[#allocation9 + $0x1d8] sm:$0xff]
        %v1331 = vld [vmem:[#allocation9 + $0x1e0] sm:$0xff]
        %v1332 = vld [vmem:[#allocation9 + $0x1e8] sm:$0xff]
        %v1333 = vld [vmem:[#allocation9 + $0x1f0] sm:$0xff]
        %v1334 = vld [vmem:[#allocation9 + $0x1f8] sm:$0xff]
        %v1336 = vlaneseq
        %v1337 = vshrl.u32 %v1336, 7
        %v1338 = vsub.s32 0, %v1337
        %v1339 = vrot.slane %v1270, %v1338
        %1341 = vmatprep.subr.mxu0 0.0
        %1342 = vmatpush1.msra.mxu0 %v1253
        %1343 = vmatprep.subr.mxu0 0.0
        %1344 = vmatpush1.msra.mxu0 %v1252
        %1345 = vmatprep.subr.mxu0 0.0
        %1346 = vmatpush1.msra.mxu0 %v1251
        %1347 = vmatprep.subr.mxu0 0.0
        %1348 = vmatpush1.msra.mxu0 %v1250
        %1349 = vmatprep.subr.mxu0 0.0
        %1350 = vmatpush1.msra.mxu0 %v1249
        %1351 = vmatprep.subr.mxu0 0.0
        %1352 = vmatpush1.msra.mxu0 %v1248
        %1353 = vmatprep.subr.mxu0 0.0
        %1354 = vmatpush1.msra.mxu0 %v1247
        %1355 = vmatprep.subr.mxu0 0.0
        %1356 = vmatpush1.msra.mxu0 %v1246
        %1357 = vmatprep.subr.mxu0 0.0
        %1358 = vmatpush1.msra.mxu0 %v1245
        %1359 = vmatprep.subr.mxu0 0.0
        %1360 = vmatpush1.msra.mxu0 %v1244
        %1361 = vmatprep.subr.mxu0 0.0
        %1362 = vmatpush1.msra.mxu0 %v1243
        %1363 = vmatprep.subr.mxu0 0.0
        %1364 = vmatpush1.msra.mxu0 %v1242
        %1365 = vmatprep.subr.mxu0 0.0
        %1366 = vmatpush1.msra.mxu0 %v1241
        %1367 = vmatprep.subr.mxu0 0.0
        %1368 = vmatpush1.msra.mxu0 %v1240
        %1369 = vmatprep.subr.mxu0 0.0
        %1370 = vmatpush1.msra.mxu0 %v1239
        %1371 = vmatprep.subr.mxu0 0.0
        %1372 = vmatpush1.msra.mxu0 %v1238
        %1373 = vmatprep.subr.mxu0 0.0
        %1374 = vmatpush2.msra.mxu0 %v1269
        %1375 = vmatprep.subr.mxu0 0.0
        %1376 = vmatpush2.msra.mxu0 %v1268
        %1377 = vmatprep.subr.mxu0 0.0
        %1378 = vmatpush2.msra.mxu0 %v1267
        %1379 = vmatprep.subr.mxu0 0.0
        %1380 = vmatpush2.msra.mxu0 %v1266
        %1381 = vmatprep.subr.mxu0 0.0
        %1382 = vmatpush2.msra.mxu0 %v1265
        %1383 = vmatprep.subr.mxu0 0.0
        %1384 = vmatpush2.msra.mxu0 %v1264
        %1385 = vmatprep.subr.mxu0 0.0
        %1386 = vmatpush2.msra.mxu0 %v1263
        %1387 = vmatprep.subr.mxu0 0.0
        %1388 = vmatpush2.msra.mxu0 %v1262
        %1389 = vmatprep.subr.mxu0 0.0
        %1390 = vmatpush2.msra.mxu0 %v1261
        %1391 = vmatprep.subr.mxu0 0.0
        %1392 = vmatpush2.msra.mxu0 %v1260
        %1393 = vmatprep.subr.mxu0 0.0
        %1394 = vmatpush2.msra.mxu0 %v1259
        %1395 = vmatprep.subr.mxu0 0.0
        %1396 = vmatpush2.msra.mxu0 %v1258
        %1397 = vmatprep.subr.mxu0 0.0
        %1398 = vmatpush2.msra.mxu0 %v1257
        %1399 = vmatprep.subr.mxu0 0.0
        %1400 = vmatpush2.msra.mxu0 %v1256
        %1401 = vmatprep.subr.mxu0 0.0
        %1402 = vmatpush2.msra.mxu0 %v1255
        %1403 = vmatprep.subr.mxu0 0.0
        %1404 = vmatpush2.msra.mxu0 %v1254
        %1405 = vmatprep.mubr.f32.mxu0 %v1272
        %1406 = vmatmul.mubr.f32.gmra.mxu0 %v1271
        %v1407 = vpop.f32.mrf.mxu0
        %v1408 = vadd.f32 %v1339, %v1407
        %v1409 = vpop.f32.mrf.mxu0
        %1410 = vmatprep.mubr.f32.mxu0 %v1274
        %1411 = vmatmul.mubr.f32.gmra.mxu0 %v1273
        %v1412 = vpop.f32.mrf.mxu0
        %v1413 = vadd.f32 %v1339, %v1412
        %v1414 = vpop.f32.mrf.mxu0
        %1415 = vmatprep.mubr.f32.mxu0 %v1276
        %1416 = vmatmul.mubr.f32.gmra.mxu0 %v1275
        %v1417 = vpop.f32.mrf.mxu0
        %v1418 = vadd.f32 %v1339, %v1417
        %v1419 = vpop.f32.mrf.mxu0
        %1420 = vmatprep.mubr.f32.mxu0 %v1278
        %1421 = vmatmul.mubr.f32.gmra.mxu0 %v1277
        %v1422 = vpop.f32.mrf.mxu0
        %v1423 = vadd.f32 %v1339, %v1422
        %v1424 = vpop.f32.mrf.mxu0
        %1425 = vmatprep.mubr.f32.mxu0 %v1280
        %1426 = vmatmul.mubr.f32.gmra.mxu0 %v1279
        %v1427 = vpop.f32.mrf.mxu0
        %v1428 = vadd.f32 %v1339, %v1427
        %v1429 = vpop.f32.mrf.mxu0
        %1430 = vmatprep.mubr.f32.mxu0 %v1282
        %1431 = vmatmul.mubr.f32.gmra.mxu0 %v1281
        %v1432 = vpop.f32.mrf.mxu0
        %v1433 = vadd.f32 %v1339, %v1432
        %v1434 = vpop.f32.mrf.mxu0
        %1435 = vmatprep.mubr.f32.mxu0 %v1284
        %1436 = vmatmul.mubr.f32.gmra.mxu0 %v1283
        %v1437 = vpop.f32.mrf.mxu0
        %v1438 = vadd.f32 %v1339, %v1437
        %v1439 = vpop.f32.mrf.mxu0
        %1440 = vmatprep.mubr.f32.mxu0 %v1286
        %1441 = vmatmul.mubr.f32.gmra.mxu0 %v1285
        %v1442 = vpop.f32.mrf.mxu0
        %v1443 = vadd.f32 %v1339, %v1442
        %v1444 = vpop.f32.mrf.mxu0
        %1445 = vmatprep.mubr.f32.mxu0 %v1288
        %1446 = vmatmul.mubr.f32.gmra.mxu0 %v1287
        %v1447 = vpop.f32.mrf.mxu0
        %v1448 = vadd.f32 %v1339, %v1447
        %v1449 = vpop.f32.mrf.mxu0
        %1450 = vmatprep.mubr.f32.mxu0 %v1290
        %1451 = vmatmul.mubr.f32.gmra.mxu0 %v1289
        %v1452 = vpop.f32.mrf.mxu0
        %v1453 = vadd.f32 %v1339, %v1452
        %v1454 = vpop.f32.mrf.mxu0
        %1455 = vmatprep.mubr.f32.mxu0 %v1292
        %1456 = vmatmul.mubr.f32.gmra.mxu0 %v1291
        %v1457 = vpop.f32.mrf.mxu0
        %v1458 = vadd.f32 %v1339, %v1457
        %v1459 = vpop.f32.mrf.mxu0
        %1460 = vmatprep.mubr.f32.mxu0 %v1294
        %1461 = vmatmul.mubr.f32.gmra.mxu0 %v1293
        %v1462 = vpop.f32.mrf.mxu0
        %v1463 = vadd.f32 %v1339, %v1462
        %v1464 = vpop.f32.mrf.mxu0
        %1465 = vmatprep.mubr.f32.mxu0 %v1296
        %1466 = vmatmul.mubr.f32.gmra.mxu0 %v1295
        %v1467 = vpop.f32.mrf.mxu0
        %v1468 = vadd.f32 %v1339, %v1467
        %v1469 = vpop.f32.mrf.mxu0
        %1470 = vmatprep.mubr.f32.mxu0 %v1298
        %1471 = vmatmul.mubr.f32.gmra.mxu0 %v1297
        %v1472 = vpop.f32.mrf.mxu0
        %v1473 = vadd.f32 %v1339, %v1472
        %v1474 = vpop.f32.mrf.mxu0
        %1475 = vmatprep.mubr.f32.mxu0 %v1300
        %1476 = vmatmul.mubr.f32.gmra.mxu0 %v1299
        %v1477 = vpop.f32.mrf.mxu0
        %v1478 = vadd.f32 %v1339, %v1477
        %v1479 = vpop.f32.mrf.mxu0
        %1480 = vmatprep.mubr.f32.mxu0 %v1302
        %1481 = vmatmul.mubr.f32.gmra.mxu0 %v1301
        %v1482 = vpop.f32.mrf.mxu0
        %v1483 = vadd.f32 %v1339, %v1482
        %v1484 = vpop.f32.mrf.mxu0
        %1485 = vmatprep.mubr.f32.mxu0 %v1304
        %1486 = vmatmul.mubr.f32.gmra.mxu0 %v1303
        %v1487 = vpop.f32.mrf.mxu0
        %v1488 = vadd.f32 %v1339, %v1487
        %v1489 = vpop.f32.mrf.mxu0
        %1490 = vmatprep.mubr.f32.mxu0 %v1306
        %1491 = vmatmul.mubr.f32.gmra.mxu0 %v1305
        %v1492 = vpop.f32.mrf.mxu0
        %v1493 = vadd.f32 %v1339, %v1492
        %v1494 = vpop.f32.mrf.mxu0
        %1495 = vmatprep.mubr.f32.mxu0 %v1308
        %1496 = vmatmul.mubr.f32.gmra.mxu0 %v1307
        %v1497 = vpop.f32.mrf.mxu0
        %v1498 = vadd.f32 %v1339, %v1497
        %v1499 = vpop.f32.mrf.mxu0
        %1500 = vmatprep.mubr.f32.mxu0 %v1310
        %1501 = vmatmul.mubr.f32.gmra.mxu0 %v1309
        %v1502 = vpop.f32.mrf.mxu0
        %v1503 = vadd.f32 %v1339, %v1502
        %v1504 = vpop.f32.mrf.mxu0
        %1505 = vmatprep.mubr.f32.mxu0 %v1312
        %1506 = vmatmul.mubr.f32.gmra.mxu0 %v1311
        %v1507 = vpop.f32.mrf.mxu0
        %v1508 = vadd.f32 %v1339, %v1507
        %v1509 = vpop.f32.mrf.mxu0
        %1510 = vmatprep.mubr.f32.mxu0 %v1314
        %1511 = vmatmul.mubr.f32.gmra.mxu0 %v1313
        %v1512 = vpop.f32.mrf.mxu0
        %v1513 = vadd.f32 %v1339, %v1512
        %v1514 = vpop.f32.mrf.mxu0
        %1515 = vmatprep.mubr.f32.mxu0 %v1316
        %1516 = vmatmul.mubr.f32.gmra.mxu0 %v1315
        %v1517 = vpop.f32.mrf.mxu0
        %v1518 = vadd.f32 %v1339, %v1517
        %v1519 = vpop.f32.mrf.mxu0
        %1520 = vmatprep.mubr.f32.mxu0 %v1318
        %1521 = vmatmul.mubr.f32.gmra.mxu0 %v1317
        %v1522 = vpop.f32.mrf.mxu0
        %v1523 = vadd.f32 %v1339, %v1522
        %v1524 = vpop.f32.mrf.mxu0
        %1525 = vmatprep.mubr.f32.mxu0 %v1320
        %1526 = vmatmul.mubr.f32.gmra.mxu0 %v1319
        %v1527 = vpop.f32.mrf.mxu0
        %v1528 = vadd.f32 %v1339, %v1527
        %v1529 = vpop.f32.mrf.mxu0
        %1530 = vmatprep.mubr.f32.mxu0 %v1322
        %1531 = vmatmul.mubr.f32.gmra.mxu0 %v1321
        %v1532 = vpop.f32.mrf.mxu0
        %v1533 = vadd.f32 %v1339, %v1532
        %v1534 = vpop.f32.mrf.mxu0
        %1535 = vmatprep.mubr.f32.mxu0 %v1324
        %1536 = vmatmul.mubr.f32.gmra.mxu0 %v1323
        %v1537 = vpop.f32.mrf.mxu0
        %v1538 = vadd.f32 %v1339, %v1537
        %v1539 = vpop.f32.mrf.mxu0
        %1540 = vmatprep.mubr.f32.mxu0 %v1326
        %1541 = vmatmul.mubr.f32.gmra.mxu0 %v1325
        %v1542 = vpop.f32.mrf.mxu0
        %v1543 = vadd.f32 %v1339, %v1542
        %v1544 = vpop.f32.mrf.mxu0
        %1545 = vmatprep.mubr.f32.mxu0 %v1328
        %1546 = vmatmul.mubr.f32.gmra.mxu0 %v1327
        %v1547 = vpop.f32.mrf.mxu0
        %v1548 = vadd.f32 %v1339, %v1547
        %v1549 = vpop.f32.mrf.mxu0
        %1550 = vmatprep.mubr.f32.mxu0 %v1330
        %1551 = vmatmul.mubr.f32.gmra.mxu0 %v1329
        %v1552 = vpop.f32.mrf.mxu0
        %v1553 = vadd.f32 %v1339, %v1552
        %v1554 = vpop.f32.mrf.mxu0
        %1555 = vmatprep.mubr.f32.mxu0 %v1332
        %1556 = vmatmul.mubr.f32.gmra.mxu0 %v1331
        %v1557 = vpop.f32.mrf.mxu0
        %v1558 = vadd.f32 %v1339, %v1557
        %v1559 = vpop.f32.mrf.mxu0
        %1560 = vmatprep.mubr.f32.mxu0 %v1334
        %1561 = vmatmul.mubr.f32.gmra.mxu0 %v1333
        %v1562 = vpop.f32.mrf.mxu0
        %v1563 = vadd.f32 %v1339, %v1562
        %v1564 = vpop.f32.mrf.mxu0
        %1565 = vdwg.mxu0
        %1566 = vst [vmem:[#allocation2 - $0x7] sm:$0x80] %v1563
        %v1567 = vmul.f32 %v1174, %v1408
        %v1568 = vmul.f32 %v1176, %v1413
        %v1569 = vmul.f32 %v1178, %v1418
        %v1570 = vmul.f32 %v1180, %v1423
        %v1571 = vmul.f32 %v1182, %v1428
        %v1572 = vmul.f32 %v1184, %v1433
        %v1573 = vmul.f32 %v1186, %v1438
        %v1574 = vmul.f32 %v1188, %v1443
        %v1575 = vmul.f32 %v1190, %v1448
        %v1576 = vmul.f32 %v1192, %v1453
        %v1577 = vmul.f32 %v1194, %v1458
        %v1578 = vmul.f32 %v1196, %v1463
        %v1579 = vmul.f32 %v1198, %v1468
        %v1580 = vmul.f32 %v1200, %v1473
        %v1581 = vmul.f32 %v1202, %v1478
        %v1582 = vmul.f32 %v1204, %v1483
        %v1583 = vmul.f32 %v1206, %v1488
        %v1584 = vmul.f32 %v1208, %v1493
        %v1585 = vmul.f32 %v1210, %v1498
        %v1586 = vmul.f32 %v1212, %v1503
        %v1587 = vmul.f32 %v1214, %v1508
        %v1588 = vmul.f32 %v1216, %v1513
        %v1589 = vmul.f32 %v1218, %v1518
        %v1590 = vmul.f32 %v1220, %v1523
        %v1591 = vmul.f32 %v1222, %v1528
        %v1592 = vmul.f32 %v1224, %v1533
        %v1593 = vmul.f32 %v1226, %v1538
        %v1594 = vmul.f32 %v1228, %v1543
        %v1595 = vmul.f32 %v1230, %v1548
        %v1596 = vmul.f32 %v1232, %v1553
        %v1597 = vmul.f32 %v1234, %v1558
        %v1598 = vmul.f32 %v1236, %v1563
        %v1599 = vld [vmem:[#allocation8] sm:$0xff]
        %v1600 = vld [vmem:[#allocation8 + $0x8] sm:$0xff]
        %v1601 = vld [vmem:[#allocation8 + $0x10] sm:$0xff]
        %v1602 = vld [vmem:[#allocation8 + $0x18] sm:$0xff]
        %v1603 = vld [vmem:[#allocation8 + $0x20] sm:$0xff]
        %v1604 = vld [vmem:[#allocation8 + $0x28] sm:$0xff]
        %v1605 = vld [vmem:[#allocation8 + $0x30] sm:$0xff]
        %v1606 = vld [vmem:[#allocation8 + $0x38] sm:$0xff]
        %v1607 = vld [vmem:[#allocation8 + $0x40] sm:$0xff]
        %v1608 = vld [vmem:[#allocation8 + $0x48] sm:$0xff]
        %v1609 = vld [vmem:[#allocation8 + $0x50] sm:$0xff]
        %v1610 = vld [vmem:[#allocation8 + $0x58] sm:$0xff]
        %v1611 = vld [vmem:[#allocation8 + $0x60] sm:$0xff]
        %v1612 = vld [vmem:[#allocation8 + $0x68] sm:$0xff]
        %v1613 = vld [vmem:[#allocation8 + $0x70] sm:$0xff]
        %v1614 = vld [vmem:[#allocation8 + $0x78] sm:$0xff]
        %v1615 = vld [vmem:[%s4] sm:$0x1]
        %v1617 = vlaneseq
        %v1618 = vshrl.u32 %v1617, 7
        %v1619 = vsub.s32 0, %v1618
        %v1620 = vrot.slane %v1615, %v1619
        %1622 = vmatprep.subr.mxu0 0.0
        %1623 = vmatpush1.msra.mxu0 %v1614
        %1624 = vmatprep.subr.mxu0 0.0
        %1625 = vmatpush1.msra.mxu0 %v1613
        %1626 = vmatprep.subr.mxu0 0.0
        %1627 = vmatpush1.msra.mxu0 %v1612
        %1628 = vmatprep.subr.mxu0 0.0
        %1629 = vmatpush1.msra.mxu0 %v1611
        %1630 = vmatprep.subr.mxu0 0.0
        %1631 = vmatpush1.msra.mxu0 %v1610
        %1632 = vmatprep.subr.mxu0 0.0
        %1633 = vmatpush1.msra.mxu0 %v1609
        %1634 = vmatprep.subr.mxu0 0.0
        %1635 = vmatpush1.msra.mxu0 %v1608
        %1636 = vmatprep.subr.mxu0 0.0
        %1637 = vmatpush1.msra.mxu0 %v1607
        %1638 = vmatprep.subr.mxu0 0.0
        %1639 = vmatpush1.msra.mxu0 %v1606
        %1640 = vmatprep.subr.mxu0 0.0
        %1641 = vmatpush1.msra.mxu0 %v1605
        %1642 = vmatprep.subr.mxu0 0.0
        %1643 = vmatpush1.msra.mxu0 %v1604
        %1644 = vmatprep.subr.mxu0 0.0
        %1645 = vmatpush1.msra.mxu0 %v1603
        %1646 = vmatprep.subr.mxu0 0.0
        %1647 = vmatpush1.msra.mxu0 %v1602
        %1648 = vmatprep.subr.mxu0 0.0
        %1649 = vmatpush1.msra.mxu0 %v1601
        %1650 = vmatprep.subr.mxu0 0.0
        %1651 = vmatpush1.msra.mxu0 %v1600
        %1652 = vmatprep.subr.mxu0 0.0
        %1653 = vmatpush1.msra.mxu0 %v1599
        %1654 = vmatprep.subr.mxu0 0.0
        %1655 = vmatpush2.msra.mxu0 0.0
        %1656 = vmatprep.subr.mxu0 0.0
        %1657 = vmatpush2.msra.mxu0 0.0
        %1658 = vmatprep.subr.mxu0 0.0
        %1659 = vmatpush2.msra.mxu0 0.0
        %1660 = vmatprep.subr.mxu0 0.0
        %1661 = vmatpush2.msra.mxu0 0.0
        %1662 = vmatprep.subr.mxu0 0.0
        %1663 = vmatpush2.msra.mxu0 0.0
        %1664 = vmatprep.subr.mxu0 0.0
        %1665 = vmatpush2.msra.mxu0 0.0
        %1666 = vmatprep.subr.mxu0 0.0
        %1667 = vmatpush2.msra.mxu0 0.0
        %1668 = vmatprep.subr.mxu0 0.0
        %1669 = vmatpush2.msra.mxu0 0.0
        %1670 = vmatprep.subr.mxu0 0.0
        %1671 = vmatpush2.msra.mxu0 0.0
        %1672 = vmatprep.subr.mxu0 0.0
        %1673 = vmatpush2.msra.mxu0 0.0
        %1674 = vmatprep.subr.mxu0 0.0
        %1675 = vmatpush2.msra.mxu0 0.0
        %1676 = vmatprep.subr.mxu0 0.0
        %1677 = vmatpush2.msra.mxu0 0.0
        %1678 = vmatprep.subr.mxu0 0.0
        %1679 = vmatpush2.msra.mxu0 0.0
        %1680 = vmatprep.subr.mxu0 0.0
        %1681 = vmatpush2.msra.mxu0 0.0
        %1682 = vmatprep.subr.mxu0 0.0
        %1683 = vmatpush2.msra.mxu0 0.0
        %1684 = vmatprep.subr.mxu0 0.0
        %1685 = vmatpush2.msra.mxu0 0.0
        %1686 = vmatprep.mubr.f32.mxu0 0.0
        %1687 = vmatmul.mubr.f32.gmra.mxu0 %v1567
        %v1688 = vpop.f32.mrf.mxu0
        %v1689 = vadd.f32 %v1620, %v1688
        %v1690 = vpop.f32.mrf.mxu0
        %1691 = vmatprep.mubr.f32.mxu0 0.0
        %1692 = vmatmul.mubr.f32.gmra.mxu0 %v1568
        %v1693 = vpop.f32.mrf.mxu0
        %v1694 = vadd.f32 %v1620, %v1693
        %v1695 = vpop.f32.mrf.mxu0
        %1696 = vmatprep.mubr.f32.mxu0 0.0
        %1697 = vmatmul.mubr.f32.gmra.mxu0 %v1569
        %v1698 = vpop.f32.mrf.mxu0
        %v1699 = vadd.f32 %v1620, %v1698
        %v1700 = vpop.f32.mrf.mxu0
        %1701 = vmatprep.mubr.f32.mxu0 0.0
        %1702 = vmatmul.mubr.f32.gmra.mxu0 %v1570
        %v1703 = vpop.f32.mrf.mxu0
        %v1704 = vadd.f32 %v1620, %v1703
        %v1705 = vpop.f32.mrf.mxu0
        %1706 = vmatprep.mubr.f32.mxu0 0.0
        %1707 = vmatmul.mubr.f32.gmra.mxu0 %v1571
        %v1708 = vpop.f32.mrf.mxu0
        %v1709 = vadd.f32 %v1620, %v1708
        %v1710 = vpop.f32.mrf.mxu0
        %1711 = vmatprep.mubr.f32.mxu0 0.0
        %1712 = vmatmul.mubr.f32.gmra.mxu0 %v1572
        %v1713 = vpop.f32.mrf.mxu0
        %v1714 = vadd.f32 %v1620, %v1713
        %v1715 = vpop.f32.mrf.mxu0
        %1716 = vmatprep.mubr.f32.mxu0 0.0
        %1717 = vmatmul.mubr.f32.gmra.mxu0 %v1573
        %v1718 = vpop.f32.mrf.mxu0
        %v1719 = vadd.f32 %v1620, %v1718
        %v1720 = vpop.f32.mrf.mxu0
        %1721 = vmatprep.mubr.f32.mxu0 0.0
        %1722 = vmatmul.mubr.f32.gmra.mxu0 %v1574
        %v1723 = vpop.f32.mrf.mxu0
        %v1724 = vadd.f32 %v1620, %v1723
        %v1725 = vpop.f32.mrf.mxu0
        %1726 = vmatprep.mubr.f32.mxu0 0.0
        %1727 = vmatmul.mubr.f32.gmra.mxu0 %v1575
        %v1728 = vpop.f32.mrf.mxu0
        %v1729 = vadd.f32 %v1620, %v1728
        %v1730 = vpop.f32.mrf.mxu0
        %1731 = vmatprep.mubr.f32.mxu0 0.0
        %1732 = vmatmul.mubr.f32.gmra.mxu0 %v1576
        %v1733 = vpop.f32.mrf.mxu0
        %v1734 = vadd.f32 %v1620, %v1733
        %v1735 = vpop.f32.mrf.mxu0
        %1736 = vmatprep.mubr.f32.mxu0 0.0
        %1737 = vmatmul.mubr.f32.gmra.mxu0 %v1577
        %v1738 = vpop.f32.mrf.mxu0
        %v1739 = vadd.f32 %v1620, %v1738
        %v1740 = vpop.f32.mrf.mxu0
        %1741 = vmatprep.mubr.f32.mxu0 0.0
        %1742 = vmatmul.mubr.f32.gmra.mxu0 %v1578
        %v1743 = vpop.f32.mrf.mxu0
        %v1744 = vadd.f32 %v1620, %v1743
        %v1745 = vpop.f32.mrf.mxu0
        %1746 = vmatprep.mubr.f32.mxu0 0.0
        %1747 = vmatmul.mubr.f32.gmra.mxu0 %v1579
        %v1748 = vpop.f32.mrf.mxu0
        %v1749 = vadd.f32 %v1620, %v1748
        %v1750 = vpop.f32.mrf.mxu0
        %1751 = vmatprep.mubr.f32.mxu0 0.0
        %1752 = vmatmul.mubr.f32.gmra.mxu0 %v1580
        %v1753 = vpop.f32.mrf.mxu0
        %v1754 = vadd.f32 %v1620, %v1753
        %v1755 = vpop.f32.mrf.mxu0
        %1756 = vmatprep.mubr.f32.mxu0 0.0
        %1757 = vmatmul.mubr.f32.gmra.mxu0 %v1581
        %v1758 = vpop.f32.mrf.mxu0
        %v1759 = vadd.f32 %v1620, %v1758
        %v1760 = vpop.f32.mrf.mxu0
        %1761 = vmatprep.mubr.f32.mxu0 0.0
        %1762 = vmatmul.mubr.f32.gmra.mxu0 %v1582
        %v1763 = vpop.f32.mrf.mxu0
        %v1764 = vadd.f32 %v1620, %v1763
        %v1765 = vpop.f32.mrf.mxu0
        %1766 = vmatprep.mubr.f32.mxu0 0.0
        %1767 = vmatmul.mubr.f32.gmra.mxu0 %v1583
        %v1768 = vpop.f32.mrf.mxu0
        %v1769 = vadd.f32 %v1620, %v1768
        %v1770 = vpop.f32.mrf.mxu0
        %1771 = vmatprep.mubr.f32.mxu0 0.0
        %1772 = vmatmul.mubr.f32.gmra.mxu0 %v1584
        %v1773 = vpop.f32.mrf.mxu0
        %v1774 = vadd.f32 %v1620, %v1773
        %v1775 = vpop.f32.mrf.mxu0
        %1776 = vmatprep.mubr.f32.mxu0 0.0
        %1777 = vmatmul.mubr.f32.gmra.mxu0 %v1585
        %v1778 = vpop.f32.mrf.mxu0
        %v1779 = vadd.f32 %v1620, %v1778
        %v1780 = vpop.f32.mrf.mxu0
        %1781 = vmatprep.mubr.f32.mxu0 0.0
        %1782 = vmatmul.mubr.f32.gmra.mxu0 %v1586
        %v1783 = vpop.f32.mrf.mxu0
        %v1784 = vadd.f32 %v1620, %v1783
        %v1785 = vpop.f32.mrf.mxu0
        %1786 = vmatprep.mubr.f32.mxu0 0.0
        %1787 = vmatmul.mubr.f32.gmra.mxu0 %v1587
        %v1788 = vpop.f32.mrf.mxu0
        %v1789 = vadd.f32 %v1620, %v1788
        %v1790 = vpop.f32.mrf.mxu0
        %1791 = vmatprep.mubr.f32.mxu0 0.0
        %1792 = vmatmul.mubr.f32.gmra.mxu0 %v1588
        %v1793 = vpop.f32.mrf.mxu0
        %v1794 = vadd.f32 %v1620, %v1793
        %v1795 = vpop.f32.mrf.mxu0
        %1796 = vmatprep.mubr.f32.mxu0 0.0
        %1797 = vmatmul.mubr.f32.gmra.mxu0 %v1589
        %v1798 = vpop.f32.mrf.mxu0
        %v1799 = vadd.f32 %v1620, %v1798
        %v1800 = vpop.f32.mrf.mxu0
        %1801 = vmatprep.mubr.f32.mxu0 0.0
        %1802 = vmatmul.mubr.f32.gmra.mxu0 %v1590
        %v1803 = vpop.f32.mrf.mxu0
        %v1804 = vadd.f32 %v1620, %v1803
        %v1805 = vpop.f32.mrf.mxu0
        %1806 = vmatprep.mubr.f32.mxu0 0.0
        %1807 = vmatmul.mubr.f32.gmra.mxu0 %v1591
        %v1808 = vpop.f32.mrf.mxu0
        %v1809 = vadd.f32 %v1620, %v1808
        %v1810 = vpop.f32.mrf.mxu0
        %1811 = vmatprep.mubr.f32.mxu0 0.0
        %1812 = vmatmul.mubr.f32.gmra.mxu0 %v1592
        %v1813 = vpop.f32.mrf.mxu0
        %v1814 = vadd.f32 %v1620, %v1813
        %v1815 = vpop.f32.mrf.mxu0
        %1816 = vmatprep.mubr.f32.mxu0 0.0
        %1817 = vmatmul.mubr.f32.gmra.mxu0 %v1593
        %v1818 = vpop.f32.mrf.mxu0
        %v1819 = vadd.f32 %v1620, %v1818
        %v1820 = vpop.f32.mrf.mxu0
        %1821 = vmatprep.mubr.f32.mxu0 0.0
        %1822 = vmatmul.mubr.f32.gmra.mxu0 %v1594
        %v1823 = vpop.f32.mrf.mxu0
        %v1824 = vadd.f32 %v1620, %v1823
        %v1825 = vpop.f32.mrf.mxu0
        %1826 = vmatprep.mubr.f32.mxu0 0.0
        %1827 = vmatmul.mubr.f32.gmra.mxu0 %v1595
        %v1828 = vpop.f32.mrf.mxu0
        %v1829 = vadd.f32 %v1620, %v1828
        %v1830 = vpop.f32.mrf.mxu0
        %1831 = vmatprep.mubr.f32.mxu0 0.0
        %1832 = vmatmul.mubr.f32.gmra.mxu0 %v1596
        %v1833 = vpop.f32.mrf.mxu0
        %v1834 = vadd.f32 %v1620, %v1833
        %v1835 = vpop.f32.mrf.mxu0
        %1836 = vmatprep.mubr.f32.mxu0 0.0
        %1837 = vmatmul.mubr.f32.gmra.mxu0 %v1597
        %v1838 = vpop.f32.mrf.mxu0
        %v1839 = vadd.f32 %v1620, %v1838
        %v1840 = vpop.f32.mrf.mxu0
        %1841 = vmatprep.mubr.f32.mxu0 0.0
        %1842 = vmatmul.mubr.f32.gmra.mxu0 %v1598
        %v1843 = vpop.f32.mrf.mxu0
        %v1844 = vadd.f32 %v1620, %v1843
        %v1845 = vpop.f32.mrf.mxu0
        %1846 = vdwg.mxu0
        %1847 = vst [vmem:[%s331] sm:$0xff] %v1689
        %1848 = vst [vmem:[%s331 + $0x8] sm:$0xff] %v1694
        %1849 = vst [vmem:[%s331 + $0x10] sm:$0xff] %v1699
        %1850 = vst [vmem:[%s331 + $0x18] sm:$0xff] %v1704
        %1851 = vst [vmem:[%s331 + $0x20] sm:$0xff] %v1709
        %1852 = vst [vmem:[%s331 + $0x28] sm:$0xff] %v1714
        %1853 = vst [vmem:[%s331 + $0x30] sm:$0xff] %v1719
        %1854 = vst [vmem:[%s331 + $0x38] sm:$0xff] %v1724
        %1855 = vst [vmem:[%s331 + $0x40] sm:$0xff] %v1729
        %1856 = vst [vmem:[%s331 + $0x48] sm:$0xff] %v1734
        %1857 = vst [vmem:[%s331 + $0x50] sm:$0xff] %v1739
        %1858 = vst [vmem:[%s331 + $0x58] sm:$0xff] %v1744
        %1859 = vst [vmem:[%s331 + $0x60] sm:$0xff] %v1749
        %1860 = vst [vmem:[%s331 + $0x68] sm:$0xff] %v1754
        %1861 = vst [vmem:[%s331 + $0x70] sm:$0xff] %v1759
        %1862 = vst [vmem:[%s331 + $0x78] sm:$0xff] %v1764
        %1863 = vst [vmem:[%s331 + $0x80] sm:$0xff] %v1769
        %1864 = vst [vmem:[%s331 + $0x88] sm:$0xff] %v1774
        %1865 = vst [vmem:[%s331 + $0x90] sm:$0xff] %v1779
        %1866 = vst [vmem:[%s331 + $0x98] sm:$0xff] %v1784
        %1867 = vst [vmem:[%s331 + $0xa0] sm:$0xff] %v1789
        %1868 = vst [vmem:[%s331 + $0xa8] sm:$0xff] %v1794
        %1869 = vst [vmem:[%s331 + $0xb0] sm:$0xff] %v1799
        %1870 = vst [vmem:[%s331 + $0xb8] sm:$0xff] %v1804
        %1871 = vst [vmem:[%s331 + $0xc0] sm:$0xff] %v1809
        %1872 = vst [vmem:[%s331 + $0xc8] sm:$0xff] %v1814
        %1873 = vst [vmem:[%s331 + $0xd0] sm:$0xff] %v1819
        %1874 = vst [vmem:[%s331 + $0xd8] sm:$0xff] %v1824
        %1875 = vst [vmem:[%s331 + $0xe0] sm:$0xff] %v1829
        %1876 = vst [vmem:[%s331 + $0xe8] sm:$0xff] %v1834
        %1877 = vst [vmem:[%s331 + $0xf0] sm:$0xff] %v1839
        %1878 = vst [vmem:[%s331 + $0xf8] sm:$0xff] %v1844
        %s1879 = sand.u32 %s180, 1
        %s1880 = scalar_lea.sflag [#allocation5], %s1879
        %s1881 = sand.u32 %s180, 1
        %s1882 = smul.addr %s1881, 256
        %s1883 = scalar_lea.vmem [#allocation11], %s1882
        // Predicated region
        $region65: #{tpu_custom_call.1} parent=43 // pred_check
          %p1884 = pneg %p190
        $region66: #{tpu_custom_call.1} parent=43 // pred_check_branch
          %1886 = sbr.rel (%p1884) target = $region68
        $region67: #{tpu_custom_call.1} parent=43 // pred_region
          %s1887 = smul.u32 32, %s30
          %s1889 = ssub.s32 4096, 4096
          %1890 = vsyncadd %s1880, %s1889
          %s1891 = smul.addr %s29, 32
          %s1892 = sadd.s32 %s1887, %s1891
          %s1893 = smul.addr %s1892, 128
          %s1894 = scalar_lea.hbm %s6, %s1893
          %s1895 = sshll.u32 %s1883, 4
          %s1896 = int_to_ptr.vmem [resolvable:$true] %s1895
          %1901 = dma.vmem_to_hbm [thread:$0]  %s1896, 4096, %s1894, %s1880, 128, 128, 8
        $region68: #{tpu_custom_call.1} parent=43 // pred_fallthru
          _
      $region44: #{tpu_custom_call.1} parent=5 // pred_fallthru
        _
      %p1902 = scmp.le.s32.totalorder 2, %s20
      // Predicated region
      $region69: #{tpu_custom_call.1} parent=5 // pred_check
        %p1903 = pneg %p1902
      $region70: #{tpu_custom_call.1} parent=5 // pred_check_branch
        %1905 = sbr.rel (%p1903) target = $region72
      $region71: #{tpu_custom_call.1} parent=5 // pred_region
        %s1906 = ssub.s32 %s20, 2
        // Predicated region
        $region73: #{tpu_custom_call.1} parent=71 // pred_check
          %p1907 = pneg %p196
        $region74: #{tpu_custom_call.1} parent=71 // pred_check_branch
          %1909 = sbr.rel (%p1907) target = $region76
        $region75: #{tpu_custom_call.1} parent=71 // pred_region
          %s1910 = sand.u32 %s181, 1
          %s1911 = scalar_lea.sflag [#allocation5], %s1910
          %s1912 = sand.u32 %s181, 1
          %s1913 = smul.addr %s1912, 256
          %s1914 = scalar_lea.vmem [#allocation11], %s1913
          %1915 = dma.done %s1911, 4096
        $region76: #{tpu_custom_call.1} parent=71 // pred_fallthru
          _
      $region72: #{tpu_custom_call.1} parent=5 // pred_fallthru
        _
    $region6: #{tpu_custom_call.1} parent=1 // loop_footer
      %s24 = sadd.s32 1, %s20
    $region7: #{tpu_custom_call.1} parent=1 // loop_footer_branch
      %19 = sbr.rel target = $region3
    $region8: #{tpu_custom_call.1} parent=1 // loop_exit
      _
    %1916 = vsyncpa [#allocation4], 1
    %s1917 = scalar_lea.sflag [#allocation4], 1
    %1918 = vsyncpa %s1917, 1
    %1919 = vsyncpa [#allocation7], 1
    %1920 = vsyncpa [#allocation10], 1
    %1921 = vsyncpa [#allocation5], 1
    %s1922 = scalar_lea.sflag [#allocation5], 1
    %1923 = vsyncpa %s1922, 1

// kernel: tpu_custom_call.1
$region0: #{tpu_custom_call.1}
  #allocation0 [shape = 'u32[]', space=smem, size = 0x4, offset = 0x4, fixed_abs, tag = 'smem constant byte address 0x4 - core index']
  #allocation1 [shape = 'u32[144,128]{1,0:T(1,128)}', space=vmem, size = 0x12000, scoped, tag = 'internal scratch']
  #allocation2 [shape = 'f32[1,128]{1,0:T(1,128)}', space=vmem, size = 0x200, scoped, tag = 'scratch operand']
  %s0 = inlined_call_operand.hbm [shape: f32[2,256,128], index: 0, kind: input, shape index: {}]
  %s1 = inlined_call_operand.hbm [shape: f32[128,384], index: 1, kind: input, shape index: {}]
  %s2 = inlined_call_operand.vmem [shape: f32[1,384], index: 2, kind: input, shape index: {}]
  %s3 = inlined_call_operand.hbm [shape: f32[128,128], index: 3, kind: input, shape index: {}]
  %s4 = inlined_call_operand.vmem [shape: f32[1,128], index: 4, kind: input, shape index: {}]
  %s5 = inlined_call_operand.hbm [shape: f32[256,256], index: 5, kind: input, shape index: {}]
  %s6 = inlined_call_operand.hbm [shape: f32[2,256,128], index: 6, kind: output, shape index: {}]
  %s7 = sld [smem:[#allocation0]]
  $region77: #{tpu_custom_call.1} parent=0
    _
  %s9 = ssub.s32 1, %s7
  %s10 = scalar_select 0, %s9, %s7
  $region1: #{tpu_custom_call.1} parent=0
    #allocation3 [shape = 'u8[262144]{0}', space=vmem, size = 0x40000, scoped, tag = 'input window, operand 0']
    #allocation4 [shape = 's32[2]{0}', space=sflag, size = 0x8, scoped, tag = 'scoped memory for tpu_custom_call.1']
    #allocation5 [shape = 's32[2]{0}', space=sflag, size = 0x8, scoped, tag = 'scoped memory for tpu_custom_call.1']
    #allocation6 [shape = 'u8[196608]{0}', space=vmem, size = 0x30000, scoped, tag = 'input window, operand 1, single buffered']
    #allocation7 [shape = 's32[1]{0}', space=sflag, size = 0x4, scoped, tag = 'scoped memory for tpu_custom_call.1']
    #allocation8 [shape = 'u8[65536]{0}', space=vmem, size = 0x10000, scoped, tag = 'input window, operand 3, single buffered']
    #allocation9 [shape = 'u8[262144]{0}', space=vmem, size = 0x40000, scoped, tag = 'input window, operand 5, single buffered']
    #allocation10 [shape = 's32[1]{0}', space=sflag, size = 0x4, scoped, tag = 'scoped memory for tpu_custom_call.1']
    #allocation11 [shape = 'u8[262144]{0}', space=vmem, size = 0x40000, scoped, tag = 'output window, operand 0']
    %11 = vsyncpa [#allocation4], 0
    %s12 = scalar_lea.sflag [#allocation4], 1
    %13 = vsyncpa %s12, 0
    %14 = vsyncpa [#allocation7], 0
    %15 = vsyncpa [#allocation10], 0
    %16 = vsyncpa [#allocation5], 0
    %s17 = scalar_lea.sflag [#allocation5], 1
    %18 = vsyncpa %s17, 0
    loop: start=0, step=1, limit=4
    $region2: #{tpu_custom_call.1} parent=1 // loop_pre_header
      _
    $region3: #{tpu_custom_call.1} parent=1 // loop_header
      %s20 = sphi 0, %s24
      %p21 = scmp.ge.s32.totalorder %s20, 4
      %s27 = sphi 0, %s39
      %s28 = sphi 0, %s35
      %s29 = sphi 0, %s27
      %s30 = sphi 0, %s28
      %s31 = sphi 0, %s29
      %s32 = sphi 0, %s30
      %s44 = sphi 0, %s46
      %s47 = sphi 0, %s44
      %s48 = sphi 0, %s47
      %s64 = sphi 0, %s48
      %s68 = sphi 0, %s68
      %s70 = sphi 0, %s68
      %s71 = sphi 0, %s70
      %s85 = sphi 0, %s71
      %s89 = sphi 0, %s89
      %s91 = sphi 0, %s89
      %s92 = sphi 0, %s91
      %s106 = sphi 0, %s92
      %s110 = sphi 0, %s110
      %s112 = sphi 0, %s110
      %s113 = sphi 0, %s112
      %s127 = sphi 0, %s113
      %s131 = sphi 0, %s131
      %s133 = sphi 0, %s131
      %s134 = sphi 0, %s133
      %s148 = sphi 0, %s134
      %s152 = sphi 0, %s152
      %s154 = sphi 0, %s152
      %s155 = sphi 0, %s154
      %s169 = sphi 0, %s155
      %s177 = sphi 0, %s179
      %s180 = sphi 0, %s177
      %s181 = sphi 0, %s180
      %s197 = sphi 0, %s181
    $region4: #{tpu_custom_call.1} parent=1 // loop_header_branch
      %23 = sbr.rel (%p21) target = $region8
    $region5: #{tpu_custom_call.1} parent=1 // loop_body
      %s25 = ssub.s32 %s20, 1
      %s26 = ssub.s32 %s20, 2
      %s33 = sadd.s32 1, %s28
      %p34 = scmp.ge.s32.totalorder %s33, 1
      %s35 = scalar_select %p34, 0, %s33
      %s36 = sadd.s32 1, %s27
      %s37 = scalar_select %p34, %s36, %s27
      %p38 = scmp.ge.s32.totalorder %s37, 2
      %s39 = scalar_select %p38, 0, %s37
      %s40 = ssub.s32 %s27, %s39
      %s41 = ssub.s32 %s28, %s35
      %s42 = sor.u32 %s40, %s41
      %p43 = scmp.eq.s32.totalorder %s42, 0
      %s45 = sadd.s32 %s44, 1
      %s46 = scalar_select %p43, %s44, %s45
      %p49 = pneg %p43
      %p50 = scmp.eq.s32.totalorder %s20, 1
      %p51 = por %p49, %p50
      %p52 = scmp.ne.s32.totalorder %s44, %s47
      %p53 = scmp.eq.s32.totalorder %s20, 0
      %p54 = por %p52, %p53
      %p55 = scmp.ne.s32.totalorder %s44, %s47
      %p56 = scmp.eq.s32.totalorder %s25, 1
      %p57 = por %p55, %p56
      %p58 = scmp.ne.s32.totalorder %s47, %s48
      %p59 = scmp.eq.s32.totalorder %s25, 0
      %p60 = por %p58, %p59
      %p61 = scmp.ne.s32.totalorder %s47, %s48
      %p62 = scmp.eq.s32.totalorder %s26, 1
      %p63 = por %p61, %p62
      %p65 = scmp.ne.s32.totalorder %s48, %s64
      %p66 = scmp.eq.s32.totalorder %s26, 0
      %p67 = por %p65, %p66
      %s69 = sadd.s32 %s68, 1
      %p72 = scmp.eq.s32.totalorder %s20, 1
      %p73 = scmp.ne.s32.totalorder %s68, %s70
      %p74 = scmp.eq.s32.totalorder %s20, 0
      %p75 = por %p73, %p74
      %p76 = scmp.ne.s32.totalorder %s68, %s70
      %p77 = scmp.eq.s32.totalorder %s25, 1
      %p78 = por %p76, %p77
      %p79 = scmp.ne.s32.totalorder %s70, %s71
      %p80 = scmp.eq.s32.totalorder %s25, 0
      %p81 = por %p79, %p80
      %p82 = scmp.ne.s32.totalorder %s70, %s71
      %p83 = scmp.eq.s32.totalorder %s26, 1
      %p84 = por %p82, %p83
      %p86 = scmp.ne.s32.totalorder %s71, %s85
      %p87 = scmp.eq.s32.totalorder %s26, 0
      %p88 = por %p86, %p87
      %s90 = sadd.s32 %s89, 1
      %p93 = scmp.eq.s32.totalorder %s20, 1
      %p94 = scmp.ne.s32.totalorder %s89, %s91
      %p95 = scmp.eq.s32.totalorder %s20, 0
      %p96 = por %p94, %p95
      %p97 = scmp.ne.s32.totalorder %s89, %s91
      %p98 = scmp.eq.s32.totalorder %s25, 1
      %p99 = por %p97, %p98
      %p100 = scmp.ne.s32.totalorder %s91, %s92
      %p101 = scmp.eq.s32.totalorder %s25, 0
      %p102 = por %p100, %p101
      %p103 = scmp.ne.s32.totalorder %s91, %s92
      %p104 = scmp.eq.s32.totalorder %s26, 1
      %p105 = por %p103, %p104
      %p107 = scmp.ne.s32.totalorder %s92, %s106
      %p108 = scmp.eq.s32.totalorder %s26, 0
      %p109 = por %p107, %p108
      %s111 = sadd.s32 %s110, 1
      %p114 = scmp.eq.s32.totalorder %s20, 1
      %p115 = scmp.ne.s32.totalorder %s110, %s112
      %p116 = scmp.eq.s32.totalorder %s20, 0
      %p117 = por %p115, %p116
      %p118 = scmp.ne.s32.totalorder %s110, %s112
      %p119 = scmp.eq.s32.totalorder %s25, 1
      %p120 = por %p118, %p119
      %p121 = scmp.ne.s32.totalorder %s112, %s113
      %p122 = scmp.eq.s32.totalorder %s25, 0
      %p123 = por %p121, %p122
      %p124 = scmp.ne.s32.totalorder %s112, %s113
      %p125 = scmp.eq.s32.totalorder %s26, 1
      %p126 = por %p124, %p125
      %p128 = scmp.ne.s32.totalorder %s113, %s127
      %p129 = scmp.eq.s32.totalorder %s26, 0
      %p130 = por %p128, %p129
      %s132 = sadd.s32 %s131, 1
      %p135 = scmp.eq.s32.totalorder %s20, 1
      %p136 = scmp.ne.s32.totalorder %s131, %s133
      %p137 = scmp.eq.s32.totalorder %s20, 0
      %p138 = por %p136, %p137
      %p139 = scmp.ne.s32.totalorder %s131, %s133
      %p140 = scmp.eq.s32.totalorder %s25, 1
      %p141 = por %p139, %p140
      %p142 = scmp.ne.s32.totalorder %s133, %s134
      %p143 = scmp.eq.s32.totalorder %s25, 0
      %p144 = por %p142, %p143
      %p145 = scmp.ne.s32.totalorder %s133, %s134
      %p146 = scmp.eq.s32.totalorder %s26, 1
      %p147 = por %p145, %p146
      %p149 = scmp.ne.s32.totalorder %s134, %s148
      %p150 = scmp.eq.s32.totalorder %s26, 0
      %p151 = por %p149, %p150
      %s153 = sadd.s32 %s152, 1
      %p156 = scmp.eq.s32.totalorder %s20, 1
      %p157 = scmp.ne.s32.totalorder %s152, %s154
      %p158 = scmp.eq.s32.totalorder %s20, 0
      %p159 = por %p157, %p158
      %p160 = scmp.ne.s32.totalorder %s152, %s154
      %p161 = scmp.eq.s32.totalorder %s25, 1
      %p162 = por %p160, %p161
      %p163 = scmp.ne.s32.totalorder %s154, %s155
      %p164 = scmp.eq.s32.totalorder %s25, 0
      %p165 = por %p163, %p164
      %p166 = scmp.ne.s32.totalorder %s154, %s155
      %p167 = scmp.eq.s32.totalorder %s26, 1
      %p168 = por %p166, %p167
      %p170 = scmp.ne.s32.totalorder %s155, %s169
      %p171 = scmp.eq.s32.totalorder %s26, 0
      %p172 = por %p170, %p171
      %s173 = ssub.s32 %s27, %s39
      %s174 = ssub.s32 %s28, %s35
      %s175 = sor.u32 %s173, %s174
      %p176 = scmp.eq.s32.totalorder %s175, 0
      %s178 = sadd.s32 %s177, 1
      %s179 = scalar_select %p176, %s177, %s178
      %p182 = pneg %p176
      %p183 = scmp.eq.s32.totalorder %s20, 1
      %p184 = por %p182, %p183
      %p185 = scmp.ne.s32.totalorder %s177, %s180
      %p186 = scmp.eq.s32.totalorder %s20, 0
      %p187 = por %p185, %p186
      %p188 = scmp.ne.s32.totalorder %s177, %s180
      %p189 = scmp.eq.s32.totalorder %s25, 1
      %p190 = por %p188, %p189
      %p191 = scmp.ne.s32.totalorder %s180, %s181
      %p192 = scmp.eq.s32.totalorder %s25, 0
      %p193 = por %p191, %p192
      %p194 = scmp.ne.s32.totalorder %s180, %s181
      %p195 = scmp.eq.s32.totalorder %s26, 1
      %p196 = por %p194, %p195
      %p198 = scmp.ne.s32.totalorder %s181, %s197
      %p199 = scmp.eq.s32.totalorder %s26, 0
      %p200 = por %p198, %p199
      %p201 = scmp.le.s32.totalorder 1, %s20
      %p202 = scmp.lt.s32.totalorder %s20, 3
      %p203 = pnand %p201, %p202
      %p204 = pneg %p203
      // Predicated region
      $region9: #{tpu_custom_call.1} parent=5 // pred_check
        _
      $region10: #{tpu_custom_call.1} parent=5 // pred_check_branch
        %206 = sbr.rel (%p203) target = $region12
      $region11: #{tpu_custom_call.1} parent=5 // pred_region
        %s207 = ssub.s32 %s20, 1
        // Predicated region
        $region13: #{tpu_custom_call.1} parent=11 // pred_check
          %p208 = pneg %p81
        $region14: #{tpu_custom_call.1} parent=11 // pred_check_branch
          %210 = sbr.rel (%p208) target = $region16
        $region15: #{tpu_custom_call.1} parent=11 // pred_region
          %s212 = ssub.s32 6144, 6144
          %213 = vsyncadd [#allocation7], %s212
          %s214 = sshll.u32 [#allocation6], 4
          %s215 = int_to_ptr.vmem [resolvable:$true] %s214
          %220 = dma.hbm_to_vmem [thread:$0]  %s1, 6144, %s215, [#allocation7], 384, 384, 24
        $region16: #{tpu_custom_call.1} parent=11 // pred_fallthru
          _
        // Predicated region
        $region17: #{tpu_custom_call.1} parent=11 // pred_check
          %p221 = pneg %p102
        $region18: #{tpu_custom_call.1} parent=11 // pred_check_branch
          %223 = sbr.rel (%p221) target = $region20
        $region19: #{tpu_custom_call.1} parent=11 // pred_region
          _
        $region20: #{tpu_custom_call.1} parent=11 // pred_fallthru
          _
        // Predicated region
        $region21: #{tpu_custom_call.1} parent=11 // pred_check
          %p224 = pneg %p123
        $region22: #{tpu_custom_call.1} parent=11 // pred_check_branch
          %226 = sbr.rel (%p224) target = $region24
        $region23: #{tpu_custom_call.1} parent=11 // pred_region
          %s228 = ssub.s32 2048, 2048
          %229 = vsyncadd [#allocation7], %s228
          %s230 = sshll.u32 [#allocation8], 4
          %s231 = int_to_ptr.vmem [resolvable:$true] %s230
          %236 = dma.hbm_to_vmem [thread:$0]  %s3, 2048, %s231, [#allocation7], 128, 128, 8
        $region24: #{tpu_custom_call.1} parent=11 // pred_fallthru
          _
        // Predicated region
        $region25: #{tpu_custom_call.1} parent=11 // pred_check
          %p237 = pneg %p144
        $region26: #{tpu_custom_call.1} parent=11 // pred_check_branch
          %239 = sbr.rel (%p237) target = $region28
        $region27: #{tpu_custom_call.1} parent=11 // pred_region
          _
        $region28: #{tpu_custom_call.1} parent=11 // pred_fallthru
          _
        // Predicated region
        $region29: #{tpu_custom_call.1} parent=11 // pred_check
          %p240 = pneg %p165
        $region30: #{tpu_custom_call.1} parent=11 // pred_check_branch
          %242 = sbr.rel (%p240) target = $region32
        $region31: #{tpu_custom_call.1} parent=11 // pred_region
          %s244 = ssub.s32 8192, 8192
          %245 = vsyncadd [#allocation10], %s244
          %s246 = sshll.u32 [#allocation9], 4
          %s247 = int_to_ptr.vmem [resolvable:$true] %s246
          %252 = dma.hbm_to_vmem [thread:$0]  %s5, 8192, %s247, [#allocation10], 256, 256, 16
        $region32: #{tpu_custom_call.1} parent=11 // pred_fallthru
          _
      $region12: #{tpu_custom_call.1} parent=5 // pred_fallthru
        _
      %p253 = scmp.lt.s32.totalorder %s20, 2
      // Predicated region
      $region33: #{tpu_custom_call.1} parent=5 // pred_check
        %p254 = pneg %p253
      $region34: #{tpu_custom_call.1} parent=5 // pred_check_branch
        %256 = sbr.rel (%p254) target = $region36
      $region35: #{tpu_custom_call.1} parent=5 // pred_region
        // Predicated region
        $region37: #{tpu_custom_call.1} parent=35 // pred_check
          %p257 = pneg %p54
        $region38: #{tpu_custom_call.1} parent=35 // pred_check_branch
          %259 = sbr.rel (%p257) target = $region40
        $region39: #{tpu_custom_call.1} parent=35 // pred_region
          %s260 = sand.u32 %s44, 1
          %s261 = scalar_lea.sflag [#allocation4], %s260
          %s262 = sand.u32 %s44, 1
          %s263 = smul.addr %s262, 256
          %s264 = scalar_lea.vmem [#allocation3], %s263
          %s265 = smul.u32 32, %s28
          %s267 = ssub.s32 4096, 4096
          %268 = vsyncadd %s261, %s267
          %s269 = smul.addr %s27, 32
          %s270 = sadd.s32 %s265, %s269
          %s271 = smul.addr %s270, 128
          %s272 = scalar_lea.hbm %s0, %s271
          %s273 = sshll.u32 %s264, 4
          %s274 = int_to_ptr.vmem [resolvable:$true] %s273
          %279 = dma.hbm_to_vmem [thread:$0]  %s272, 4096, %s274, %s261, 128, 128, 8
        $region40: #{tpu_custom_call.1} parent=35 // pred_fallthru
          _
      $region36: #{tpu_custom_call.1} parent=5 // pred_fallthru
        _
      %p280 = scmp.le.s32.totalorder 1, %s20
      %p281 = scmp.lt.s32.totalorder %s20, 3
      %p282 = pnand %p280, %p281
      %p283 = pneg %p282
      // Predicated region
      $region41: #{tpu_custom_call.1} parent=5 // pred_check
        _
      $region42: #{tpu_custom_call.1} parent=5 // pred_check_branch
        %285 = sbr.rel (%p282) target = $region44
      $region43: #{tpu_custom_call.1} parent=5 // pred_region
        %s286 = ssub.s32 %s20, 1
        %s287 = sand.u32 %s47, 1
        %s288 = scalar_lea.sflag [#allocation4], %s287
        %s289 = sand.u32 %s47, 1
        %s290 = smul.addr %s289, 256
        %s291 = scalar_lea.vmem [#allocation3], %s290
        // Predicated region
        $region45: #{tpu_custom_call.1} parent=43 // pred_check
          %p292 = pneg %p60
        $region46: #{tpu_custom_call.1} parent=43 // pred_check_branch
          %294 = sbr.rel (%p292) target = $region48
        $region47: #{tpu_custom_call.1} parent=43 // pred_region
          %295 = dma.done %s288, 4096
        $region48: #{tpu_custom_call.1} parent=43 // pred_fallthru
          _
        // Predicated region
        $region49: #{tpu_custom_call.1} parent=43 // pred_check
          %p296 = pneg %p81
        $region50: #{tpu_custom_call.1} parent=43 // pred_check_branch
          %298 = sbr.rel (%p296) target = $region52
        $region51: #{tpu_custom_call.1} parent=43 // pred_region
          %299 = dma.done [#allocation7], 6144
        $region52: #{tpu_custom_call.1} parent=43 // pred_fallthru
          _
        // Predicated region
        $region53: #{tpu_custom_call.1} parent=43 // pred_check
          %p300 = pneg %p123
        $region54: #{tpu_custom_call.1} parent=43 // pred_check_branch
          %302 = sbr.rel (%p300) target = $region56
        $region55: #{tpu_custom_call.1} parent=43 // pred_region
          %303 = dma.done [#allocation7], 2048
        $region56: #{tpu_custom_call.1} parent=43 // pred_fallthru
          _
        // Predicated region
        $region57: #{tpu_custom_call.1} parent=43 // pred_check
          %p304 = pneg %p165
        $region58: #{tpu_custom_call.1} parent=43 // pred_check_branch
          %306 = sbr.rel (%p304) target = $region60
        $region59: #{tpu_custom_call.1} parent=43 // pred_region
          %307 = dma.done [#allocation10], 8192
        $region60: #{tpu_custom_call.1} parent=43 // pred_fallthru
          _
        %s308 = sand.u32 %s47, 1
        %s309 = scalar_lea.sflag [#allocation4], %s308
        %s310 = sand.u32 %s47, 1
        %s311 = smul.addr %s310, 256
        %s312 = scalar_lea.vmem [#allocation3], %s311
        %p313 = pneg %p60
        %p314 = pneg %p57
        %p315 = pneg %p81
        %p316 = pneg %p78
        %p317 = pneg %p102
        %p318 = pneg %p99
        %p319 = pneg %p123
        %p320 = pneg %p120
        %p321 = pneg %p144
        %p322 = pneg %p141
        %p323 = pneg %p165
        %p324 = pneg %p162
        %p325 = pneg %p193
        %p326 = pneg %p190
        %s327 = sand.u32 %s180, 1
        %s328 = scalar_lea.sflag [#allocation5], %s327
        %s329 = sand.u32 %s180, 1
        %s330 = smul.addr %s329, 256
        %s331 = scalar_lea.vmem [#allocation11], %s330
        %s332 = smul.u32 32, %s30
        %s333 = smul.u32 32, %s30
        %p334 = scmp.eq.s32.totalorder %s30, 0
        // Predicated region
        $region61: #{tpu_custom_call.1} parent=43 // pred_check
          %p335 = pneg %p334
        $region62: #{tpu_custom_call.1} parent=43 // pred_check_branch
          %337 = sbr.rel (%p335) target = $region64
        $region63: #{tpu_custom_call.1} parent=43 // pred_region
          %338 = vst [vmem:[#allocation2] sm:$0x1] 0.0
        $region64: #{tpu_custom_call.1} parent=43 // pred_fallthru
          _
        %v339 = vld [vmem:[%s291] sm:$0xff]
        %v340 = vld [vmem:[%s291 + $0x8] sm:$0xff]
        %v341 = vld [vmem:[%s291 + $0x10] sm:$0xff]
        %v342 = vld [vmem:[%s291 + $0x18] sm:$0xff]
        %v343 = vld [vmem:[%s291 + $0x20] sm:$0xff]
        %v344 = vld [vmem:[%s291 + $0x28] sm:$0xff]
        %v345 = vld [vmem:[%s291 + $0x30] sm:$0xff]
        %v346 = vld [vmem:[%s291 + $0x38] sm:$0xff]
        %v347 = vld [vmem:[%s291 + $0x40] sm:$0xff]
        %v348 = vld [vmem:[%s291 + $0x48] sm:$0xff]
        %v349 = vld [vmem:[%s291 + $0x50] sm:$0xff]
        %v350 = vld [vmem:[%s291 + $0x58] sm:$0xff]
        %v351 = vld [vmem:[%s291 + $0x60] sm:$0xff]
        %v352 = vld [vmem:[%s291 + $0x68] sm:$0xff]
        %v353 = vld [vmem:[%s291 + $0x70] sm:$0xff]
        %v354 = vld [vmem:[%s291 + $0x78] sm:$0xff]
        %v355 = vld [vmem:[%s291 + $0x80] sm:$0xff]
        %v356 = vld [vmem:[%s291 + $0x88] sm:$0xff]
        %v357 = vld [vmem:[%s291 + $0x90] sm:$0xff]
        %v358 = vld [vmem:[%s291 + $0x98] sm:$0xff]
        %v359 = vld [vmem:[%s291 + $0xa0] sm:$0xff]
        %v360 = vld [vmem:[%s291 + $0xa8] sm:$0xff]
        %v361 = vld [vmem:[%s291 + $0xb0] sm:$0xff]
        %v362 = vld [vmem:[%s291 + $0xb8] sm:$0xff]
        %v363 = vld [vmem:[%s291 + $0xc0] sm:$0xff]
        %v364 = vld [vmem:[%s291 + $0xc8] sm:$0xff]
        %v365 = vld [vmem:[%s291 + $0xd0] sm:$0xff]
        %v366 = vld [vmem:[%s291 + $0xd8] sm:$0xff]
        %v367 = vld [vmem:[%s291 + $0xe0] sm:$0xff]
        %v368 = vld [vmem:[%s291 + $0xe8] sm:$0xff]
        %v369 = vld [vmem:[%s291 + $0xf0] sm:$0xff]
        %v370 = vld [vmem:[%s291 + $0xf8] sm:$0xff]
        %v371 = vld [vmem:[#allocation6] sm:$0xff]
        %v372 = vld [vmem:[#allocation6 + $0x8] sm:$0xff]
        %v373 = vld [vmem:[#allocation6 + $0x10] sm:$0xff]
        %v374 = vld [vmem:[#allocation6 + $0x18] sm:$0xff]
        %v375 = vld [vmem:[#allocation6 + $0x20] sm:$0xff]
        %v376 = vld [vmem:[#allocation6 + $0x28] sm:$0xff]
        %v377 = vld [vmem:[#allocation6 + $0x30] sm:$0xff]
        %v378 = vld [vmem:[#allocation6 + $0x38] sm:$0xff]
        %v379 = vld [vmem:[#allocation6 + $0x40] sm:$0xff]
        %v380 = vld [vmem:[#allocation6 + $0x48] sm:$0xff]
        %v381 = vld [vmem:[#allocation6 + $0x50] sm:$0xff]
        %v382 = vld [vmem:[#allocation6 + $0x58] sm:$0xff]
        %v383 = vld [vmem:[#allocation6 + $0x60] sm:$0xff]
        %v384 = vld [vmem:[#allocation6 + $0x68] sm:$0xff]
        %v385 = vld [vmem:[#allocation6 + $0x70] sm:$0xff]
        %v386 = vld [vmem:[#allocation6 + $0x78] sm:$0xff]
        %v387 = vld [vmem:[#allocation6 + $0x80] sm:$0xff]
        %v388 = vld [vmem:[#allocation6 + $0x88] sm:$0xff]
        %v389 = vld [vmem:[#allocation6 + $0x90] sm:$0xff]
        %v390 = vld [vmem:[#allocation6 + $0x98] sm:$0xff]
        %v391 = vld [vmem:[#allocation6 + $0xa0] sm:$0xff]
        %v392 = vld [vmem:[#allocation6 + $0xa8] sm:$0xff]
        %v393 = vld [vmem:[#allocation6 + $0xb0] sm:$0xff]
        %v394 = vld [vmem:[#allocation6 + $0xb8] sm:$0xff]
        %v395 = vld [vmem:[#allocation6 + $0xc0] sm:$0xff]
        %v396 = vld [vmem:[#allocation6 + $0xc8] sm:$0xff]
        %v397 = vld [vmem:[#allocation6 + $0xd0] sm:$0xff]
        %v398 = vld [vmem:[#allocation6 + $0xd8] sm:$0xff]
        %v399 = vld [vmem:[#allocation6 + $0xe0] sm:$0xff]
        %v400 = vld [vmem:[#allocation6 + $0xe8] sm:$0xff]
        %v401 = vld [vmem:[#allocation6 + $0xf0] sm:$0xff]
        %v402 = vld [vmem:[#allocation6 + $0xf8] sm:$0xff]
        %v403 = vld [vmem:[#allocation6 + $0x100] sm:$0xff]
        %v404 = vld [vmem:[#allocation6 + $0x108] sm:$0xff]
        %v405 = vld [vmem:[#allocation6 + $0x110] sm:$0xff]
        %v406 = vld [vmem:[#allocation6 + $0x118] sm:$0xff]
        %v407 = vld [vmem:[#allocation6 + $0x120] sm:$0xff]
        %v408 = vld [vmem:[#allocation6 + $0x128] sm:$0xff]
        %v409 = vld [vmem:[#allocation6 + $0x130] sm:$0xff]
        %v410 = vld [vmem:[#allocation6 + $0x138] sm:$0xff]
        %v411 = vld [vmem:[#allocation6 + $0x140] sm:$0xff]
        %v412 = vld [vmem:[#allocation6 + $0x148] sm:$0xff]
        %v413 = vld [vmem:[#allocation6 + $0x150] sm:$0xff]
        %v414 = vld [vmem:[#allocation6 + $0x158] sm:$0xff]
        %v415 = vld [vmem:[#allocation6 + $0x160] sm:$0xff]
        %v416 = vld [vmem:[#allocation6 + $0x168] sm:$0xff]
        %v417 = vld [vmem:[#allocation6 + $0x170] sm:$0xff]
        %v418 = vld [vmem:[#allocation6 + $0x178] sm:$0xff]
        %v419 = vld [vmem:[%s2] sm:$0x7]
        %v421 = vlaneseq
        %v422 = vshrl.u32 %v421, 7
        %v423 = vsub.s32 0, %v422
        %v424 = vrot.slane %v419, %v423
        %v425 = vlaneseq
        %v426 = vshrl.u32 %v425, 7
        %v427 = vsub.s32 1, %v426
        %v428 = vrot.slane %v419, %v427
        %v429 = vlaneseq
        %v430 = vshrl.u32 %v429, 7
        %v431 = vsub.s32 2, %v430
        %v432 = vrot.slane %v419, %v431
        %436 = vmatprep.subr.mxu0 %v417
        %437 = vmatpush1.msra.mxu0 %v416
        %438 = vmatprep.subr.mxu0 %v414
        %439 = vmatpush1.msra.mxu0 %v413
        %440 = vmatprep.subr.mxu0 %v411
        %441 = vmatpush1.msra.mxu0 %v410
        %442 = vmatprep.subr.mxu0 %v408
        %443 = vmatpush1.msra.mxu0 %v407
        %444 = vmatprep.subr.mxu0 %v405
        %445 = vmatpush1.msra.mxu0 %v404
        %446 = vmatprep.subr.mxu0 %v402
        %447 = vmatpush1.msra.mxu0 %v401
        %448 = vmatprep.subr.mxu0 %v399
        %449 = vmatpush1.msra.mxu0 %v398
        %450 = vmatprep.subr.mxu0 %v396
        %451 = vmatpush1.msra.mxu0 %v395
        %452 = vmatprep.subr.mxu0 %v393
        %453 = vmatpush1.msra.mxu0 %v392
        %454 = vmatprep.subr.mxu0 %v390
        %455 = vmatpush1.msra.mxu0 %v389
        %456 = vmatprep.subr.mxu0 %v387
        %457 = vmatpush1.msra.mxu0 %v386
        %458 = vmatprep.subr.mxu0 %v384
        %459 = vmatpush1.msra.mxu0 %v383
        %460 = vmatprep.subr.mxu0 %v381
        %461 = vmatpush1.msra.mxu0 %v380
        %462 = vmatprep.subr.mxu0 %v378
        %463 = vmatpush1.msra.mxu0 %v377
        %464 = vmatprep.subr.mxu0 %v375
        %465 = vmatpush1.msra.mxu0 %v374
        %466 = vmatprep.subr.mxu0 %v372
        %467 = vmatpush1.msra.mxu0 %v371
        %468 = vmatprep.subr.mxu0 0.0
        %469 = vmatpush2.msra.mxu0 0.0
        %470 = vmatprep.subr.mxu0 0.0
        %471 = vmatpush2.msra.mxu0 0.0
        %472 = vmatprep.subr.mxu0 0.0
        %473 = vmatpush2.msra.mxu0 0.0
        %474 = vmatprep.subr.mxu0 0.0
        %475 = vmatpush2.msra.mxu0 0.0
        %476 = vmatprep.subr.mxu0 0.0
        %477 = vmatpush2.msra.mxu0 0.0
        %478 = vmatprep.subr.mxu0 0.0
        %479 = vmatpush2.msra.mxu0 0.0
        %480 = vmatprep.subr.mxu0 0.0
        %481 = vmatpush2.msra.mxu0 0.0
        %482 = vmatprep.subr.mxu0 0.0
        %483 = vmatpush2.msra.mxu0 0.0
        %484 = vmatprep.subr.mxu0 0.0
        %485 = vmatpush2.msra.mxu0 0.0
        %486 = vmatprep.subr.mxu0 0.0
        %487 = vmatpush2.msra.mxu0 0.0
        %488 = vmatprep.subr.mxu0 0.0
        %489 = vmatpush2.msra.mxu0 0.0
        %490 = vmatprep.subr.mxu0 0.0
        %491 = vmatpush2.msra.mxu0 0.0
        %492 = vmatprep.subr.mxu0 0.0
        %493 = vmatpush2.msra.mxu0 0.0
        %494 = vmatprep.subr.mxu0 0.0
        %495 = vmatpush2.msra.mxu0 0.0
        %496 = vmatprep.subr.mxu0 0.0
        %497 = vmatpush2.msra.mxu0 0.0
        %498 = vmatprep.subr.mxu0 0.0
        %499 = vmatpush2.msra.mxu0 0.0
        %500 = vmatprep.mubr.f32.mxu0 0.0
        %501 = vmatmul.mubr.f32.gmra.mxu0 %v339
        %v502 = vpop.f32.mrf.mxu0
        %v503 = vadd.f32 %v424, %v502
        %v504 = vpop.f32.mrf.mxu0
        %v505 = vadd.f32 %v428, %v504
        %506 = vmatprep.mubr.f32.mxu0 0.0
        %507 = vmatmul.mubr.f32.gmra.mxu0 %v340
        %v508 = vpop.f32.mrf.mxu0
        %v509 = vadd.f32 %v424, %v508
        %v510 = vpop.f32.mrf.mxu0
        %v511 = vadd.f32 %v428, %v510
        %512 = vmatprep.mubr.f32.mxu0 0.0
        %513 = vmatmul.mubr.f32.gmra.mxu0 %v341
        %v514 = vpop.f32.mrf.mxu0
        %v515 = vadd.f32 %v424, %v514
        %v516 = vpop.f32.mrf.mxu0
        %v517 = vadd.f32 %v428, %v516
        %518 = vmatprep.mubr.f32.mxu0 0.0
        %519 = vmatmul.mubr.f32.gmra.mxu0 %v342
        %v520 = vpop.f32.mrf.mxu0
        %v521 = vadd.f32 %v424, %v520
        %v522 = vpop.f32.mrf.mxu0
        %v523 = vadd.f32 %v428, %v522
        %524 = vmatprep.mubr.f32.mxu0 0.0
        %525 = vmatmul.mubr.f32.gmra.mxu0 %v343
        %v526 = vpop.f32.mrf.mxu0
        %v527 = vadd.f32 %v424, %v526
        %v528 = vpop.f32.mrf.mxu0
        %v529 = vadd.f32 %v428, %v528
        %530 = vmatprep.mubr.f32.mxu0 0.0
        %531 = vmatmul.mubr.f32.gmra.mxu0 %v344
        %v532 = vpop.f32.mrf.mxu0
        %v533 = vadd.f32 %v424, %v532
        %v534 = vpop.f32.mrf.mxu0
        %v535 = vadd.f32 %v428, %v534
        %536 = vmatprep.mubr.f32.mxu0 0.0
        %537 = vmatmul.mubr.f32.gmra.mxu0 %v345
        %v538 = vpop.f32.mrf.mxu0
        %v539 = vadd.f32 %v424, %v538
        %v540 = vpop.f32.mrf.mxu0
        %v541 = vadd.f32 %v428, %v540
        %542 = vmatprep.mubr.f32.mxu0 0.0
        %543 = vmatmul.mubr.f32.gmra.mxu0 %v346
        %v544 = vpop.f32.mrf.mxu0
        %v545 = vadd.f32 %v424, %v544
        %v546 = vpop.f32.mrf.mxu0
        %v547 = vadd.f32 %v428, %v546
        %548 = vmatprep.mubr.f32.mxu0 0.0
        %549 = vmatmul.mubr.f32.gmra.mxu0 %v347
        %v550 = vpop.f32.mrf.mxu0
        %v551 = vadd.f32 %v424, %v550
        %v552 = vpop.f32.mrf.mxu0
        %v553 = vadd.f32 %v428, %v552
        %554 = vmatprep.mubr.f32.mxu0 0.0
        %555 = vmatmul.mubr.f32.gmra.mxu0 %v348
        %v556 = vpop.f32.mrf.mxu0
        %v557 = vadd.f32 %v424, %v556
        %v558 = vpop.f32.mrf.mxu0
        %v559 = vadd.f32 %v428, %v558
        %560 = vmatprep.mubr.f32.mxu0 0.0
        %561 = vmatmul.mubr.f32.gmra.mxu0 %v349
        %v562 = vpop.f32.mrf.mxu0
        %v563 = vadd.f32 %v424, %v562
        %v564 = vpop.f32.mrf.mxu0
        %v565 = vadd.f32 %v428, %v564
        %566 = vmatprep.mubr.f32.mxu0 0.0
        %567 = vmatmul.mubr.f32.gmra.mxu0 %v350
        %v568 = vpop.f32.mrf.mxu0
        %v569 = vadd.f32 %v424, %v568
        %v570 = vpop.f32.mrf.mxu0
        %v571 = vadd.f32 %v428, %v570
        %572 = vmatprep.mubr.f32.mxu0 0.0
        %573 = vmatmul.mubr.f32.gmra.mxu0 %v351
        %v574 = vpop.f32.mrf.mxu0
        %v575 = vadd.f32 %v424, %v574
        %v576 = vpop.f32.mrf.mxu0
        %v577 = vadd.f32 %v428, %v576
        %578 = vmatprep.mubr.f32.mxu0 0.0
        %579 = vmatmul.mubr.f32.gmra.mxu0 %v352
        %v580 = vpop.f32.mrf.mxu0
        %v581 = vadd.f32 %v424, %v580
        %v582 = vpop.f32.mrf.mxu0
        %v583 = vadd.f32 %v428, %v582
        %584 = vmatprep.mubr.f32.mxu0 0.0
        %585 = vmatmul.mubr.f32.gmra.mxu0 %v353
        %v586 = vpop.f32.mrf.mxu0
        %v587 = vadd.f32 %v424, %v586
        %v588 = vpop.f32.mrf.mxu0
        %v589 = vadd.f32 %v428, %v588
        %590 = vmatprep.mubr.f32.mxu0 0.0
        %591 = vmatmul.mubr.f32.gmra.mxu0 %v354
        %v592 = vpop.f32.mrf.mxu0
        %v593 = vadd.f32 %v424, %v592
        %v594 = vpop.f32.mrf.mxu0
        %v595 = vadd.f32 %v428, %v594
        %596 = vmatprep.mubr.f32.mxu0 0.0
        %597 = vmatmul.mubr.f32.gmra.mxu0 %v355
        %v598 = vpop.f32.mrf.mxu0
        %v599 = vadd.f32 %v424, %v598
        %v600 = vpop.f32.mrf.mxu0
        %v601 = vadd.f32 %v428, %v600
        %602 = vmatprep.mubr.f32.mxu0 0.0
        %603 = vmatmul.mubr.f32.gmra.mxu0 %v356
        %v604 = vpop.f32.mrf.mxu0
        %v605 = vadd.f32 %v424, %v604
        %v606 = vpop.f32.mrf.mxu0
        %v607 = vadd.f32 %v428, %v606
        %608 = vmatprep.mubr.f32.mxu0 0.0
        %609 = vmatmul.mubr.f32.gmra.mxu0 %v357
        %v610 = vpop.f32.mrf.mxu0
        %v611 = vadd.f32 %v424, %v610
        %v612 = vpop.f32.mrf.mxu0
        %v613 = vadd.f32 %v428, %v612
        %614 = vmatprep.mubr.f32.mxu0 0.0
        %615 = vmatmul.mubr.f32.gmra.mxu0 %v358
        %v616 = vpop.f32.mrf.mxu0
        %v617 = vadd.f32 %v424, %v616
        %v618 = vpop.f32.mrf.mxu0
        %v619 = vadd.f32 %v428, %v618
        %620 = vmatprep.mubr.f32.mxu0 0.0
        %621 = vmatmul.mubr.f32.gmra.mxu0 %v359
        %v622 = vpop.f32.mrf.mxu0
        %v623 = vadd.f32 %v424, %v622
        %v624 = vpop.f32.mrf.mxu0
        %v625 = vadd.f32 %v428, %v624
        %626 = vmatprep.mubr.f32.mxu0 0.0
        %627 = vmatmul.mubr.f32.gmra.mxu0 %v360
        %v628 = vpop.f32.mrf.mxu0
        %v629 = vadd.f32 %v424, %v628
        %v630 = vpop.f32.mrf.mxu0
        %v631 = vadd.f32 %v428, %v630
        %632 = vmatprep.mubr.f32.mxu0 0.0
        %633 = vmatmul.mubr.f32.gmra.mxu0 %v361
        %v634 = vpop.f32.mrf.mxu0
        %v635 = vadd.f32 %v424, %v634
        %v636 = vpop.f32.mrf.mxu0
        %v637 = vadd.f32 %v428, %v636
        %638 = vmatprep.mubr.f32.mxu0 0.0
        %639 = vmatmul.mubr.f32.gmra.mxu0 %v362
        %v640 = vpop.f32.mrf.mxu0
        %v641 = vadd.f32 %v424, %v640
        %v642 = vpop.f32.mrf.mxu0
        %v643 = vadd.f32 %v428, %v642
        %644 = vmatprep.mubr.f32.mxu0 0.0
        %645 = vmatmul.mubr.f32.gmra.mxu0 %v363
        %v646 = vpop.f32.mrf.mxu0
        %v647 = vadd.f32 %v424, %v646
        %v648 = vpop.f32.mrf.mxu0
        %v649 = vadd.f32 %v428, %v648
        %650 = vmatprep.mubr.f32.mxu0 0.0
        %651 = vmatmul.mubr.f32.gmra.mxu0 %v364
        %v652 = vpop.f32.mrf.mxu0
        %v653 = vadd.f32 %v424, %v652
        %v654 = vpop.f32.mrf.mxu0
        %v655 = vadd.f32 %v428, %v654
        %656 = vmatprep.mubr.f32.mxu0 0.0
        %657 = vmatmul.mubr.f32.gmra.mxu0 %v365
        %v658 = vpop.f32.mrf.mxu0
        %v659 = vadd.f32 %v424, %v658
        %v660 = vpop.f32.mrf.mxu0
        %v661 = vadd.f32 %v428, %v660
        %662 = vmatprep.mubr.f32.mxu0 0.0
        %663 = vmatmul.mubr.f32.gmra.mxu0 %v366
        %v664 = vpop.f32.mrf.mxu0
        %v665 = vadd.f32 %v424, %v664
        %v666 = vpop.f32.mrf.mxu0
        %v667 = vadd.f32 %v428, %v666
        %668 = vmatprep.mubr.f32.mxu0 0.0
        %669 = vmatmul.mubr.f32.gmra.mxu0 %v367
        %v670 = vpop.f32.mrf.mxu0
        %v671 = vadd.f32 %v424, %v670
        %v672 = vpop.f32.mrf.mxu0
        %v673 = vadd.f32 %v428, %v672
        %674 = vmatprep.mubr.f32.mxu0 0.0
        %675 = vmatmul.mubr.f32.gmra.mxu0 %v368
        %v676 = vpop.f32.mrf.mxu0
        %v677 = vadd.f32 %v424, %v676
        %v678 = vpop.f32.mrf.mxu0
        %v679 = vadd.f32 %v428, %v678
        %680 = vmatprep.mubr.f32.mxu0 0.0
        %681 = vmatmul.mubr.f32.gmra.mxu0 %v369
        %v682 = vpop.f32.mrf.mxu0
        %v683 = vadd.f32 %v424, %v682
        %v684 = vpop.f32.mrf.mxu0
        %v685 = vadd.f32 %v428, %v684
        %686 = vmatprep.mubr.f32.mxu0 0.0
        %687 = vmatmul.mubr.f32.gmra.mxu0 %v370
        %v688 = vpop.f32.mrf.mxu0
        %v689 = vadd.f32 %v424, %v688
        %v690 = vpop.f32.mrf.mxu0
        %v691 = vadd.f32 %v428, %v690
        %692 = vdwg.mxu0
        %693 = vmatprep.subr.mxu0 0.0
        %694 = vmatpush1.msra.mxu0 %v418
        %695 = vmatprep.subr.mxu0 0.0
        %696 = vmatpush1.msra.mxu0 %v415
        %697 = vmatprep.subr.mxu0 0.0
        %698 = vmatpush1.msra.mxu0 %v412
        %699 = vmatprep.subr.mxu0 0.0
        %700 = vmatpush1.msra.mxu0 %v409
        %701 = vmatprep.subr.mxu0 0.0
        %702 = vmatpush1.msra.mxu0 %v406
        %703 = vmatprep.subr.mxu0 0.0
        %704 = vmatpush1.msra.mxu0 %v403
        %705 = vmatprep.subr.mxu0 0.0
        %706 = vmatpush1.msra.mxu0 %v400
        %707 = vmatprep.subr.mxu0 0.0
        %708 = vmatpush1.msra.mxu0 %v397
        %709 = vmatprep.subr.mxu0 0.0
        %710 = vmatpush1.msra.mxu0 %v394
        %711 = vmatprep.subr.mxu0 0.0
        %712 = vmatpush1.msra.mxu0 %v391
        %713 = vmatprep.subr.mxu0 0.0
        %714 = vmatpush1.msra.mxu0 %v388
        %715 = vmatprep.subr.mxu0 0.0
        %716 = vmatpush1.msra.mxu0 %v385
        %717 = vmatprep.subr.mxu0 0.0
        %718 = vmatpush1.msra.mxu0 %v382
        %719 = vmatprep.subr.mxu0 0.0
        %720 = vmatpush1.msra.mxu0 %v379
        %721 = vmatprep.subr.mxu0 0.0
        %722 = vmatpush1.msra.mxu0 %v376
        %723 = vmatprep.subr.mxu0 0.0
        %724 = vmatpush1.msra.mxu0 %v373
        %725 = vmatprep.subr.mxu0 0.0
        %726 = vmatpush2.msra.mxu0 0.0
        %727 = vmatprep.subr.mxu0 0.0
        %728 = vmatpush2.msra.mxu0 0.0
        %729 = vmatprep.subr.mxu0 0.0
        %730 = vmatpush2.msra.mxu0 0.0
        %731 = vmatprep.subr.mxu0 0.0
        %732 = vmatpush2.msra.mxu0 0.0
        %733 = vmatprep.subr.mxu0 0.0
        %734 = vmatpush2.msra.mxu0 0.0
        %735 = vmatprep.subr.mxu0 0.0
        %736 = vmatpush2.msra.mxu0 0.0
        %737 = vmatprep.subr.mxu0 0.0
        %738 = vmatpush2.msra.mxu0 0.0
        %739 = vmatprep.subr.mxu0 0.0
        %740 = vmatpush2.msra.mxu0 0.0
        %741 = vmatprep.subr.mxu0 0.0
        %742 = vmatpush2.msra.mxu0 0.0
        %743 = vmatprep.subr.mxu0 0.0
        %744 = vmatpush2.msra.mxu0 0.0
        %745 = vmatprep.subr.mxu0 0.0
        %746 = vmatpush2.msra.mxu0 0.0
        %747 = vmatprep.subr.mxu0 0.0
        %748 = vmatpush2.msra.mxu0 0.0
        %749 = vmatprep.subr.mxu0 0.0
        %750 = vmatpush2.msra.mxu0 0.0
        %751 = vmatprep.subr.mxu0 0.0
        %752 = vmatpush2.msra.mxu0 0.0
        %753 = vmatprep.subr.mxu0 0.0
        %754 = vmatpush2.msra.mxu0 0.0
        %755 = vmatprep.subr.mxu0 0.0
        %756 = vmatpush2.msra.mxu0 0.0
        %757 = vmatprep.mubr.f32.mxu0 0.0
        %758 = vmatmul.mubr.f32.gmra.mxu0 %v339
        %v759 = vpop.f32.mrf.mxu0
        %v760 = vadd.f32 %v432, %v759
        %v761 = vpop.f32.mrf.mxu0
        %762 = vmatprep.mubr.f32.mxu0 0.0
        %763 = vmatmul.mubr.f32.gmra.mxu0 %v340
        %v764 = vpop.f32.mrf.mxu0
        %v765 = vadd.f32 %v432, %v764
        %v766 = vpop.f32.mrf.mxu0
        %767 = vmatprep.mubr.f32.mxu0 0.0
        %768 = vmatmul.mubr.f32.gmra.mxu0 %v341
        %v769 = vpop.f32.mrf.mxu0
        %v770 = vadd.f32 %v432, %v769
        %v771 = vpop.f32.mrf.mxu0
        %772 = vmatprep.mubr.f32.mxu0 0.0
        %773 = vmatmul.mubr.f32.gmra.mxu0 %v342
        %v774 = vpop.f32.mrf.mxu0
        %v775 = vadd.f32 %v432, %v774
        %v776 = vpop.f32.mrf.mxu0
        %777 = vmatprep.mubr.f32.mxu0 0.0
        %778 = vmatmul.mubr.f32.gmra.mxu0 %v343
        %v779 = vpop.f32.mrf.mxu0
        %v780 = vadd.f32 %v432, %v779
        %v781 = vpop.f32.mrf.mxu0
        %782 = vmatprep.mubr.f32.mxu0 0.0
        %783 = vmatmul.mubr.f32.gmra.mxu0 %v344
        %v784 = vpop.f32.mrf.mxu0
        %v785 = vadd.f32 %v432, %v784
        %v786 = vpop.f32.mrf.mxu0
        %787 = vmatprep.mubr.f32.mxu0 0.0
        %788 = vmatmul.mubr.f32.gmra.mxu0 %v345
        %v789 = vpop.f32.mrf.mxu0
        %v790 = vadd.f32 %v432, %v789
        %v791 = vpop.f32.mrf.mxu0
        %792 = vmatprep.mubr.f32.mxu0 0.0
        %793 = vmatmul.mubr.f32.gmra.mxu0 %v346
        %v794 = vpop.f32.mrf.mxu0
        %v795 = vadd.f32 %v432, %v794
        %v796 = vpop.f32.mrf.mxu0
        %797 = vmatprep.mubr.f32.mxu0 0.0
        %798 = vmatmul.mubr.f32.gmra.mxu0 %v347
        %v799 = vpop.f32.mrf.mxu0
        %v800 = vadd.f32 %v432, %v799
        %v801 = vpop.f32.mrf.mxu0
        %802 = vmatprep.mubr.f32.mxu0 0.0
        %803 = vmatmul.mubr.f32.gmra.mxu0 %v348
        %v804 = vpop.f32.mrf.mxu0
        %v805 = vadd.f32 %v432, %v804
        %v806 = vpop.f32.mrf.mxu0
        %807 = vmatprep.mubr.f32.mxu0 0.0
        %808 = vmatmul.mubr.f32.gmra.mxu0 %v349
        %v809 = vpop.f32.mrf.mxu0
        %v810 = vadd.f32 %v432, %v809
        %v811 = vpop.f32.mrf.mxu0
        %812 = vmatprep.mubr.f32.mxu0 0.0
        %813 = vmatmul.mubr.f32.gmra.mxu0 %v350
        %v814 = vpop.f32.mrf.mxu0
        %v815 = vadd.f32 %v432, %v814
        %v816 = vpop.f32.mrf.mxu0
        %817 = vmatprep.mubr.f32.mxu0 0.0
        %818 = vmatmul.mubr.f32.gmra.mxu0 %v351
        %v819 = vpop.f32.mrf.mxu0
        %v820 = vadd.f32 %v432, %v819
        %v821 = vpop.f32.mrf.mxu0
        %822 = vmatprep.mubr.f32.mxu0 0.0
        %823 = vmatmul.mubr.f32.gmra.mxu0 %v352
        %v824 = vpop.f32.mrf.mxu0
        %v825 = vadd.f32 %v432, %v824
        %v826 = vpop.f32.mrf.mxu0
        %827 = vmatprep.mubr.f32.mxu0 0.0
        %828 = vmatmul.mubr.f32.gmra.mxu0 %v353
        %v829 = vpop.f32.mrf.mxu0
        %v830 = vadd.f32 %v432, %v829
        %v831 = vpop.f32.mrf.mxu0
        %832 = vmatprep.mubr.f32.mxu0 0.0
        %833 = vmatmul.mubr.f32.gmra.mxu0 %v354
        %v834 = vpop.f32.mrf.mxu0
        %v835 = vadd.f32 %v432, %v834
        %v836 = vpop.f32.mrf.mxu0
        %837 = vmatprep.mubr.f32.mxu0 0.0
        %838 = vmatmul.mubr.f32.gmra.mxu0 %v355
        %v839 = vpop.f32.mrf.mxu0
        %v840 = vadd.f32 %v432, %v839
        %v841 = vpop.f32.mrf.mxu0
        %842 = vmatprep.mubr.f32.mxu0 0.0
        %843 = vmatmul.mubr.f32.gmra.mxu0 %v356
        %v844 = vpop.f32.mrf.mxu0
        %v845 = vadd.f32 %v432, %v844
        %v846 = vpop.f32.mrf.mxu0
        %847 = vmatprep.mubr.f32.mxu0 0.0
        %848 = vmatmul.mubr.f32.gmra.mxu0 %v357
        %v849 = vpop.f32.mrf.mxu0
        %v850 = vadd.f32 %v432, %v849
        %v851 = vpop.f32.mrf.mxu0
        %852 = vmatprep.mubr.f32.mxu0 0.0
        %853 = vmatmul.mubr.f32.gmra.mxu0 %v358
        %v854 = vpop.f32.mrf.mxu0
        %v855 = vadd.f32 %v432, %v854
        %v856 = vpop.f32.mrf.mxu0
        %857 = vmatprep.mubr.f32.mxu0 0.0
        %858 = vmatmul.mubr.f32.gmra.mxu0 %v359
        %v859 = vpop.f32.mrf.mxu0
        %v860 = vadd.f32 %v432, %v859
        %v861 = vpop.f32.mrf.mxu0
        %862 = vmatprep.mubr.f32.mxu0 0.0
        %863 = vmatmul.mubr.f32.gmra.mxu0 %v360
        %v864 = vpop.f32.mrf.mxu0
        %v865 = vadd.f32 %v432, %v864
        %v866 = vpop.f32.mrf.mxu0
        %867 = vmatprep.mubr.f32.mxu0 0.0
        %868 = vmatmul.mubr.f32.gmra.mxu0 %v361
        %v869 = vpop.f32.mrf.mxu0
        %v870 = vadd.f32 %v432, %v869
        %v871 = vpop.f32.mrf.mxu0
        %872 = vmatprep.mubr.f32.mxu0 0.0
        %873 = vmatmul.mubr.f32.gmra.mxu0 %v362
        %v874 = vpop.f32.mrf.mxu0
        %v875 = vadd.f32 %v432, %v874
        %v876 = vpop.f32.mrf.mxu0
        %877 = vmatprep.mubr.f32.mxu0 0.0
        %878 = vmatmul.mubr.f32.gmra.mxu0 %v363
        %v879 = vpop.f32.mrf.mxu0
        %v880 = vadd.f32 %v432, %v879
        %v881 = vpop.f32.mrf.mxu0
        %882 = vmatprep.mubr.f32.mxu0 0.0
        %883 = vmatmul.mubr.f32.gmra.mxu0 %v364
        %v884 = vpop.f32.mrf.mxu0
        %v885 = vadd.f32 %v432, %v884
        %v886 = vpop.f32.mrf.mxu0
        %887 = vmatprep.mubr.f32.mxu0 0.0
        %888 = vmatmul.mubr.f32.gmra.mxu0 %v365
        %v889 = vpop.f32.mrf.mxu0
        %v890 = vadd.f32 %v432, %v889
        %v891 = vpop.f32.mrf.mxu0
        %892 = vmatprep.mubr.f32.mxu0 0.0
        %893 = vmatmul.mubr.f32.gmra.mxu0 %v366
        %v894 = vpop.f32.mrf.mxu0
        %v895 = vadd.f32 %v432, %v894
        %v896 = vpop.f32.mrf.mxu0
        %897 = vmatprep.mubr.f32.mxu0 0.0
        %898 = vmatmul.mubr.f32.gmra.mxu0 %v367
        %v899 = vpop.f32.mrf.mxu0
        %v900 = vadd.f32 %v432, %v899
        %v901 = vpop.f32.mrf.mxu0
        %902 = vmatprep.mubr.f32.mxu0 0.0
        %903 = vmatmul.mubr.f32.gmra.mxu0 %v368
        %v904 = vpop.f32.mrf.mxu0
        %v905 = vadd.f32 %v432, %v904
        %v906 = vpop.f32.mrf.mxu0
        %907 = vmatprep.mubr.f32.mxu0 0.0
        %908 = vmatmul.mubr.f32.gmra.mxu0 %v369
        %v909 = vpop.f32.mrf.mxu0
        %v910 = vadd.f32 %v432, %v909
        %v911 = vpop.f32.mrf.mxu0
        %912 = vmatprep.mubr.f32.mxu0 0.0
        %913 = vmatmul.mubr.f32.gmra.mxu0 %v370
        %v914 = vpop.f32.mrf.mxu0
        %v915 = vadd.f32 %v432, %v914
        %v916 = vpop.f32.mrf.mxu0
        %917 = vdwg.mxu0
        %vm918 = vcmp.gt.f32.partialorder %v503, 0.0
        %vm919 = vcmp.gt.f32.partialorder %v505, 0.0
        %vm920 = vcmp.gt.f32.partialorder %v509, 0.0
        %vm921 = vcmp.gt.f32.partialorder %v511, 0.0
        %vm922 = vcmp.gt.f32.partialorder %v515, 0.0
        %vm923 = vcmp.gt.f32.partialorder %v517, 0.0
        %vm924 = vcmp.gt.f32.partialorder %v521, 0.0
        %vm925 = vcmp.gt.f32.partialorder %v523, 0.0
        %vm926 = vcmp.gt.f32.partialorder %v527, 0.0
        %vm927 = vcmp.gt.f32.partialorder %v529, 0.0
        %vm928 = vcmp.gt.f32.partialorder %v533, 0.0
        %vm929 = vcmp.gt.f32.partialorder %v535, 0.0
        %vm930 = vcmp.gt.f32.partialorder %v539, 0.0
        %vm931 = vcmp.gt.f32.partialorder %v541, 0.0
        %vm932 = vcmp.gt.f32.partialorder %v545, 0.0
        %vm933 = vcmp.gt.f32.partialorder %v547, 0.0
        %vm934 = vcmp.gt.f32.partialorder %v551, 0.0
        %vm935 = vcmp.gt.f32.partialorder %v553, 0.0
        %vm936 = vcmp.gt.f32.partialorder %v557, 0.0
        %vm937 = vcmp.gt.f32.partialorder %v559, 0.0
        %vm938 = vcmp.gt.f32.partialorder %v563, 0.0
        %vm939 = vcmp.gt.f32.partialorder %v565, 0.0
        %vm940 = vcmp.gt.f32.partialorder %v569, 0.0
        %vm941 = vcmp.gt.f32.partialorder %v571, 0.0
        %vm942 = vcmp.gt.f32.partialorder %v575, 0.0
        %vm943 = vcmp.gt.f32.partialorder %v577, 0.0
        %vm944 = vcmp.gt.f32.partialorder %v581, 0.0
        %vm945 = vcmp.gt.f32.partialorder %v583, 0.0
        %vm946 = vcmp.gt.f32.partialorder %v587, 0.0
        %vm947 = vcmp.gt.f32.partialorder %v589, 0.0
        %vm948 = vcmp.gt.f32.partialorder %v593, 0.0
        %vm949 = vcmp.gt.f32.partialorder %v595, 0.0
        %vm950 = vcmp.gt.f32.partialorder %v599, 0.0
        %vm951 = vcmp.gt.f32.partialorder %v601, 0.0
        %vm952 = vcmp.gt.f32.partialorder %v605, 0.0
        %vm953 = vcmp.gt.f32.partialorder %v607, 0.0
        %vm954 = vcmp.gt.f32.partialorder %v611, 0.0
        %vm955 = vcmp.gt.f32.partialorder %v613, 0.0
        %vm956 = vcmp.gt.f32.partialorder %v617, 0.0
        %vm957 = vcmp.gt.f32.partialorder %v619, 0.0
        %vm958 = vcmp.gt.f32.partialorder %v623, 0.0
        %vm959 = vcmp.gt.f32.partialorder %v625, 0.0
        %vm960 = vcmp.gt.f32.partialorder %v629, 0.0
        %vm961 = vcmp.gt.f32.partialorder %v631, 0.0
        %vm962 = vcmp.gt.f32.partialorder %v635, 0.0
        %vm963 = vcmp.gt.f32.partialorder %v637, 0.0
        %vm964 = vcmp.gt.f32.partialorder %v641, 0.0
        %vm965 = vcmp.gt.f32.partialorder %v643, 0.0
        %vm966 = vcmp.gt.f32.partialorder %v647, 0.0
        %vm967 = vcmp.gt.f32.partialorder %v649, 0.0
        %vm968 = vcmp.gt.f32.partialorder %v653, 0.0
        %vm969 = vcmp.gt.f32.partialorder %v655, 0.0
        %vm970 = vcmp.gt.f32.partialorder %v659, 0.0
        %vm971 = vcmp.gt.f32.partialorder %v661, 0.0
        %vm972 = vcmp.gt.f32.partialorder %v665, 0.0
        %vm973 = vcmp.gt.f32.partialorder %v667, 0.0
        %vm974 = vcmp.gt.f32.partialorder %v671, 0.0
        %vm975 = vcmp.gt.f32.partialorder %v673, 0.0
        %vm976 = vcmp.gt.f32.partialorder %v677, 0.0
        %vm977 = vcmp.gt.f32.partialorder %v679, 0.0
        %vm978 = vcmp.gt.f32.partialorder %v683, 0.0
        %vm979 = vcmp.gt.f32.partialorder %v685, 0.0
        %vm980 = vcmp.gt.f32.partialorder %v689, 0.0
        %vm981 = vcmp.gt.f32.partialorder %v691, 0.0
        %v982 = vadd.f32 %v503, 1.0
        %v983 = vadd.f32 %v505, 1.0
        %v984 = vadd.f32 %v509, 1.0
        %v985 = vadd.f32 %v511, 1.0
        %v986 = vadd.f32 %v515, 1.0
        %v987 = vadd.f32 %v517, 1.0
        %v988 = vadd.f32 %v521, 1.0
        %v989 = vadd.f32 %v523, 1.0
        %v990 = vadd.f32 %v527, 1.0
        %v991 = vadd.f32 %v529, 1.0
        %v992 = vadd.f32 %v533, 1.0
        %v993 = vadd.f32 %v535, 1.0
        %v994 = vadd.f32 %v539, 1.0
        %v995 = vadd.f32 %v541, 1.0
        %v996 = vadd.f32 %v545, 1.0
        %v997 = vadd.f32 %v547, 1.0
        %v998 = vadd.f32 %v551, 1.0
        %v999 = vadd.f32 %v553, 1.0
        %v1000 = vadd.f32 %v557, 1.0
        %v1001 = vadd.f32 %v559, 1.0
        %v1002 = vadd.f32 %v563, 1.0
        %v1003 = vadd.f32 %v565, 1.0
        %v1004 = vadd.f32 %v569, 1.0
        %v1005 = vadd.f32 %v571, 1.0
        %v1006 = vadd.f32 %v575, 1.0
        %v1007 = vadd.f32 %v577, 1.0
        %v1008 = vadd.f32 %v581, 1.0
        %v1009 = vadd.f32 %v583, 1.0
        %v1010 = vadd.f32 %v587, 1.0
        %v1011 = vadd.f32 %v589, 1.0
        %v1012 = vadd.f32 %v593, 1.0
        %v1013 = vadd.f32 %v595, 1.0
        %v1014 = vadd.f32 %v599, 1.0
        %v1015 = vadd.f32 %v601, 1.0
        %v1016 = vadd.f32 %v605, 1.0
        %v1017 = vadd.f32 %v607, 1.0
        %v1018 = vadd.f32 %v611, 1.0
        %v1019 = vadd.f32 %v613, 1.0
        %v1020 = vadd.f32 %v617, 1.0
        %v1021 = vadd.f32 %v619, 1.0
        %v1022 = vadd.f32 %v623, 1.0
        %v1023 = vadd.f32 %v625, 1.0
        %v1024 = vadd.f32 %v629, 1.0
        %v1025 = vadd.f32 %v631, 1.0
        %v1026 = vadd.f32 %v635, 1.0
        %v1027 = vadd.f32 %v637, 1.0
        %v1028 = vadd.f32 %v641, 1.0
        %v1029 = vadd.f32 %v643, 1.0
        %v1030 = vadd.f32 %v647, 1.0
        %v1031 = vadd.f32 %v649, 1.0
        %v1032 = vadd.f32 %v653, 1.0
        %v1033 = vadd.f32 %v655, 1.0
        %v1034 = vadd.f32 %v659, 1.0
        %v1035 = vadd.f32 %v661, 1.0
        %v1036 = vadd.f32 %v665, 1.0
        %v1037 = vadd.f32 %v667, 1.0
        %v1038 = vadd.f32 %v671, 1.0
        %v1039 = vadd.f32 %v673, 1.0
        %v1040 = vadd.f32 %v677, 1.0
        %v1041 = vadd.f32 %v679, 1.0
        %v1042 = vadd.f32 %v683, 1.0
        %v1043 = vadd.f32 %v685, 1.0
        %v1044 = vadd.f32 %v689, 1.0
        %v1045 = vadd.f32 %v691, 1.0
        %v1046 = vmul.f32 %v503, 1.442695
        %v1047 = vpow.pop %v1046
        %v1048 = vmul.f32 %v505, 1.442695
        %v1049 = vpow.pop %v1048
        %v1050 = vmul.f32 %v509, 1.442695
        %v1051 = vpow.pop %v1050
        %v1052 = vmul.f32 %v511, 1.442695
        %v1053 = vpow.pop %v1052
        %v1054 = vmul.f32 %v515, 1.442695
        %v1055 = vpow.pop %v1054
        %v1056 = vmul.f32 %v517, 1.442695
        %v1057 = vpow.pop %v1056
        %v1058 = vmul.f32 %v521, 1.442695
        %v1059 = vpow.pop %v1058
        %v1060 = vmul.f32 %v523, 1.442695
        %v1061 = vpow.pop %v1060
        %v1062 = vmul.f32 %v527, 1.442695
        %v1063 = vpow.pop %v1062
        %v1064 = vmul.f32 %v529, 1.442695
        %v1065 = vpow.pop %v1064
        %v1066 = vmul.f32 %v533, 1.442695
        %v1067 = vpow.pop %v1066
        %v1068 = vmul.f32 %v535, 1.442695
        %v1069 = vpow.pop %v1068
        %v1070 = vmul.f32 %v539, 1.442695
        %v1071 = vpow.pop %v1070
        %v1072 = vmul.f32 %v541, 1.442695
        %v1073 = vpow.pop %v1072
        %v1074 = vmul.f32 %v545, 1.442695
        %v1075 = vpow.pop %v1074
        %v1076 = vmul.f32 %v547, 1.442695
        %v1077 = vpow.pop %v1076
        %v1078 = vmul.f32 %v551, 1.442695
        %v1079 = vpow.pop %v1078
        %v1080 = vmul.f32 %v553, 1.442695
        %v1081 = vpow.pop %v1080
        %v1082 = vmul.f32 %v557, 1.442695
        %v1083 = vpow.pop %v1082
        %v1084 = vmul.f32 %v559, 1.442695
        %v1085 = vpow.pop %v1084
        %v1086 = vmul.f32 %v563, 1.442695
        %v1087 = vpow.pop %v1086
        %v1088 = vmul.f32 %v565, 1.442695
        %v1089 = vpow.pop %v1088
        %v1090 = vmul.f32 %v569, 1.442695
        %v1091 = vpow.pop %v1090
        %v1092 = vmul.f32 %v571, 1.442695
        %v1093 = vpow.pop %v1092
        %v1094 = vmul.f32 %v575, 1.442695
        %v1095 = vpow.pop %v1094
        %v1096 = vmul.f32 %v577, 1.442695
        %v1097 = vpow.pop %v1096
        %v1098 = vmul.f32 %v581, 1.442695
        %v1099 = vpow.pop %v1098
        %v1100 = vmul.f32 %v583, 1.442695
        %v1101 = vpow.pop %v1100
        %v1102 = vmul.f32 %v587, 1.442695
        %v1103 = vpow.pop %v1102
        %v1104 = vmul.f32 %v589, 1.442695
        %v1105 = vpow.pop %v1104
        %v1106 = vmul.f32 %v593, 1.442695
        %v1107 = vpow.pop %v1106
        %v1108 = vmul.f32 %v595, 1.442695
        %v1109 = vpow.pop %v1108
        %v1110 = vmul.f32 %v599, 1.442695
        %v1111 = vpow.pop %v1110
        %v1112 = vmul.f32 %v601, 1.442695
        %v1113 = vpow.pop %v1112
        %v1114 = vmul.f32 %v605, 1.442695
        %v1115 = vpow.pop %v1114
        %v1116 = vmul.f32 %v607, 1.442695
        %v1117 = vpow.pop %v1116
        %v1118 = vmul.f32 %v611, 1.442695
        %v1119 = vpow.pop %v1118
        %v1120 = vmul.f32 %v613, 1.442695
        %v1121 = vpow.pop %v1120
        %v1122 = vmul.f32 %v617, 1.442695
        %v1123 = vpow.pop %v1122
        %v1124 = vmul.f32 %v619, 1.442695
        %v1125 = vpow.pop %v1124
        %v1126 = vmul.f32 %v623, 1.442695
        %v1127 = vpow.pop %v1126
        %v1128 = vmul.f32 %v625, 1.442695
        %v1129 = vpow.pop %v1128
        %v1130 = vmul.f32 %v629, 1.442695
        %v1131 = vpow.pop %v1130
        %v1132 = vmul.f32 %v631, 1.442695
        %v1133 = vpow.pop %v1132
        %v1134 = vmul.f32 %v635, 1.442695
        %v1135 = vpow.pop %v1134
        %v1136 = vmul.f32 %v637, 1.442695
        %v1137 = vpow.pop %v1136
        %v1138 = vmul.f32 %v641, 1.442695
        %v1139 = vpow.pop %v1138
        %v1140 = vmul.f32 %v643, 1.442695
        %v1141 = vpow.pop %v1140
        %v1142 = vmul.f32 %v647, 1.442695
        %v1143 = vpow.pop %v1142
        %v1144 = vmul.f32 %v649, 1.442695
        %v1145 = vpow.pop %v1144
        %v1146 = vmul.f32 %v653, 1.442695
        %v1147 = vpow.pop %v1146
        %v1148 = vmul.f32 %v655, 1.442695
        %v1149 = vpow.pop %v1148
        %v1150 = vmul.f32 %v659, 1.442695
        %v1151 = vpow.pop %v1150
        %v1152 = vmul.f32 %v661, 1.442695
        %v1153 = vpow.pop %v1152
        %v1154 = vmul.f32 %v665, 1.442695
        %v1155 = vpow.pop %v1154
        %v1156 = vmul.f32 %v667, 1.442695
        %v1157 = vpow.pop %v1156
        %v1158 = vmul.f32 %v671, 1.442695
        %v1159 = vpow.pop %v1158
        %v1160 = vmul.f32 %v673, 1.442695
        %v1161 = vpow.pop %v1160
        %v1162 = vmul.f32 %v677, 1.442695
        %v1163 = vpow.pop %v1162
        %v1164 = vmul.f32 %v679, 1.442695
        %v1165 = vpow.pop %v1164
        %v1166 = vmul.f32 %v683, 1.442695
        %v1167 = vpow.pop %v1166
        %v1168 = vmul.f32 %v685, 1.442695
        %v1169 = vpow.pop %v1168
        %v1170 = vmul.f32 %v689, 1.442695
        %v1171 = vpow.pop %v1170
        %v1172 = vmul.f32 %v691, 1.442695
        %v1173 = vpow.pop %v1172
        %v1174 = vsel %vm918, %v982, %v1047
        %v1175 = vsel %vm919, %v983, %v1049
        %v1176 = vsel %vm920, %v984, %v1051
        %v1177 = vsel %vm921, %v985, %v1053
        %v1178 = vsel %vm922, %v986, %v1055
        %v1179 = vsel %vm923, %v987, %v1057
        %v1180 = vsel %vm924, %v988, %v1059
        %v1181 = vsel %vm925, %v989, %v1061
        %v1182 = vsel %vm926, %v990, %v1063
        %v1183 = vsel %vm927, %v991, %v1065
        %v1184 = vsel %vm928, %v992, %v1067
        %v1185 = vsel %vm929, %v993, %v1069
        %v1186 = vsel %vm930, %v994, %v1071
        %v1187 = vsel %vm931, %v995, %v1073
        %v1188 = vsel %vm932, %v996, %v1075
        %v1189 = vsel %vm933, %v997, %v1077
        %v1190 = vsel %vm934, %v998, %v1079
        %v1191 = vsel %vm935, %v999, %v1081
        %v1192 = vsel %vm936, %v1000, %v1083
        %v1193 = vsel %vm937, %v1001, %v1085
        %v1194 = vsel %vm938, %v1002, %v1087
        %v1195 = vsel %vm939, %v1003, %v1089
        %v1196 = vsel %vm940, %v1004, %v1091
        %v1197 = vsel %vm941, %v1005, %v1093
        %v1198 = vsel %vm942, %v1006, %v1095
        %v1199 = vsel %vm943, %v1007, %v1097
        %v1200 = vsel %vm944, %v1008, %v1099
        %v1201 = vsel %vm945, %v1009, %v1101
        %v1202 = vsel %vm946, %v1010, %v1103
        %v1203 = vsel %vm947, %v1011, %v1105
        %v1204 = vsel %vm948, %v1012, %v1107
        %v1205 = vsel %vm949, %v1013, %v1109
        %v1206 = vsel %vm950, %v1014, %v1111
        %v1207 = vsel %vm951, %v1015, %v1113
        %v1208 = vsel %vm952, %v1016, %v1115
        %v1209 = vsel %vm953, %v1017, %v1117
        %v1210 = vsel %vm954, %v1018, %v1119
        %v1211 = vsel %vm955, %v1019, %v1121
        %v1212 = vsel %vm956, %v1020, %v1123
        %v1213 = vsel %vm957, %v1021, %v1125
        %v1214 = vsel %vm958, %v1022, %v1127
        %v1215 = vsel %vm959, %v1023, %v1129
        %v1216 = vsel %vm960, %v1024, %v1131
        %v1217 = vsel %vm961, %v1025, %v1133
        %v1218 = vsel %vm962, %v1026, %v1135
        %v1219 = vsel %vm963, %v1027, %v1137
        %v1220 = vsel %vm964, %v1028, %v1139
        %v1221 = vsel %vm965, %v1029, %v1141
        %v1222 = vsel %vm966, %v1030, %v1143
        %v1223 = vsel %vm967, %v1031, %v1145
        %v1224 = vsel %vm968, %v1032, %v1147
        %v1225 = vsel %vm969, %v1033, %v1149
        %v1226 = vsel %vm970, %v1034, %v1151
        %v1227 = vsel %vm971, %v1035, %v1153
        %v1228 = vsel %vm972, %v1036, %v1155
        %v1229 = vsel %vm973, %v1037, %v1157
        %v1230 = vsel %vm974, %v1038, %v1159
        %v1231 = vsel %vm975, %v1039, %v1161
        %v1232 = vsel %vm976, %v1040, %v1163
        %v1233 = vsel %vm977, %v1041, %v1165
        %v1234 = vsel %vm978, %v1042, %v1167
        %v1235 = vsel %vm979, %v1043, %v1169
        %v1236 = vsel %vm980, %v1044, %v1171
        %v1237 = vsel %vm981, %v1045, %v1173
        %v1238 = vmul.f32 %v1175, %v760
        %v1239 = vmul.f32 %v1177, %v765
        %v1240 = vmul.f32 %v1179, %v770
        %v1241 = vmul.f32 %v1181, %v775
        %v1242 = vmul.f32 %v1183, %v780
        %v1243 = vmul.f32 %v1185, %v785
        %v1244 = vmul.f32 %v1187, %v790
        %v1245 = vmul.f32 %v1189, %v795
        %v1246 = vmul.f32 %v1191, %v800
        %v1247 = vmul.f32 %v1193, %v805
        %v1248 = vmul.f32 %v1195, %v810
        %v1249 = vmul.f32 %v1197, %v815
        %v1250 = vmul.f32 %v1199, %v820
        %v1251 = vmul.f32 %v1201, %v825
        %v1252 = vmul.f32 %v1203, %v830
        %v1253 = vmul.f32 %v1205, %v835
        %v1254 = vmul.f32 %v1207, %v840
        %v1255 = vmul.f32 %v1209, %v845
        %v1256 = vmul.f32 %v1211, %v850
        %v1257 = vmul.f32 %v1213, %v855
        %v1258 = vmul.f32 %v1215, %v860
        %v1259 = vmul.f32 %v1217, %v865
        %v1260 = vmul.f32 %v1219, %v870
        %v1261 = vmul.f32 %v1221, %v875
        %v1262 = vmul.f32 %v1223, %v880
        %v1263 = vmul.f32 %v1225, %v885
        %v1264 = vmul.f32 %v1227, %v890
        %v1265 = vmul.f32 %v1229, %v895
        %v1266 = vmul.f32 %v1231, %v900
        %v1267 = vmul.f32 %v1233, %v905
        %v1268 = vmul.f32 %v1235, %v910
        %v1269 = vmul.f32 %v1237, %v915
        %v1270 = vld [vmem:[#allocation2] sm:$0x1]
        %v1271 = vld [vmem:[#allocation9] sm:$0xff]
        %v1272 = vld [vmem:[#allocation9 + $0x8] sm:$0xff]
        %v1273 = vld [vmem:[#allocation9 + $0x10] sm:$0xff]
        %v1274 = vld [vmem:[#allocation9 + $0x18] sm:$0xff]
        %v1275 = vld [vmem:[#allocation9 + $0x20] sm:$0xff]
        %v1276 = vld [vmem:[#allocation9 + $0x28] sm:$0xff]
        %v1277 = vld [vmem:[#allocation9 + $0x30] sm:$0xff]
        %v1278 = vld [vmem:[#allocation9 + $0x38] sm:$0xff]
        %v1279 = vld [vmem:[#allocation9 + $0x40] sm:$0xff]
        %v1280 = vld [vmem:[#allocation9 + $0x48] sm:$0xff]
        %v1281 = vld [vmem:[#allocation9 + $0x50] sm:$0xff]
        %v1282 = vld [vmem:[#allocation9 + $0x58] sm:$0xff]
        %v1283 = vld [vmem:[#allocation9 + $0x60] sm:$0xff]
        %v1284 = vld [vmem:[#allocation9 + $0x68] sm:$0xff]
        %v1285 = vld [vmem:[#allocation9 + $0x70] sm:$0xff]
        %v1286 = vld [vmem:[#allocation9 + $0x78] sm:$0xff]
        %v1287 = vld [vmem:[#allocation9 + $0x80] sm:$0xff]
        %v1288 = vld [vmem:[#allocation9 + $0x88] sm:$0xff]
        %v1289 = vld [vmem:[#allocation9 + $0x90] sm:$0xff]
        %v1290 = vld [vmem:[#allocation9 + $0x98] sm:$0xff]
        %v1291 = vld [vmem:[#allocation9 + $0xa0] sm:$0xff]
        %v1292 = vld [vmem:[#allocation9 + $0xa8] sm:$0xff]
        %v1293 = vld [vmem:[#allocation9 + $0xb0] sm:$0xff]
        %v1294 = vld [vmem:[#allocation9 + $0xb8] sm:$0xff]
        %v1295 = vld [vmem:[#allocation9 + $0xc0] sm:$0xff]
        %v1296 = vld [vmem:[#allocation9 + $0xc8] sm:$0xff]
        %v1297 = vld [vmem:[#allocation9 + $0xd0] sm:$0xff]
        %v1298 = vld [vmem:[#allocation9 + $0xd8] sm:$0xff]
        %v1299 = vld [vmem:[#allocation9 + $0xe0] sm:$0xff]
        %v1300 = vld [vmem:[#allocation9 + $0xe8] sm:$0xff]
        %v1301 = vld [vmem:[#allocation9 + $0xf0] sm:$0xff]
        %v1302 = vld [vmem:[#allocation9 + $0xf8] sm:$0xff]
        %v1303 = vld [vmem:[#allocation9 + $0x100] sm:$0xff]
        %v1304 = vld [vmem:[#allocation9 + $0x108] sm:$0xff]
        %v1305 = vld [vmem:[#allocation9 + $0x110] sm:$0xff]
        %v1306 = vld [vmem:[#allocation9 + $0x118] sm:$0xff]
        %v1307 = vld [vmem:[#allocation9 + $0x120] sm:$0xff]
        %v1308 = vld [vmem:[#allocation9 + $0x128] sm:$0xff]
        %v1309 = vld [vmem:[#allocation9 + $0x130] sm:$0xff]
        %v1310 = vld [vmem:[#allocation9 + $0x138] sm:$0xff]
        %v1311 = vld [vmem:[#allocation9 + $0x140] sm:$0xff]
        %v1312 = vld [vmem:[#allocation9 + $0x148] sm:$0xff]
        %v1313 = vld [vmem:[#allocation9 + $0x150] sm:$0xff]
        %v1314 = vld [vmem:[#allocation9 + $0x158] sm:$0xff]
        %v1315 = vld [vmem:[#allocation9 + $0x160] sm:$0xff]
        %v1316 = vld [vmem:[#allocation9 + $0x168] sm:$0xff]
        %v1317 = vld [vmem:[#allocation9 + $0x170] sm:$0xff]
        %v1318 = vld [vmem:[#allocation9 + $0x178] sm:$0xff]
        %v1319 = vld [vmem:[#allocation9 + $0x180] sm:$0xff]
        %v1320 = vld [vmem:[#allocation9 + $0x188] sm:$0xff]
        %v1321 = vld [vmem:[#allocation9 + $0x190] sm:$0xff]
        %v1322 = vld [vmem:[#allocation9 + $0x198] sm:$0xff]
        %v1323 = vld [vmem:[#allocation9 + $0x1a0] sm:$0xff]
        %v1324 = vld [vmem:[#allocation9 + $0x1a8] sm:$0xff]
        %v1325 = vld [vmem:[#allocation9 + $0x1b0] sm:$0xff]
        %v1326 = vld [vmem:[#allocation9 + $0x1b8] sm:$0xff]
        %v1327 = vld [vmem:[#allocation9 + $0x1c0] sm:$0xff]
        %v1328 = vld [vmem:[#allocation9 + $0x1c8] sm:$0xff]
        %v1329 = vld [vmem:[#allocation9 + $0x1d0] sm:$0xff]
        %v1330 = vld [vmem:[#allocation9 + $0x1d8] sm:$0xff]
        %v1331 = vld [vmem:[#allocation9 + $0x1e0] sm:$0xff]
        %v1332 = vld [vmem:[#allocation9 + $0x1e8] sm:$0xff]
        %v1333 = vld [vmem:[#allocation9 + $0x1f0] sm:$0xff]
        %v1334 = vld [vmem:[#allocation9 + $0x1f8] sm:$0xff]
        %v1336 = vlaneseq
        %v1337 = vshrl.u32 %v1336, 7
        %v1338 = vsub.s32 0, %v1337
        %v1339 = vrot.slane %v1270, %v1338
        %1341 = vmatprep.subr.mxu0 0.0
        %1342 = vmatpush1.msra.mxu0 %v1253
        %1343 = vmatprep.subr.mxu0 0.0
        %1344 = vmatpush1.msra.mxu0 %v1252
        %1345 = vmatprep.subr.mxu0 0.0
        %1346 = vmatpush1.msra.mxu0 %v1251
        %1347 = vmatprep.subr.mxu0 0.0
        %1348 = vmatpush1.msra.mxu0 %v1250
        %1349 = vmatprep.subr.mxu0 0.0
        %1350 = vmatpush1.msra.mxu0 %v1249
        %1351 = vmatprep.subr.mxu0 0.0
        %1352 = vmatpush1.msra.mxu0 %v1248
        %1353 = vmatprep.subr.mxu0 0.0
        %1354 = vmatpush1.msra.mxu0 %v1247
        %1355 = vmatprep.subr.mxu0 0.0
        %1356 = vmatpush1.msra.mxu0 %v1246
        %1357 = vmatprep.subr.mxu0 0.0
        %1358 = vmatpush1.msra.mxu0 %v1245
        %1359 = vmatprep.subr.mxu0 0.0
        %1360 = vmatpush1.msra.mxu0 %v1244
        %1361 = vmatprep.subr.mxu0 0.0
        %1362 = vmatpush1.msra.mxu0 %v1243
        %1363 = vmatprep.subr.mxu0 0.0
        %1364 = vmatpush1.msra.mxu0 %v1242
        %1365 = vmatprep.subr.mxu0 0.0
        %1366 = vmatpush1.msra.mxu0 %v1241
        %1367 = vmatprep.subr.mxu0 0.0
        %1368 = vmatpush1.msra.mxu0 %v1240
        %1369 = vmatprep.subr.mxu0 0.0
        %1370 = vmatpush1.msra.mxu0 %v1239
        %1371 = vmatprep.subr.mxu0 0.0
        %1372 = vmatpush1.msra.mxu0 %v1238
        %1373 = vmatprep.subr.mxu0 0.0
        %1374 = vmatpush2.msra.mxu0 %v1269
        %1375 = vmatprep.subr.mxu0 0.0
        %1376 = vmatpush2.msra.mxu0 %v1268
        %1377 = vmatprep.subr.mxu0 0.0
        %1378 = vmatpush2.msra.mxu0 %v1267
        %1379 = vmatprep.subr.mxu0 0.0
        %1380 = vmatpush2.msra.mxu0 %v1266
        %1381 = vmatprep.subr.mxu0 0.0
        %1382 = vmatpush2.msra.mxu0 %v1265
        %1383 = vmatprep.subr.mxu0 0.0
        %1384 = vmatpush2.msra.mxu0 %v1264
        %1385 = vmatprep.subr.mxu0 0.0
        %1386 = vmatpush2.msra.mxu0 %v1263
        %1387 = vmatprep.subr.mxu0 0.0
        %1388 = vmatpush2.msra.mxu0 %v1262
        %1389 = vmatprep.subr.mxu0 0.0
        %1390 = vmatpush2.msra.mxu0 %v1261
        %1391 = vmatprep.subr.mxu0 0.0
        %1392 = vmatpush2.msra.mxu0 %v1260
        %1393 = vmatprep.subr.mxu0 0.0
        %1394 = vmatpush2.msra.mxu0 %v1259
        %1395 = vmatprep.subr.mxu0 0.0
        %1396 = vmatpush2.msra.mxu0 %v1258
        %1397 = vmatprep.subr.mxu0 0.0
        %1398 = vmatpush2.msra.mxu0 %v1257
        %1399 = vmatprep.subr.mxu0 0.0
        %1400 = vmatpush2.msra.mxu0 %v1256
        %1401 = vmatprep.subr.mxu0 0.0
        %1402 = vmatpush2.msra.mxu0 %v1255
        %1403 = vmatprep.subr.mxu0 0.0
        %1404 = vmatpush2.msra.mxu0 %v1254
        %1405 = vmatprep.mubr.f32.mxu0 %v1272
        %1406 = vmatmul.mubr.f32.gmra.mxu0 %v1271
        %v1407 = vpop.f32.mrf.mxu0
        %v1408 = vadd.f32 %v1339, %v1407
        %v1409 = vpop.f32.mrf.mxu0
        %1410 = vmatprep.mubr.f32.mxu0 %v1274
        %1411 = vmatmul.mubr.f32.gmra.mxu0 %v1273
        %v1412 = vpop.f32.mrf.mxu0
        %v1413 = vadd.f32 %v1339, %v1412
        %v1414 = vpop.f32.mrf.mxu0
        %1415 = vmatprep.mubr.f32.mxu0 %v1276
        %1416 = vmatmul.mubr.f32.gmra.mxu0 %v1275
        %v1417 = vpop.f32.mrf.mxu0
        %v1418 = vadd.f32 %v1339, %v1417
        %v1419 = vpop.f32.mrf.mxu0
        %1420 = vmatprep.mubr.f32.mxu0 %v1278
        %1421 = vmatmul.mubr.f32.gmra.mxu0 %v1277
        %v1422 = vpop.f32.mrf.mxu0
        %v1423 = vadd.f32 %v1339, %v1422
        %v1424 = vpop.f32.mrf.mxu0
        %1425 = vmatprep.mubr.f32.mxu0 %v1280
        %1426 = vmatmul.mubr.f32.gmra.mxu0 %v1279
        %v1427 = vpop.f32.mrf.mxu0
        %v1428 = vadd.f32 %v1339, %v1427
        %v1429 = vpop.f32.mrf.mxu0
        %1430 = vmatprep.mubr.f32.mxu0 %v1282
        %1431 = vmatmul.mubr.f32.gmra.mxu0 %v1281
        %v1432 = vpop.f32.mrf.mxu0
        %v1433 = vadd.f32 %v1339, %v1432
        %v1434 = vpop.f32.mrf.mxu0
        %1435 = vmatprep.mubr.f32.mxu0 %v1284
        %1436 = vmatmul.mubr.f32.gmra.mxu0 %v1283
        %v1437 = vpop.f32.mrf.mxu0
        %v1438 = vadd.f32 %v1339, %v1437
        %v1439 = vpop.f32.mrf.mxu0
        %1440 = vmatprep.mubr.f32.mxu0 %v1286
        %1441 = vmatmul.mubr.f32.gmra.mxu0 %v1285
        %v1442 = vpop.f32.mrf.mxu0
        %v1443 = vadd.f32 %v1339, %v1442
        %v1444 = vpop.f32.mrf.mxu0
        %1445 = vmatprep.mubr.f32.mxu0 %v1288
        %1446 = vmatmul.mubr.f32.gmra.mxu0 %v1287
        %v1447 = vpop.f32.mrf.mxu0
        %v1448 = vadd.f32 %v1339, %v1447
        %v1449 = vpop.f32.mrf.mxu0
        %1450 = vmatprep.mubr.f32.mxu0 %v1290
        %1451 = vmatmul.mubr.f32.gmra.mxu0 %v1289
        %v1452 = vpop.f32.mrf.mxu0
        %v1453 = vadd.f32 %v1339, %v1452
        %v1454 = vpop.f32.mrf.mxu0
        %1455 = vmatprep.mubr.f32.mxu0 %v1292
        %1456 = vmatmul.mubr.f32.gmra.mxu0 %v1291
        %v1457 = vpop.f32.mrf.mxu0
        %v1458 = vadd.f32 %v1339, %v1457
        %v1459 = vpop.f32.mrf.mxu0
        %1460 = vmatprep.mubr.f32.mxu0 %v1294
        %1461 = vmatmul.mubr.f32.gmra.mxu0 %v1293
        %v1462 = vpop.f32.mrf.mxu0
        %v1463 = vadd.f32 %v1339, %v1462
        %v1464 = vpop.f32.mrf.mxu0
        %1465 = vmatprep.mubr.f32.mxu0 %v1296
        %1466 = vmatmul.mubr.f32.gmra.mxu0 %v1295
        %v1467 = vpop.f32.mrf.mxu0
        %v1468 = vadd.f32 %v1339, %v1467
        %v1469 = vpop.f32.mrf.mxu0
        %1470 = vmatprep.mubr.f32.mxu0 %v1298
        %1471 = vmatmul.mubr.f32.gmra.mxu0 %v1297
        %v1472 = vpop.f32.mrf.mxu0
        %v1473 = vadd.f32 %v1339, %v1472
        %v1474 = vpop.f32.mrf.mxu0
        %1475 = vmatprep.mubr.f32.mxu0 %v1300
        %1476 = vmatmul.mubr.f32.gmra.mxu0 %v1299
        %v1477 = vpop.f32.mrf.mxu0
        %v1478 = vadd.f32 %v1339, %v1477
        %v1479 = vpop.f32.mrf.mxu0
        %1480 = vmatprep.mubr.f32.mxu0 %v1302
        %1481 = vmatmul.mubr.f32.gmra.mxu0 %v1301
        %v1482 = vpop.f32.mrf.mxu0
        %v1483 = vadd.f32 %v1339, %v1482
        %v1484 = vpop.f32.mrf.mxu0
        %1485 = vmatprep.mubr.f32.mxu0 %v1304
        %1486 = vmatmul.mubr.f32.gmra.mxu0 %v1303
        %v1487 = vpop.f32.mrf.mxu0
        %v1488 = vadd.f32 %v1339, %v1487
        %v1489 = vpop.f32.mrf.mxu0
        %1490 = vmatprep.mubr.f32.mxu0 %v1306
        %1491 = vmatmul.mubr.f32.gmra.mxu0 %v1305
        %v1492 = vpop.f32.mrf.mxu0
        %v1493 = vadd.f32 %v1339, %v1492
        %v1494 = vpop.f32.mrf.mxu0
        %1495 = vmatprep.mubr.f32.mxu0 %v1308
        %1496 = vmatmul.mubr.f32.gmra.mxu0 %v1307
        %v1497 = vpop.f32.mrf.mxu0
        %v1498 = vadd.f32 %v1339, %v1497
        %v1499 = vpop.f32.mrf.mxu0
        %1500 = vmatprep.mubr.f32.mxu0 %v1310
        %1501 = vmatmul.mubr.f32.gmra.mxu0 %v1309
        %v1502 = vpop.f32.mrf.mxu0
        %v1503 = vadd.f32 %v1339, %v1502
        %v1504 = vpop.f32.mrf.mxu0
        %1505 = vmatprep.mubr.f32.mxu0 %v1312
        %1506 = vmatmul.mubr.f32.gmra.mxu0 %v1311
        %v1507 = vpop.f32.mrf.mxu0
        %v1508 = vadd.f32 %v1339, %v1507
        %v1509 = vpop.f32.mrf.mxu0
        %1510 = vmatprep.mubr.f32.mxu0 %v1314
        %1511 = vmatmul.mubr.f32.gmra.mxu0 %v1313
        %v1512 = vpop.f32.mrf.mxu0
        %v1513 = vadd.f32 %v1339, %v1512
        %v1514 = vpop.f32.mrf.mxu0
        %1515 = vmatprep.mubr.f32.mxu0 %v1316
        %1516 = vmatmul.mubr.f32.gmra.mxu0 %v1315
        %v1517 = vpop.f32.mrf.mxu0
        %v1518 = vadd.f32 %v1339, %v1517
        %v1519 = vpop.f32.mrf.mxu0
        %1520 = vmatprep.mubr.f32.mxu0 %v1318
        %1521 = vmatmul.mubr.f32.gmra.mxu0 %v1317
        %v1522 = vpop.f32.mrf.mxu0
        %v1523 = vadd.f32 %v1339, %v1522
        %v1524 = vpop.f32.mrf.mxu0
        %1525 = vmatprep.mubr.f32.mxu0 %v1320
        %1526 = vmatmul.mubr.f32.gmra.mxu0 %v1319
        %v1527 = vpop.f32.mrf.mxu0
        %v1528 = vadd.f32 %v1339, %v1527
        %v1529 = vpop.f32.mrf.mxu0
        %1530 = vmatprep.mubr.f32.mxu0 %v1322
        %1531 = vmatmul.mubr.f32.gmra.mxu0 %v1321
        %v1532 = vpop.f32.mrf.mxu0
        %v1533 = vadd.f32 %v1339, %v1532
        %v1534 = vpop.f32.mrf.mxu0
        %1535 = vmatprep.mubr.f32.mxu0 %v1324
        %1536 = vmatmul.mubr.f32.gmra.mxu0 %v1323
        %v1537 = vpop.f32.mrf.mxu0
        %v1538 = vadd.f32 %v1339, %v1537
        %v1539 = vpop.f32.mrf.mxu0
        %1540 = vmatprep.mubr.f32.mxu0 %v1326
        %1541 = vmatmul.mubr.f32.gmra.mxu0 %v1325
        %v1542 = vpop.f32.mrf.mxu0
        %v1543 = vadd.f32 %v1339, %v1542
        %v1544 = vpop.f32.mrf.mxu0
        %1545 = vmatprep.mubr.f32.mxu0 %v1328
        %1546 = vmatmul.mubr.f32.gmra.mxu0 %v1327
        %v1547 = vpop.f32.mrf.mxu0
        %v1548 = vadd.f32 %v1339, %v1547
        %v1549 = vpop.f32.mrf.mxu0
        %1550 = vmatprep.mubr.f32.mxu0 %v1330
        %1551 = vmatmul.mubr.f32.gmra.mxu0 %v1329
        %v1552 = vpop.f32.mrf.mxu0
        %v1553 = vadd.f32 %v1339, %v1552
        %v1554 = vpop.f32.mrf.mxu0
        %1555 = vmatprep.mubr.f32.mxu0 %v1332
        %1556 = vmatmul.mubr.f32.gmra.mxu0 %v1331
        %v1557 = vpop.f32.mrf.mxu0
        %v1558 = vadd.f32 %v1339, %v1557
        %v1559 = vpop.f32.mrf.mxu0
        %1560 = vmatprep.mubr.f32.mxu0 %v1334
        %1561 = vmatmul.mubr.f32.gmra.mxu0 %v1333
        %v1562 = vpop.f32.mrf.mxu0
        %v1563 = vadd.f32 %v1339, %v1562
        %v1564 = vpop.f32.mrf.mxu0
        %1565 = vdwg.mxu0
        %1566 = vst [vmem:[#allocation2 - $0x7] sm:$0x80] %v1563
        %v1567 = vmul.f32 %v1174, %v1408
        %v1568 = vmul.f32 %v1176, %v1413
        %v1569 = vmul.f32 %v1178, %v1418
        %v1570 = vmul.f32 %v1180, %v1423
        %v1571 = vmul.f32 %v1182, %v1428
        %v1572 = vmul.f32 %v1184, %v1433
        %v1573 = vmul.f32 %v1186, %v1438
        %v1574 = vmul.f32 %v1188, %v1443
        %v1575 = vmul.f32 %v1190, %v1448
        %v1576 = vmul.f32 %v1192, %v1453
        %v1577 = vmul.f32 %v1194, %v1458
        %v1578 = vmul.f32 %v1196, %v1463
        %v1579 = vmul.f32 %v1198, %v1468
        %v1580 = vmul.f32 %v1200, %v1473
        %v1581 = vmul.f32 %v1202, %v1478
        %v1582 = vmul.f32 %v1204, %v1483
        %v1583 = vmul.f32 %v1206, %v1488
        %v1584 = vmul.f32 %v1208, %v1493
        %v1585 = vmul.f32 %v1210, %v1498
        %v1586 = vmul.f32 %v1212, %v1503
        %v1587 = vmul.f32 %v1214, %v1508
        %v1588 = vmul.f32 %v1216, %v1513
        %v1589 = vmul.f32 %v1218, %v1518
        %v1590 = vmul.f32 %v1220, %v1523
        %v1591 = vmul.f32 %v1222, %v1528
        %v1592 = vmul.f32 %v1224, %v1533
        %v1593 = vmul.f32 %v1226, %v1538
        %v1594 = vmul.f32 %v1228, %v1543
        %v1595 = vmul.f32 %v1230, %v1548
        %v1596 = vmul.f32 %v1232, %v1553
        %v1597 = vmul.f32 %v1234, %v1558
        %v1598 = vmul.f32 %v1236, %v1563
        %v1599 = vld [vmem:[#allocation8] sm:$0xff]
        %v1600 = vld [vmem:[#allocation8 + $0x8] sm:$0xff]
        %v1601 = vld [vmem:[#allocation8 + $0x10] sm:$0xff]
        %v1602 = vld [vmem:[#allocation8 + $0x18] sm:$0xff]
        %v1603 = vld [vmem:[#allocation8 + $0x20] sm:$0xff]
        %v1604 = vld [vmem:[#allocation8 + $0x28] sm:$0xff]
        %v1605 = vld [vmem:[#allocation8 + $0x30] sm:$0xff]
        %v1606 = vld [vmem:[#allocation8 + $0x38] sm:$0xff]
        %v1607 = vld [vmem:[#allocation8 + $0x40] sm:$0xff]
        %v1608 = vld [vmem:[#allocation8 + $0x48] sm:$0xff]
        %v1609 = vld [vmem:[#allocation8 + $0x50] sm:$0xff]
        %v1610 = vld [vmem:[#allocation8 + $0x58] sm:$0xff]
        %v1611 = vld [vmem:[#allocation8 + $0x60] sm:$0xff]
        %v1612 = vld [vmem:[#allocation8 + $0x68] sm:$0xff]
        %v1613 = vld [vmem:[#allocation8 + $0x70] sm:$0xff]
        %v1614 = vld [vmem:[#allocation8 + $0x78] sm:$0xff]
        %v1615 = vld [vmem:[%s4] sm:$0x1]
        %v1617 = vlaneseq
        %v1618 = vshrl.u32 %v1617, 7
        %v1619 = vsub.s32 0, %v1618
        %v1620 = vrot.slane %v1615, %v1619
        %1622 = vmatprep.subr.mxu0 0.0
        %1623 = vmatpush1.msra.mxu0 %v1614
        %1624 = vmatprep.subr.mxu0 0.0
        %1625 = vmatpush1.msra.mxu0 %v1613
        %1626 = vmatprep.subr.mxu0 0.0
        %1627 = vmatpush1.msra.mxu0 %v1612
        %1628 = vmatprep.subr.mxu0 0.0
        %1629 = vmatpush1.msra.mxu0 %v1611
        %1630 = vmatprep.subr.mxu0 0.0
        %1631 = vmatpush1.msra.mxu0 %v1610
        %1632 = vmatprep.subr.mxu0 0.0
        %1633 = vmatpush1.msra.mxu0 %v1609
        %1634 = vmatprep.subr.mxu0 0.0
        %1635 = vmatpush1.msra.mxu0 %v1608
        %1636 = vmatprep.subr.mxu0 0.0
        %1637 = vmatpush1.msra.mxu0 %v1607
        %1638 = vmatprep.subr.mxu0 0.0
        %1639 = vmatpush1.msra.mxu0 %v1606
        %1640 = vmatprep.subr.mxu0 0.0
        %1641 = vmatpush1.msra.mxu0 %v1605
        %1642 = vmatprep.subr.mxu0 0.0
        %1643 = vmatpush1.msra.mxu0 %v1604
        %1644 = vmatprep.subr.mxu0 0.0
        %1645 = vmatpush1.msra.mxu0 %v1603
        %1646 = vmatprep.subr.mxu0 0.0
        %1647 = vmatpush1.msra.mxu0 %v1602
        %1648 = vmatprep.subr.mxu0 0.0
        %1649 = vmatpush1.msra.mxu0 %v1601
        %1650 = vmatprep.subr.mxu0 0.0
        %1651 = vmatpush1.msra.mxu0 %v1600
        %1652 = vmatprep.subr.mxu0 0.0
        %1653 = vmatpush1.msra.mxu0 %v1599
        %1654 = vmatprep.subr.mxu0 0.0
        %1655 = vmatpush2.msra.mxu0 0.0
        %1656 = vmatprep.subr.mxu0 0.0
        %1657 = vmatpush2.msra.mxu0 0.0
        %1658 = vmatprep.subr.mxu0 0.0
        %1659 = vmatpush2.msra.mxu0 0.0
        %1660 = vmatprep.subr.mxu0 0.0
        %1661 = vmatpush2.msra.mxu0 0.0
        %1662 = vmatprep.subr.mxu0 0.0
        %1663 = vmatpush2.msra.mxu0 0.0
        %1664 = vmatprep.subr.mxu0 0.0
        %1665 = vmatpush2.msra.mxu0 0.0
        %1666 = vmatprep.subr.mxu0 0.0
        %1667 = vmatpush2.msra.mxu0 0.0
        %1668 = vmatprep.subr.mxu0 0.0
        %1669 = vmatpush2.msra.mxu0 0.0
        %1670 = vmatprep.subr.mxu0 0.0
        %1671 = vmatpush2.msra.mxu0 0.0
        %1672 = vmatprep.subr.mxu0 0.0
        %1673 = vmatpush2.msra.mxu0 0.0
        %1674 = vmatprep.subr.mxu0 0.0
        %1675 = vmatpush2.msra.mxu0 0.0
        %1676 = vmatprep.subr.mxu0 0.0
        %1677 = vmatpush2.msra.mxu0 0.0
        %1678 = vmatprep.subr.mxu0 0.0
        %1679 = vmatpush2.msra.mxu0 0.0
        %1680 = vmatprep.subr.mxu0 0.0
        %1681 = vmatpush2.msra.mxu0 0.0
        %1682 = vmatprep.subr.mxu0 0.0
        %1683 = vmatpush2.msra.mxu0 0.0
        %1684 = vmatprep.subr.mxu0 0.0
        %1685 = vmatpush2.msra.mxu0 0.0
        %1686 = vmatprep.mubr.f32.mxu0 0.0
        %1687 = vmatmul.mubr.f32.gmra.mxu0 %v1567
        %v1688 = vpop.f32.mrf.mxu0
        %v1689 = vadd.f32 %v1620, %v1688
        %v1690 = vpop.f32.mrf.mxu0
        %1691 = vmatprep.mubr.f32.mxu0 0.0
        %1692 = vmatmul.mubr.f32.gmra.mxu0 %v1568
        %v1693 = vpop.f32.mrf.mxu0
        %v1694 = vadd.f32 %v1620, %v1693
        %v1695 = vpop.f32.mrf.mxu0
        %1696 = vmatprep.mubr.f32.mxu0 0.0
        %1697 = vmatmul.mubr.f32.gmra.mxu0 %v1569
        %v1698 = vpop.f32.mrf.mxu0
        %v1699 = vadd.f32 %v1620, %v1698
        %v1700 = vpop.f32.mrf.mxu0
        %1701 = vmatprep.mubr.f32.mxu0 0.0
        %1702 = vmatmul.mubr.f32.gmra.mxu0 %v1570
        %v1703 = vpop.f32.mrf.mxu0
        %v1704 = vadd.f32 %v1620, %v1703
        %v1705 = vpop.f32.mrf.mxu0
        %1706 = vmatprep.mubr.f32.mxu0 0.0
        %1707 = vmatmul.mubr.f32.gmra.mxu0 %v1571
        %v1708 = vpop.f32.mrf.mxu0
        %v1709 = vadd.f32 %v1620, %v1708
        %v1710 = vpop.f32.mrf.mxu0
        %1711 = vmatprep.mubr.f32.mxu0 0.0
        %1712 = vmatmul.mubr.f32.gmra.mxu0 %v1572
        %v1713 = vpop.f32.mrf.mxu0
        %v1714 = vadd.f32 %v1620, %v1713
        %v1715 = vpop.f32.mrf.mxu0
        %1716 = vmatprep.mubr.f32.mxu0 0.0
        %1717 = vmatmul.mubr.f32.gmra.mxu0 %v1573
        %v1718 = vpop.f32.mrf.mxu0
        %v1719 = vadd.f32 %v1620, %v1718
        %v1720 = vpop.f32.mrf.mxu0
        %1721 = vmatprep.mubr.f32.mxu0 0.0
        %1722 = vmatmul.mubr.f32.gmra.mxu0 %v1574
        %v1723 = vpop.f32.mrf.mxu0
        %v1724 = vadd.f32 %v1620, %v1723
        %v1725 = vpop.f32.mrf.mxu0
        %1726 = vmatprep.mubr.f32.mxu0 0.0
        %1727 = vmatmul.mubr.f32.gmra.mxu0 %v1575
        %v1728 = vpop.f32.mrf.mxu0
        %v1729 = vadd.f32 %v1620, %v1728
        %v1730 = vpop.f32.mrf.mxu0
        %1731 = vmatprep.mubr.f32.mxu0 0.0
        %1732 = vmatmul.mubr.f32.gmra.mxu0 %v1576
        %v1733 = vpop.f32.mrf.mxu0
        %v1734 = vadd.f32 %v1620, %v1733
        %v1735 = vpop.f32.mrf.mxu0
        %1736 = vmatprep.mubr.f32.mxu0 0.0
        %1737 = vmatmul.mubr.f32.gmra.mxu0 %v1577
        %v1738 = vpop.f32.mrf.mxu0
        %v1739 = vadd.f32 %v1620, %v1738
        %v1740 = vpop.f32.mrf.mxu0
        %1741 = vmatprep.mubr.f32.mxu0 0.0
        %1742 = vmatmul.mubr.f32.gmra.mxu0 %v1578
        %v1743 = vpop.f32.mrf.mxu0
        %v1744 = vadd.f32 %v1620, %v1743
        %v1745 = vpop.f32.mrf.mxu0
        %1746 = vmatprep.mubr.f32.mxu0 0.0
        %1747 = vmatmul.mubr.f32.gmra.mxu0 %v1579
        %v1748 = vpop.f32.mrf.mxu0
        %v1749 = vadd.f32 %v1620, %v1748
        %v1750 = vpop.f32.mrf.mxu0
        %1751 = vmatprep.mubr.f32.mxu0 0.0
        %1752 = vmatmul.mubr.f32.gmra.mxu0 %v1580
        %v1753 = vpop.f32.mrf.mxu0
        %v1754 = vadd.f32 %v1620, %v1753
        %v1755 = vpop.f32.mrf.mxu0
        %1756 = vmatprep.mubr.f32.mxu0 0.0
        %1757 = vmatmul.mubr.f32.gmra.mxu0 %v1581
        %v1758 = vpop.f32.mrf.mxu0
        %v1759 = vadd.f32 %v1620, %v1758
        %v1760 = vpop.f32.mrf.mxu0
        %1761 = vmatprep.mubr.f32.mxu0 0.0
        %1762 = vmatmul.mubr.f32.gmra.mxu0 %v1582
        %v1763 = vpop.f32.mrf.mxu0
        %v1764 = vadd.f32 %v1620, %v1763
        %v1765 = vpop.f32.mrf.mxu0
        %1766 = vmatprep.mubr.f32.mxu0 0.0
        %1767 = vmatmul.mubr.f32.gmra.mxu0 %v1583
        %v1768 = vpop.f32.mrf.mxu0
        %v1769 = vadd.f32 %v1620, %v1768
        %v1770 = vpop.f32.mrf.mxu0
        %1771 = vmatprep.mubr.f32.mxu0 0.0
        %1772 = vmatmul.mubr.f32.gmra.mxu0 %v1584
        %v1773 = vpop.f32.mrf.mxu0
        %v1774 = vadd.f32 %v1620, %v1773
        %v1775 = vpop.f32.mrf.mxu0
        %1776 = vmatprep.mubr.f32.mxu0 0.0
        %1777 = vmatmul.mubr.f32.gmra.mxu0 %v1585
        %v1778 = vpop.f32.mrf.mxu0
        %v1779 = vadd.f32 %v1620, %v1778
        %v1780 = vpop.f32.mrf.mxu0
        %1781 = vmatprep.mubr.f32.mxu0 0.0
        %1782 = vmatmul.mubr.f32.gmra.mxu0 %v1586
        %v1783 = vpop.f32.mrf.mxu0
        %v1784 = vadd.f32 %v1620, %v1783
        %v1785 = vpop.f32.mrf.mxu0
        %1786 = vmatprep.mubr.f32.mxu0 0.0
        %1787 = vmatmul.mubr.f32.gmra.mxu0 %v1587
        %v1788 = vpop.f32.mrf.mxu0
        %v1789 = vadd.f32 %v1620, %v1788
        %v1790 = vpop.f32.mrf.mxu0
        %1791 = vmatprep.mubr.f32.mxu0 0.0
        %1792 = vmatmul.mubr.f32.gmra.mxu0 %v1588
        %v1793 = vpop.f32.mrf.mxu0
        %v1794 = vadd.f32 %v1620, %v1793
        %v1795 = vpop.f32.mrf.mxu0
        %1796 = vmatprep.mubr.f32.mxu0 0.0
        %1797 = vmatmul.mubr.f32.gmra.mxu0 %v1589
        %v1798 = vpop.f32.mrf.mxu0
        %v1799 = vadd.f32 %v1620, %v1798
        %v1800 = vpop.f32.mrf.mxu0
        %1801 = vmatprep.mubr.f32.mxu0 0.0
        %1802 = vmatmul.mubr.f32.gmra.mxu0 %v1590
        %v1803 = vpop.f32.mrf.mxu0
        %v1804 = vadd.f32 %v1620, %v1803
        %v1805 = vpop.f32.mrf.mxu0
        %1806 = vmatprep.mubr.f32.mxu0 0.0
        %1807 = vmatmul.mubr.f32.gmra.mxu0 %v1591
        %v1808 = vpop.f32.mrf.mxu0
        %v1809 = vadd.f32 %v1620, %v1808
        %v1810 = vpop.f32.mrf.mxu0
        %1811 = vmatprep.mubr.f32.mxu0 0.0
        %1812 = vmatmul.mubr.f32.gmra.mxu0 %v1592
        %v1813 = vpop.f32.mrf.mxu0
        %v1814 = vadd.f32 %v1620, %v1813
        %v1815 = vpop.f32.mrf.mxu0
        %1816 = vmatprep.mubr.f32.mxu0 0.0
        %1817 = vmatmul.mubr.f32.gmra.mxu0 %v1593
        %v1818 = vpop.f32.mrf.mxu0
        %v1819 = vadd.f32 %v1620, %v1818
        %v1820 = vpop.f32.mrf.mxu0
        %1821 = vmatprep.mubr.f32.mxu0 0.0
        %1822 = vmatmul.mubr.f32.gmra.mxu0 %v1594
        %v1823 = vpop.f32.mrf.mxu0
        %v1824 = vadd.f32 %v1620, %v1823
        %v1825 = vpop.f32.mrf.mxu0
        %1826 = vmatprep.mubr.f32.mxu0 0.0
        %1827 = vmatmul.mubr.f32.gmra.mxu0 %v1595
        %v1828 = vpop.f32.mrf.mxu0
        %v1829 = vadd.f32 %v1620, %v1828
        %v1830 = vpop.f32.mrf.mxu0
        %1831 = vmatprep.mubr.f32.mxu0 0.0
        %1832 = vmatmul.mubr.f32.gmra.mxu0 %v1596
        %v1833 = vpop.f32.mrf.mxu0
        %v1834 = vadd.f32 %v1620, %v1833
        %v1835 = vpop.f32.mrf.mxu0
        %1836 = vmatprep.mubr.f32.mxu0 0.0
        %1837 = vmatmul.mubr.f32.gmra.mxu0 %v1597
        %v1838 = vpop.f32.mrf.mxu0
        %v1839 = vadd.f32 %v1620, %v1838
        %v1840 = vpop.f32.mrf.mxu0
        %1841 = vmatprep.mubr.f32.mxu0 0.0
        %1842 = vmatmul.mubr.f32.gmra.mxu0 %v1598
        %v1843 = vpop.f32.mrf.mxu0
        %v1844 = vadd.f32 %v1620, %v1843
        %v1845 = vpop.f32.mrf.mxu0
        %1846 = vdwg.mxu0
        %1847 = vst [vmem:[%s331] sm:$0xff] %v1689
        %1848 = vst [vmem:[%s331 + $0x8] sm:$0xff] %v1694
        %1849 = vst [vmem:[%s331 + $0x10] sm:$0xff] %v1699
        %1850 = vst [vmem:[%s331 + $0x18] sm:$0xff] %v1704
        %1851 = vst [vmem:[%s331 + $0x20] sm:$0xff] %v1709
        %1852 = vst [vmem:[%s331 + $0x28] sm:$0xff] %v1714
        %1853 = vst [vmem:[%s331 + $0x30] sm:$0xff] %v1719
        %1854 = vst [vmem:[%s331 + $0x38] sm:$0xff] %v1724
        %1855 = vst [vmem:[%s331 + $0x40] sm:$0xff] %v1729
        %1856 = vst [vmem:[%s331 + $0x48] sm:$0xff] %v1734
        %1857 = vst [vmem:[%s331 + $0x50] sm:$0xff] %v1739
        %1858 = vst [vmem:[%s331 + $0x58] sm:$0xff] %v1744
        %1859 = vst [vmem:[%s331 + $0x60] sm:$0xff] %v1749
        %1860 = vst [vmem:[%s331 + $0x68] sm:$0xff] %v1754
        %1861 = vst [vmem:[%s331 + $0x70] sm:$0xff] %v1759
        %1862 = vst [vmem:[%s331 + $0x78] sm:$0xff] %v1764
        %1863 = vst [vmem:[%s331 + $0x80] sm:$0xff] %v1769
        %1864 = vst [vmem:[%s331 + $0x88] sm:$0xff] %v1774
        %1865 = vst [vmem:[%s331 + $0x90] sm:$0xff] %v1779
        %1866 = vst [vmem:[%s331 + $0x98] sm:$0xff] %v1784
        %1867 = vst [vmem:[%s331 + $0xa0] sm:$0xff] %v1789
        %1868 = vst [vmem:[%s331 + $0xa8] sm:$0xff] %v1794
        %1869 = vst [vmem:[%s331 + $0xb0] sm:$0xff] %v1799
        %1870 = vst [vmem:[%s331 + $0xb8] sm:$0xff] %v1804
        %1871 = vst [vmem:[%s331 + $0xc0] sm:$0xff] %v1809
        %1872 = vst [vmem:[%s331 + $0xc8] sm:$0xff] %v1814
        %1873 = vst [vmem:[%s331 + $0xd0] sm:$0xff] %v1819
        %1874 = vst [vmem:[%s331 + $0xd8] sm:$0xff] %v1824
        %1875 = vst [vmem:[%s331 + $0xe0] sm:$0xff] %v1829
        %1876 = vst [vmem:[%s331 + $0xe8] sm:$0xff] %v1834
        %1877 = vst [vmem:[%s331 + $0xf0] sm:$0xff] %v1839
        %1878 = vst [vmem:[%s331 + $0xf8] sm:$0xff] %v1844
        %s1879 = sand.u32 %s180, 1
        %s1880 = scalar_lea.sflag [#allocation5], %s1879
        %s1881 = sand.u32 %s180, 1
        %s1882 = smul.addr %s1881, 256
        %s1883 = scalar_lea.vmem [#allocation11], %s1882
        // Predicated region
        $region65: #{tpu_custom_call.1} parent=43 // pred_check
          %p1884 = pneg %p190
        $region66: #{tpu_custom_call.1} parent=43 // pred_check_branch
          %1886 = sbr.rel (%p1884) target = $region68
        $region67: #{tpu_custom_call.1} parent=43 // pred_region
          %s1887 = smul.u32 32, %s30
          %s1889 = ssub.s32 4096, 4096
          %1890 = vsyncadd %s1880, %s1889
          %s1891 = smul.addr %s29, 32
          %s1892 = sadd.s32 %s1887, %s1891
          %s1893 = smul.addr %s1892, 128
          %s1894 = scalar_lea.hbm %s6, %s1893
          %s1895 = sshll.u32 %s1883, 4
          %s1896 = int_to_ptr.vmem [resolvable:$true] %s1895
          %1901 = dma.vmem_to_hbm [thread:$0]  %s1896, 4096, %s1894, %s1880, 128, 128, 8
        $region68: #{tpu_custom_call.1} parent=43 // pred_fallthru
          _
      $region44: #{tpu_custom_call.1} parent=5 // pred_fallthru
        _
      %p1902 = scmp.le.s32.totalorder 2, %s20
      // Predicated region
      $region69: #{tpu_custom_call.1} parent=5 // pred_check
        %p1903 = pneg %p1902
      $region70: #{tpu_custom_call.1} parent=5 // pred_check_branch
        %1905 = sbr.rel (%p1903) target = $region72
      $region71: #{tpu_custom_call.1} parent=5 // pred_region
        %s1906 = ssub.s32 %s20, 2
        // Predicated region
        $region73: #{tpu_custom_call.1} parent=71 // pred_check
          %p1907 = pneg %p196
        $region74: #{tpu_custom_call.1} parent=71 // pred_check_branch
          %1909 = sbr.rel (%p1907) target = $region76
        $region75: #{tpu_custom_call.1} parent=71 // pred_region
          %s1910 = sand.u32 %s181, 1
          %s1911 = scalar_lea.sflag [#allocation5], %s1910
          %s1912 = sand.u32 %s181, 1
          %s1913 = smul.addr %s1912, 256
          %s1914 = scalar_lea.vmem [#allocation11], %s1913
          %1915 = dma.done %s1911, 4096
        $region76: #{tpu_custom_call.1} parent=71 // pred_fallthru
          _
      $region72: #{tpu_custom_call.1} parent=5 // pred_fallthru
        _
    $region6: #{tpu_custom_call.1} parent=1 // loop_footer
      %s24 = sadd.s32 1, %s20
    $region7: #{tpu_custom_call.1} parent=1 // loop_footer_branch
      %19 = sbr.rel target = $region3
    $region8: #{tpu_custom_call.1} parent=1 // loop_exit
      _
    %1916 = vsyncpa [#allocation4], 1
    %s1917 = scalar_lea.sflag [#allocation4], 1
    %1918 = vsyncpa %s1917, 1
    %1919 = vsyncpa [#allocation7], 1
    %1920 = vsyncpa [#allocation10], 1
    %1921 = vsyncpa [#allocation5], 1
    %s1922 = scalar_lea.sflag [#allocation5], 1
    %1923 = vsyncpa %s1922, 1

</llo_original>
